<compile_context>
chip_gen: v7x
topology: tpu7x:2x2x1
jax: 0.10.0
libtpu: 0.0.40
codegen_flags: <defaults>
</compile_context>

<pallas_src>
import functools
import math

import jax
import jax.numpy as jnp
import numpy as np
from jax.experimental import pallas as pl
from jax.experimental.pallas import tpu as pltpu


# ----------------------------------------------------------------------------
# helpers shared by the Pallas kernel and the pure-JAX reference
# ----------------------------------------------------------------------------
def _layer_norm(x, eps=1e-5):
    """LayerNorm over last dim, no affine (nn.LayerNorm(..., elementwise_affine=False))."""
    mu = jnp.mean(x, axis=-1, keepdims=True)
    var = jnp.mean((x - mu) ** 2, axis=-1, keepdims=True)
    return (x - mu) / jnp.sqrt(var + eps)


def _device_kind():
    try:
        return jax.devices()[0].device_kind.lower()
    except Exception:
        return ""


def _multi_tensorcore_chip():
    """True only for chips with 2 TensorCores (v4/v5p megacore, v7x)."""
    kind = _device_kind()
    return any(tag in kind for tag in ("v4", "v5p", "7"))


def _vmem_cap_bytes():
    """Conservative per-core VMEM cap for the running chip generation."""
    kind = _device_kind()
    if "7" in kind:          # v7x: 64 MiB physical per TensorCore
        return 56 << 20
    if kind:                 # v5e / v6e: 128 MiB physical
        return 100 << 20
    return 56 << 20          # unknown -> safest cap


# ----------------------------------------------------------------------------
# Pallas kernel: one grid step = one batch chunk, full encoder stack fused.
# ----------------------------------------------------------------------------
def encoder_kernel(
    x_ref, cv_ref,
    we_ref, be_ref,
    wq_ref, bq_ref, wk_ref, bk_ref, wv_ref, bv_ref,
    wo_ref, bo_ref,
    w1_ref, b1_ref, w2_ref, b2_ref,
    out_ref,
    *, n_layers, n_heads, batch_block, seq_len, d_model):
    B, S, D, H, L = batch_block, seq_len, d_model, n_heads, n_layers
    hd = D // H
    scale = 1.0 / math.sqrt(hd)
    R = B * S      # rows processed per grid step
    BH = H * B     # attention batch once heads are folded into the batch dim

    # ---- embedding: (R, F_in) @ (F_in, D), bf16 MXU operands, f32 accumulation ----
    x2 = jnp.dot(x_ref[...], we_ref[...], preferred_element_type=jnp.float32) + be_ref[...]
    x3 = x2.reshape(B, S, D)            # running residual stream, f32

    def heads(t2):
        # (R, H*hd) head-stacked columns -> (H*B, S, hd) attention batch
        return jnp.concatenate(
            [t2[:, h * hd:(h + 1) * hd].reshape(B, S, hd) for h in range(H)], axis=0)

    for l in range(L):  # static unroll over encoder blocks (all weights VMEM-resident)
        g0, beta0, r0 = cv_ref[l, 0], cv_ref[l, 1], cv_ref[l, 2]   # (B, D) f32 each
        g1, beta1, r1 = cv_ref[l, 3], cv_ref[l, 4], cv_ref[l, 5]

        # ---- conditional LayerNorm 0 (f32) ----
        x3 = g0[:, None, :] * _layer_norm(x3) + beta0[:, None, :]
        xb = x3.reshape(R, D).astype(jnp.bfloat16)

        # ---- fused full-width Q/K/V projections: 3 x (R, D) @ (D, D) ----
        q2 = jnp.dot(xb, wq_ref[l], preferred_element_type=jnp.float32) + bq_ref[l]
        k2 = jnp.dot(xb, wk_ref[l], preferred_element_type=jnp.float32) + bk_ref[l]
        v2 = jnp.dot(xb, wv_ref[l], preferred_element_type=jnp.float32) + bv_ref[l]
        q2 = (q2 * scale).astype(jnp.bfloat16)
        k2 = k2.astype(jnp.bfloat16)
        v2 = v2.astype(jnp.bfloat16)

        # ---- attention batched over H*B (single-batch-dim einsums, softmax once) ----
        q = heads(q2)
        k = heads(k2)
        v = heads(v2)
        s = jnp.einsum('bqd,bkd->bqk', q, k, preferred_element_type=jnp.float32)
        s = s - jnp.max(s, axis=-1, keepdims=True)
        p = jnp.exp(s)
        p = p * pl.reciprocal(jnp.sum(p, axis=-1, keepdims=True), approx=True)
        oh = jnp.einsum('bqk,bkd->bqd', p.astype(jnp.bfloat16), v,
                        preferred_element_type=jnp.float32).astype(jnp.bfloat16)

        # ---- reassemble head-major (R, D) rows, single out-proj matmul ----
        att_rows = jnp.concatenate(
            [oh[h * B:(h + 1) * B].reshape(R, hd) for h in range(H)], axis=-1)
        att2 = jnp.dot(att_rows, wo_ref[l], preferred_element_type=jnp.float32) + bo_ref[l]
        x3 = x3 + att2.reshape(B, S, D) * r0[:, None, :]

        # ---- conditional LayerNorm 1 + position-wise feed-forward ----
        # TODO(synk): if S grows (>=512), tile the KV axis with an online softmax instead
        #             of materializing the full (H*B, S, S) score tensor.
        x3 = g1[:, None, :] * _layer_norm(x3) + beta1[:, None, :]
        xb = x3.reshape(R, D).astype(jnp.bfloat16)
        hmid = jnp.maximum(
            jnp.dot(xb, w1_ref[l], preferred_element_type=jnp.float32) + b1_ref[l], 0.0)
        ff2 = jnp.dot(hmid.astype(jnp.bfloat16), w2_ref[l],
                      preferred_element_type=jnp.float32) + b2_ref[l]
        x3 = x3 + ff2.reshape(B, S, D) * r1[:, None, :]

    # lane-dense store: (B, S*D); last dim equals the full output minor dim
    out_ref[...] = x3.reshape(B, S * D)


# ----------------------------------------------------------------------------
# wrapper
# ----------------------------------------------------------------------------
def transformer_encoder_conditional(x, cond, params, *, n_heads, batch_block=None,
                                    use_positional_encoding=False):
    if use_positional_encoding:
        # TODO(synk): PositionalEncoding path not implemented in the kernel.
        raise NotImplementedError("use_positional_encoding=True is not supported")

    N, S, F_in = x.shape
    L = params["w_q"].shape[0]
    D = params["w_emb"].shape[1]
    d_ff = params["w_1"].shape[-1]
    H = n_heads

    if batch_block is None:
        batch_block = N
        # Split into two parallel grid blocks only when a second TensorCore exists
        # (v4/v5p megacore, v7x) and the halves stay tile-aligned & sublane-full.
        if (_multi_tensorcore_chip() and N % 2 == 0 and (N // 2) % 8 == 0
                and ((N // 2) * S) % 16 == 0 and N * S >= 1024):
            batch_block = N // 2
    assert N % batch_block == 0
    num_blocks = N // batch_block

    # Hoist every conditional Linear (gamma/beta/rescale x2 per layer) out of the
    # kernel: cv[l, p] = cond @ W[l, p] + b[l, p]  ->  (L, 6, N, D), f32.
    cv = (jnp.einsum('nc,lpcd->lpnd', cond, params["w_cond"])
          + params["b_cond"]).astype(jnp.float32)

    # bf16 MXU operands: input rows and all weight matrices; biases stay f32.
    x2d = x.reshape(N * S, F_in).astype(jnp.bfloat16)

    def as_weight(k):
        a = params[k]
        return a.astype(jnp.bfloat16) if k.startswith("w_") else a.astype(jnp.float32)

    weight_keys = ("w_emb", "b_emb",
                   "w_q", "b_q", "w_k", "b_k", "w_v", "b_v",
                   "w_o", "b_o",
                   "w_1", "b_1", "w_2", "b_2")
    weights = [as_weight(k) for k in weight_keys]

    # All layers' weights stay resident (full-shape blocks, constant index_map).
    # TODO(synk): for very large L*D*Dff on v7x, stream weights per layer instead.
    def shared(arr):
        nd = arr.ndim
        return pl.BlockSpec(arr.shape, lambda b, _nd=nd: (0,) * _nd)

    in_specs = [
        pl.BlockSpec((batch_block * S, F_in), lambda b: (b, 0)),
        pl.BlockSpec((L, 6, batch_block, D), lambda b: (0, 0, b, 0)),
    ] + [shared(w) for w in weights]
    out_spec = pl.BlockSpec((batch_block, S * D), lambda b: (b, 0))

    # Scoped-VMEM budget from the actual footprint (+25% headroom), capped below
    # the physical VMEM of the detected chip generation.
    weight_bytes = sum(int(w.size) * w.dtype.itemsize for w in weights)
    io_bytes = (batch_block * S * F_in * 2            # x block (bf16)
                + L * 6 * batch_block * D * 4         # cv block (f32)
                + batch_block * S * D * 4)            # out block (f32)
    R, BH = batch_block * S, batch_block * H
    act_bytes = 4 * (6 * R * max(D, d_ff) + 2 * BH * S * S + 4 * R * D)
    est = 2 * weight_bytes + 2 * io_bytes + act_bytes + (4 << 20)
    vmem_limit = min(_vmem_cap_bytes(), max(32 << 20, int(1.25 * est)))

    kernel = functools.partial(encoder_kernel, n_layers=L, n_heads=H,
                               batch_block=batch_block, seq_len=S, d_model=D)

    out = pl.pallas_call(
        kernel,
        out_shape=jax.ShapeDtypeStruct((N, S * D), jnp.float32),
        grid=(num_blocks,),
        in_specs=in_specs,
        out_specs=out_spec,
        compiler_params=pltpu.CompilerParams(
            dimension_semantics=("parallel",),
            vmem_limit_bytes=vmem_limit),
    )(x2d, cv, *weights)
    return out.reshape(N, S, D)


# ----------------------------------------------------------------------------
# pure-JAX reference (same math & bf16 matmul operands, exact softmax) for checking
# ----------------------------------------------------------------------------
def reference_forward(x, cond, p, n_heads, matmul_dtype=jnp.bfloat16):
    L = p["w_q"].shape[0]
    D = p["w_emb"].shape[1]
    H = n_heads
    hd = D // H
    N, S, _ = x.shape
    scale = 1.0 / math.sqrt(hd)

    def mm(a, w):
        return jnp.dot(a.astype(matmul_dtype), w.astype(matmul_dtype),
                       preferred_element_type=jnp.float32)

    x = mm(x, p["w_emb"]) + p["b_emb"]
    cv = jnp.einsum('nc,lpcd->lpnd', cond, p["w_cond"]) + p["b_cond"]

    for l in range(L):
        g0, b0, r0 = cv[l, 0][:, None, :], cv[l, 1][:, None, :], cv[l, 2][:, None, :]
        g1, b1, r1 = cv[l, 3][:, None, :], cv[l, 4][:, None, :], cv[l, 5][:, None, :]

        x = g0 * _layer_norm(x) + b0
        q = (mm(x, p["w_q"][l]) + p["b_q"][l]) * scale
        k = mm(x, p["w_k"][l]) + p["b_k"][l]
        v = mm(x, p["w_v"][l]) + p["b_v"][l]
        q = q.reshape(N, S, H, hd).transpose(0, 2, 1, 3).astype(matmul_dtype)
        k = k.reshape(N, S, H, hd).transpose(0, 2, 1, 3).astype(matmul_dtype)
        v = v.reshape(N, S, H, hd).transpose(0, 2, 1, 3).astype(matmul_dtype)
        s = jnp.einsum('bhqd,bhkd->bhqk', q, k, preferred_element_type=jnp.float32)
        pw = jax.nn.softmax(s, axis=-1)
        oh = jnp.einsum('bhqk,bhkd->bhqd', pw.astype(matmul_dtype), v,
                        preferred_element_type=jnp.float32)
        oh = oh.transpose(0, 2, 1, 3).reshape(N, S, D)
        att = mm(oh, p["w_o"][l]) + p["b_o"][l]
        x = x + att * r0

        x = g1 * _layer_norm(x) + b1
        hmid = jax.nn.relu(mm(x, p["w_1"][l]) + p["b_1"][l])
        ff = mm(hmid, p["w_2"][l]) + p["b_2"][l]
        x = x + ff * r1
    return x


if __name__ == "__main__":
    # small shapes consistent with the module's forward
    N, S = 2, 8                 # batch, sequence length
    F_in, D, C = 16, 32, 8      # n_input_features, d_model, n_condition_features
    H, Dff, L = 4, 64, 2        # n_heads, d_ff, n_layers

    key = jax.random.PRNGKey(0)
    ks = jax.random.split(key, 20)

    def w(k, shape, scale=0.05):
        return (scale * jax.random.normal(k, shape)).astype(jnp.float32)

    # Weight layout notes:
    #  - every nn.Linear weight (out, in) is stored transposed as (in, out);
    #  - MHA q/k/v projections are head-concatenated along their output dim -> (L, D, D);
    #  - the out_proj is head-concatenated along its input dim -> (L, D, D);
    #  - the six conditional linears per block are stacked as w_cond (L, 6, C, D) in the
    #    order [gamma0, beta0, rescale0, gamma1, beta1, rescale1];
    #  - the PyTorch module zero-initializes Rescale; here all params are nonzero so
    #    every branch contributes (forward semantics unchanged).
    params = {
        "w_emb":  w(ks[0],  (F_in, D)),
        "b_emb":  w(ks[1],  (1, D)),
        "w_cond": w(ks[2],  (L, 6, C, D)),
        "b_cond": w(ks[3],  (L, 6, 1, D)),
        "w_q":    w(ks[4],  (L, D, D)),
        "b_q":    w(ks[5],  (L, 1, D)),
        "w_k":    w(ks[6],  (L, D, D)),
        "b_k":    w(ks[7],  (L, 1, D)),
        "w_v":    w(ks[8],  (L, D, D)),
        "b_v":    w(ks[9],  (L, 1, D)),
        "w_o":    w(ks[10], (L, D, D)),
        "b_o":    w(ks[11], (L, 1, D)),
        "w_1":    w(ks[12], (L, D, Dff)),
        "b_1":    w(ks[13], (L, 1, Dff)),
        "w_2":    w(ks[14], (L, Dff, D)),
        "b_2":    w(ks[15], (L, 1, D)),
    }

    x = w(ks[18], (N, S, F_in), 1.0)
    cond = w(ks[19], (N, C), 1.0)

    out = transformer_encoder_conditional(x, cond, params, n_heads=H)
    jax.block_until_ready(out)

    ref = reference_forward(x, cond, params, H)
    assert out.shape == (N, S, D)
    # tolerance absorbs the approx-reciprocal softmax normalization and MXU vs XLA
    # accumulation-order differences (both sides use bf16 matmul operands, f32 accum)
    np.testing.assert_allclose(np.asarray(out), np.asarray(ref), rtol=2e-3, atol=2e-3)
    print("KERNEL_OK")
</pallas_src>

<mosaic_0001>
module attributes {stable_mosaic.version = 11 : i64} {
  func.func @encoder_kernel(%arg0: i32, %arg1: memref<16x16xbf16, #tpu.memory_space<vmem>>, %arg2: memref<2x6x2x32xf32, #tpu.memory_space<vmem>>, %arg3: memref<16x32xbf16, #tpu.memory_space<vmem>>, %arg4: memref<1x32xf32, #tpu.memory_space<vmem>>, %arg5: memref<2x32x32xbf16, #tpu.memory_space<vmem>>, %arg6: memref<2x1x32xf32, #tpu.memory_space<vmem>>, %arg7: memref<2x32x32xbf16, #tpu.memory_space<vmem>>, %arg8: memref<2x1x32xf32, #tpu.memory_space<vmem>>, %arg9: memref<2x32x32xbf16, #tpu.memory_space<vmem>>, %arg10: memref<2x1x32xf32, #tpu.memory_space<vmem>>, %arg11: memref<2x32x32xbf16, #tpu.memory_space<vmem>>, %arg12: memref<2x1x32xf32, #tpu.memory_space<vmem>>, %arg13: memref<2x32x64xbf16, #tpu.memory_space<vmem>>, %arg14: memref<2x1x64xf32, #tpu.memory_space<vmem>>, %arg15: memref<2x64x32xbf16, #tpu.memory_space<vmem>>, %arg16: memref<2x1x32xf32, #tpu.memory_space<vmem>>, %arg17: memref<2x256xf32, #tpu.memory_space<vmem>>) attributes {dimension_semantics = [#tpu.dimension_semantics<parallel>], iteration_bounds = array<i64: 1>, scalar_prefetch = 0 : i64, scratch_operands = 0 : i64, tpu.core_type = #tpu.core_type<tc>, window_params = [{transform_indices = @transform_0, window_bounds = array<i64: 16, 16>}, {transform_indices = @transform_1, window_bounds = array<i64: 2, 6, 2, 32>}, {pipeline_mode = #tpu.pipeline_mode<synchronous>, transform_indices = @transform_2, window_bounds = array<i64: 16, 32>}, {pipeline_mode = #tpu.pipeline_mode<synchronous>, transform_indices = @transform_3, window_bounds = array<i64: 1, 32>}, {pipeline_mode = #tpu.pipeline_mode<synchronous>, transform_indices = @transform_4, window_bounds = array<i64: 2, 32, 32>}, {pipeline_mode = #tpu.pipeline_mode<synchronous>, transform_indices = @transform_5, window_bounds = array<i64: 2, 1, 32>}, {pipeline_mode = #tpu.pipeline_mode<synchronous>, transform_indices = @transform_6, window_bounds = array<i64: 2, 32, 32>}, {pipeline_mode = #tpu.pipeline_mode<synchronous>, transform_indices = @transform_7, window_bounds = array<i64: 2, 1, 32>}, {pipeline_mode = #tpu.pipeline_mode<synchronous>, transform_indices = @transform_8, window_bounds = array<i64: 2, 32, 32>}, {pipeline_mode = #tpu.pipeline_mode<synchronous>, transform_indices = @transform_9, window_bounds = array<i64: 2, 1, 32>}, {pipeline_mode = #tpu.pipeline_mode<synchronous>, transform_indices = @transform_10, window_bounds = array<i64: 2, 32, 32>}, {pipeline_mode = #tpu.pipeline_mode<synchronous>, transform_indices = @transform_11, window_bounds = array<i64: 2, 1, 32>}, {pipeline_mode = #tpu.pipeline_mode<synchronous>, transform_indices = @transform_12, window_bounds = array<i64: 2, 32, 64>}, {pipeline_mode = #tpu.pipeline_mode<synchronous>, transform_indices = @transform_13, window_bounds = array<i64: 2, 1, 64>}, {pipeline_mode = #tpu.pipeline_mode<synchronous>, transform_indices = @transform_14, window_bounds = array<i64: 2, 64, 32>}, {pipeline_mode = #tpu.pipeline_mode<synchronous>, transform_indices = @transform_15, window_bounds = array<i64: 2, 1, 32>}, {transform_indices = @transform_16, window_bounds = array<i64: 2, 256>}]} {
    %c0 = arith.constant 0 : index
    %c0_0 = arith.constant 0 : index
    %0 = vector.load %arg1[%c0, %c0_0] : memref<16x16xbf16, #tpu.memory_space<vmem>>, vector<16x16xbf16>
    %c0_1 = arith.constant 0 : index
    %c0_2 = arith.constant 0 : index
    %1 = vector.load %arg3[%c0_1, %c0_2] : memref<16x32xbf16, #tpu.memory_space<vmem>>, vector<16x32xbf16>
    %cst = arith.constant dense<0.000000e+00> : vector<16x32xf32>
    %2 = tpu.matmul %0, %1, %cst {dimension_numbers = #tpu.dot_dimension_numbers<[1], [0], [0], [1], [0, 0, 1, 1], [], []>} : vector<16x16xbf16>, vector<16x32xbf16>, vector<16x32xf32> -> vector<16x32xf32>
    %c0_3 = arith.constant 0 : index
    %c0_4 = arith.constant 0 : index
    %3 = vector.load %arg4[%c0_3, %c0_4] : memref<1x32xf32, #tpu.memory_space<vmem>>, vector<1x32xf32>
    %4 = vector.broadcast %3 : vector<1x32xf32> to vector<16x32xf32>
    %5 = arith.addf %2, %4 : vector<16x32xf32>
    %6 = vector.shape_cast %5 : vector<16x32xf32> to vector<2x8x32xf32>
    %c0_5 = arith.constant 0 : index
    %c0_6 = arith.constant 0 : index
    %c0_7 = arith.constant 0 : index
    %c0_8 = arith.constant 0 : index
    %7 = vector.load %arg2[%c0_5, %c0_6, %c0_7, %c0_8] : memref<2x6x2x32xf32, #tpu.memory_space<vmem>>, vector<1x1x2x32xf32>
    %8 = vector.shape_cast %7 : vector<1x1x2x32xf32> to vector<2x32xf32>
    %c0_9 = arith.constant 0 : index
    %c1 = arith.constant 1 : index
    %c0_10 = arith.constant 0 : index
    %c0_11 = arith.constant 0 : index
    %9 = vector.load %arg2[%c0_9, %c1, %c0_10, %c0_11] : memref<2x6x2x32xf32, #tpu.memory_space<vmem>>, vector<1x1x2x32xf32>
    %10 = vector.shape_cast %9 : vector<1x1x2x32xf32> to vector<2x32xf32>
    %c0_12 = arith.constant 0 : index
    %c2 = arith.constant 2 : index
    %c0_13 = arith.constant 0 : index
    %c0_14 = arith.constant 0 : index
    %11 = vector.load %arg2[%c0_12, %c2, %c0_13, %c0_14] : memref<2x6x2x32xf32, #tpu.memory_space<vmem>>, vector<1x1x2x32xf32>
    %12 = vector.shape_cast %11 : vector<1x1x2x32xf32> to vector<2x32xf32>
    %c0_15 = arith.constant 0 : index
    %c3 = arith.constant 3 : index
    %c0_16 = arith.constant 0 : index
    %c0_17 = arith.constant 0 : index
    %13 = vector.load %arg2[%c0_15, %c3, %c0_16, %c0_17] : memref<2x6x2x32xf32, #tpu.memory_space<vmem>>, vector<1x1x2x32xf32>
    %14 = vector.shape_cast %13 : vector<1x1x2x32xf32> to vector<2x32xf32>
    %c0_18 = arith.constant 0 : index
    %c4 = arith.constant 4 : index
    %c0_19 = arith.constant 0 : index
    %c0_20 = arith.constant 0 : index
    %15 = vector.load %arg2[%c0_18, %c4, %c0_19, %c0_20] : memref<2x6x2x32xf32, #tpu.memory_space<vmem>>, vector<1x1x2x32xf32>
    %16 = vector.shape_cast %15 : vector<1x1x2x32xf32> to vector<2x32xf32>
    %c0_21 = arith.constant 0 : index
    %c5 = arith.constant 5 : index
    %c0_22 = arith.constant 0 : index
    %c0_23 = arith.constant 0 : index
    %17 = vector.load %arg2[%c0_21, %c5, %c0_22, %c0_23] : memref<2x6x2x32xf32, #tpu.memory_space<vmem>>, vector<1x1x2x32xf32>
    %18 = vector.shape_cast %17 : vector<1x1x2x32xf32> to vector<2x32xf32>
    %19 = vector.shape_cast %8 : vector<2x32xf32> to vector<2x1x32xf32>
    %cst_24 = arith.constant dense<0.000000e+00> : vector<2x8xf32>
    %20 = vector.multi_reduction <add>, %6, %cst_24 [2] : vector<2x8x32xf32> to vector<2x8xf32>
    %21 = vector.shape_cast %20 : vector<2x8xf32> to vector<2x8x1xf32>
    %cst_25 = arith.constant 3.200000e+01 : f32
    %22 = vector.broadcast %cst_25 : f32 to vector<2x8x1xf32>
    %23 = arith.divf %21, %22 : vector<2x8x1xf32>
    %24 = vector.broadcast %23 : vector<2x8x1xf32> to vector<2x8x32xf32>
    %25 = arith.subf %6, %24 : vector<2x8x32xf32>
    %26 = arith.mulf %25, %25 : vector<2x8x32xf32>
    %cst_26 = arith.constant dense<0.000000e+00> : vector<2x8xf32>
    %27 = vector.multi_reduction <add>, %26, %cst_26 [2] : vector<2x8x32xf32> to vector<2x8xf32>
    %28 = vector.shape_cast %27 : vector<2x8xf32> to vector<2x8x1xf32>
    %cst_27 = arith.constant 3.200000e+01 : f32
    %29 = vector.broadcast %cst_27 : f32 to vector<2x8x1xf32>
    %30 = arith.divf %28, %29 : vector<2x8x1xf32>
    %31 = vector.broadcast %23 : vector<2x8x1xf32> to vector<2x8x32xf32>
    %32 = arith.subf %6, %31 : vector<2x8x32xf32>
    %cst_28 = arith.constant 9.99999974E-6 : f32
    %33 = vector.broadcast %cst_28 : f32 to vector<2x8x1xf32>
    %34 = arith.addf %30, %33 : vector<2x8x1xf32>
    %35 = math.sqrt %34 : vector<2x8x1xf32>
    %36 = vector.broadcast %35 : vector<2x8x1xf32> to vector<2x8x32xf32>
    %37 = arith.divf %32, %36 : vector<2x8x32xf32>
    %38 = vector.broadcast %19 : vector<2x1x32xf32> to vector<2x8x32xf32>
    %39 = arith.mulf %38, %37 : vector<2x8x32xf32>
    %40 = vector.shape_cast %10 : vector<2x32xf32> to vector<2x1x32xf32>
    %41 = vector.broadcast %40 : vector<2x1x32xf32> to vector<2x8x32xf32>
    %42 = arith.addf %39, %41 : vector<2x8x32xf32>
    %43 = vector.shape_cast %42 : vector<2x8x32xf32> to vector<16x32xf32>
    %44 = arith.truncf %43 : vector<16x32xf32> to vector<16x32xbf16>
    %c0_29 = arith.constant 0 : index
    %c0_30 = arith.constant 0 : index
    %c0_31 = arith.constant 0 : index
    %45 = vector.load %arg5[%c0_29, %c0_30, %c0_31] : memref<2x32x32xbf16, #tpu.memory_space<vmem>>, vector<1x32x32xbf16>
    %46 = vector.shape_cast %45 : vector<1x32x32xbf16> to vector<32x32xbf16>
    %cst_32 = arith.constant dense<0.000000e+00> : vector<16x32xf32>
    %47 = tpu.matmul %44, %46, %cst_32 {dimension_numbers = #tpu.dot_dimension_numbers<[1], [0], [0], [1], [0, 0, 1, 1], [], []>} : vector<16x32xbf16>, vector<32x32xbf16>, vector<16x32xf32> -> vector<16x32xf32>
    %c0_33 = arith.constant 0 : index
    %c0_34 = arith.constant 0 : index
    %c0_35 = arith.constant 0 : index
    %48 = vector.load %arg6[%c0_33, %c0_34, %c0_35] : memref<2x1x32xf32, #tpu.memory_space<vmem>>, vector<1x1x32xf32>
    %49 = vector.shape_cast %48 : vector<1x1x32xf32> to vector<1x32xf32>
    %50 = vector.broadcast %49 : vector<1x32xf32> to vector<16x32xf32>
    %51 = arith.addf %47, %50 : vector<16x32xf32>
    %c0_36 = arith.constant 0 : index
    %c0_37 = arith.constant 0 : index
    %c0_38 = arith.constant 0 : index
    %52 = vector.load %arg7[%c0_36, %c0_37, %c0_38] : memref<2x32x32xbf16, #tpu.memory_space<vmem>>, vector<1x32x32xbf16>
    %53 = vector.shape_cast %52 : vector<1x32x32xbf16> to vector<32x32xbf16>
    %cst_39 = arith.constant dense<0.000000e+00> : vector<16x32xf32>
    %54 = tpu.matmul %44, %53, %cst_39 {dimension_numbers = #tpu.dot_dimension_numbers<[1], [0], [0], [1], [0, 0, 1, 1], [], []>} : vector<16x32xbf16>, vector<32x32xbf16>, vector<16x32xf32> -> vector<16x32xf32>
    %c0_40 = arith.constant 0 : index
    %c0_41 = arith.constant 0 : index
    %c0_42 = arith.constant 0 : index
    %55 = vector.load %arg8[%c0_40, %c0_41, %c0_42] : memref<2x1x32xf32, #tpu.memory_space<vmem>>, vector<1x1x32xf32>
    %56 = vector.shape_cast %55 : vector<1x1x32xf32> to vector<1x32xf32>
    %57 = vector.broadcast %56 : vector<1x32xf32> to vector<16x32xf32>
    %58 = arith.addf %54, %57 : vector<16x32xf32>
    %c0_43 = arith.constant 0 : index
    %c0_44 = arith.constant 0 : index
    %c0_45 = arith.constant 0 : index
    %59 = vector.load %arg9[%c0_43, %c0_44, %c0_45] : memref<2x32x32xbf16, #tpu.memory_space<vmem>>, vector<1x32x32xbf16>
    %60 = vector.shape_cast %59 : vector<1x32x32xbf16> to vector<32x32xbf16>
    %cst_46 = arith.constant dense<0.000000e+00> : vector<16x32xf32>
    %61 = tpu.matmul %44, %60, %cst_46 {dimension_numbers = #tpu.dot_dimension_numbers<[1], [0], [0], [1], [0, 0, 1, 1], [], []>} : vector<16x32xbf16>, vector<32x32xbf16>, vector<16x32xf32> -> vector<16x32xf32>
    %c0_47 = arith.constant 0 : index
    %c0_48 = arith.constant 0 : index
    %c0_49 = arith.constant 0 : index
    %62 = vector.load %arg10[%c0_47, %c0_48, %c0_49] : memref<2x1x32xf32, #tpu.memory_space<vmem>>, vector<1x1x32xf32>
    %63 = vector.shape_cast %62 : vector<1x1x32xf32> to vector<1x32xf32>
    %64 = vector.broadcast %63 : vector<1x32xf32> to vector<16x32xf32>
    %65 = arith.addf %61, %64 : vector<16x32xf32>
    %cst_50 = arith.constant 0.353553385 : f32
    %66 = vector.broadcast %cst_50 : f32 to vector<16x32xf32>
    %67 = arith.mulf %51, %66 : vector<16x32xf32>
    %68 = arith.truncf %67 : vector<16x32xf32> to vector<16x32xbf16>
    %69 = arith.truncf %58 : vector<16x32xf32> to vector<16x32xbf16>
    %70 = arith.truncf %65 : vector<16x32xf32> to vector<16x32xbf16>
    %71 = vector.extract_strided_slice %68 {offsets = [0, 0], sizes = [16, 8], strides = [1, 1]} : vector<16x32xbf16> to vector<16x8xbf16>
    %72 = vector.shape_cast %71 : vector<16x8xbf16> to vector<2x8x8xbf16>
    %73 = vector.extract_strided_slice %68 {offsets = [0, 8], sizes = [16, 8], strides = [1, 1]} : vector<16x32xbf16> to vector<16x8xbf16>
    %74 = vector.shape_cast %73 : vector<16x8xbf16> to vector<2x8x8xbf16>
    %75 = vector.extract_strided_slice %68 {offsets = [0, 16], sizes = [16, 8], strides = [1, 1]} : vector<16x32xbf16> to vector<16x8xbf16>
    %76 = vector.shape_cast %75 : vector<16x8xbf16> to vector<2x8x8xbf16>
    %77 = vector.extract_strided_slice %68 {offsets = [0, 24], sizes = [16, 8], strides = [1, 1]} : vector<16x32xbf16> to vector<16x8xbf16>
    %78 = vector.shape_cast %77 : vector<16x8xbf16> to vector<2x8x8xbf16>
    %79 = tpu.concatenate %72, %74, %76, %78 in 0 : vector<2x8x8xbf16>, vector<2x8x8xbf16>, vector<2x8x8xbf16>, vector<2x8x8xbf16> -> vector<8x8x8xbf16>
    %80 = vector.extract_strided_slice %69 {offsets = [0, 0], sizes = [16, 8], strides = [1, 1]} : vector<16x32xbf16> to vector<16x8xbf16>
    %81 = vector.shape_cast %80 : vector<16x8xbf16> to vector<2x8x8xbf16>
    %82 = vector.extract_strided_slice %69 {offsets = [0, 8], sizes = [16, 8], strides = [1, 1]} : vector<16x32xbf16> to vector<16x8xbf16>
    %83 = vector.shape_cast %82 : vector<16x8xbf16> to vector<2x8x8xbf16>
    %84 = vector.extract_strided_slice %69 {offsets = [0, 16], sizes = [16, 8], strides = [1, 1]} : vector<16x32xbf16> to vector<16x8xbf16>
    %85 = vector.shape_cast %84 : vector<16x8xbf16> to vector<2x8x8xbf16>
    %86 = vector.extract_strided_slice %69 {offsets = [0, 24], sizes = [16, 8], strides = [1, 1]} : vector<16x32xbf16> to vector<16x8xbf16>
    %87 = vector.shape_cast %86 : vector<16x8xbf16> to vector<2x8x8xbf16>
    %88 = tpu.concatenate %81, %83, %85, %87 in 0 : vector<2x8x8xbf16>, vector<2x8x8xbf16>, vector<2x8x8xbf16>, vector<2x8x8xbf16> -> vector<8x8x8xbf16>
    %89 = vector.extract_strided_slice %70 {offsets = [0, 0], sizes = [16, 8], strides = [1, 1]} : vector<16x32xbf16> to vector<16x8xbf16>
    %90 = vector.shape_cast %89 : vector<16x8xbf16> to vector<2x8x8xbf16>
    %91 = vector.extract_strided_slice %70 {offsets = [0, 8], sizes = [16, 8], strides = [1, 1]} : vector<16x32xbf16> to vector<16x8xbf16>
    %92 = vector.shape_cast %91 : vector<16x8xbf16> to vector<2x8x8xbf16>
    %93 = vector.extract_strided_slice %70 {offsets = [0, 16], sizes = [16, 8], strides = [1, 1]} : vector<16x32xbf16> to vector<16x8xbf16>
    %94 = vector.shape_cast %93 : vector<16x8xbf16> to vector<2x8x8xbf16>
    %95 = vector.extract_strided_slice %70 {offsets = [0, 24], sizes = [16, 8], strides = [1, 1]} : vector<16x32xbf16> to vector<16x8xbf16>
    %96 = vector.shape_cast %95 : vector<16x8xbf16> to vector<2x8x8xbf16>
    %97 = tpu.concatenate %90, %92, %94, %96 in 0 : vector<2x8x8xbf16>, vector<2x8x8xbf16>, vector<2x8x8xbf16>, vector<2x8x8xbf16> -> vector<8x8x8xbf16>
    "tpu.trace_start"() <{level = 10 : i32, message = "bqd,bkd->bqk"}> : () -> ()
    %cst_51 = arith.constant dense<0.000000e+00> : vector<8x8x8xf32>
    %98 = tpu.matmul %79, %88, %cst_51 {dimension_numbers = #tpu.dot_dimension_numbers<[2], [2], [1], [1], [0, 0, 0, 1, 1, 1], [0], [0]>} : vector<8x8x8xbf16>, vector<8x8x8xbf16>, vector<8x8x8xf32> -> vector<8x8x8xf32>
    "tpu.trace_stop"() : () -> ()
    %cst_52 = arith.constant dense<0xFF800000> : vector<8x8xf32>
    %99 = vector.multi_reduction <maximumf>, %98, %cst_52 [2] : vector<8x8x8xf32> to vector<8x8xf32>
    %100 = vector.shape_cast %99 : vector<8x8xf32> to vector<8x8x1xf32>
    %101 = vector.broadcast %100 : vector<8x8x1xf32> to vector<8x8x8xf32>
    %102 = arith.subf %98, %101 : vector<8x8x8xf32>
    %103 = math.exp %102 : vector<8x8x8xf32>
    %cst_53 = arith.constant dense<0.000000e+00> : vector<8x8xf32>
    %104 = vector.multi_reduction <add>, %103, %cst_53 [2] : vector<8x8x8xf32> to vector<8x8xf32>
    %105 = vector.shape_cast %104 : vector<8x8xf32> to vector<8x8x1xf32>
    %106 = tpu.reciprocal %105 {approx = true} : vector<8x8x1xf32> -> vector<8x8x1xf32>
    %107 = vector.broadcast %106 : vector<8x8x1xf32> to vector<8x8x8xf32>
    %108 = arith.mulf %103, %107 : vector<8x8x8xf32>
    %109 = arith.truncf %108 : vector<8x8x8xf32> to vector<8x8x8xbf16>
    "tpu.trace_start"() <{level = 10 : i32, message = "bqk,bkd->bqd"}> : () -> ()
    %cst_54 = arith.constant dense<0.000000e+00> : vector<8x8x8xf32>
    %110 = tpu.matmul %109, %97, %cst_54 {dimension_numbers = #tpu.dot_dimension_numbers<[2], [1], [1], [2], [0, 0, 0, 1, 1, 2], [0], [0]>} : vector<8x8x8xbf16>, vector<8x8x8xbf16>, vector<8x8x8xf32> -> vector<8x8x8xf32>
    "tpu.trace_stop"() : () -> ()
    %111 = arith.truncf %110 : vector<8x8x8xf32> to vector<8x8x8xbf16>
    %112 = vector.extract_strided_slice %111 {offsets = [0, 0, 0], sizes = [2, 8, 8], strides = [1, 1, 1]} : vector<8x8x8xbf16> to vector<2x8x8xbf16>
    %113 = vector.shape_cast %112 : vector<2x8x8xbf16> to vector<16x8xbf16>
    %114 = vector.extract_strided_slice %111 {offsets = [2, 0, 0], sizes = [2, 8, 8], strides = [1, 1, 1]} : vector<8x8x8xbf16> to vector<2x8x8xbf16>
    %115 = vector.shape_cast %114 : vector<2x8x8xbf16> to vector<16x8xbf16>
    %116 = vector.extract_strided_slice %111 {offsets = [4, 0, 0], sizes = [2, 8, 8], strides = [1, 1, 1]} : vector<8x8x8xbf16> to vector<2x8x8xbf16>
    %117 = vector.shape_cast %116 : vector<2x8x8xbf16> to vector<16x8xbf16>
    %118 = vector.extract_strided_slice %111 {offsets = [6, 0, 0], sizes = [2, 8, 8], strides = [1, 1, 1]} : vector<8x8x8xbf16> to vector<2x8x8xbf16>
    %119 = vector.shape_cast %118 : vector<2x8x8xbf16> to vector<16x8xbf16>
    %120 = tpu.concatenate %113, %115, %117, %119 in 1 : vector<16x8xbf16>, vector<16x8xbf16>, vector<16x8xbf16>, vector<16x8xbf16> -> vector<16x32xbf16>
    %c0_55 = arith.constant 0 : index
    %c0_56 = arith.constant 0 : index
    %c0_57 = arith.constant 0 : index
    %121 = vector.load %arg11[%c0_55, %c0_56, %c0_57] : memref<2x32x32xbf16, #tpu.memory_space<vmem>>, vector<1x32x32xbf16>
    %122 = vector.shape_cast %121 : vector<1x32x32xbf16> to vector<32x32xbf16>
    %cst_58 = arith.constant dense<0.000000e+00> : vector<16x32xf32>
    %123 = tpu.matmul %120, %122, %cst_58 {dimension_numbers = #tpu.dot_dimension_numbers<[1], [0], [0], [1], [0, 0, 1, 1], [], []>} : vector<16x32xbf16>, vector<32x32xbf16>, vector<16x32xf32> -> vector<16x32xf32>
    %c0_59 = arith.constant 0 : index
    %c0_60 = arith.constant 0 : index
    %c0_61 = arith.constant 0 : index
    %124 = vector.load %arg12[%c0_59, %c0_60, %c0_61] : memref<2x1x32xf32, #tpu.memory_space<vmem>>, vector<1x1x32xf32>
    %125 = vector.shape_cast %124 : vector<1x1x32xf32> to vector<1x32xf32>
    %126 = vector.broadcast %125 : vector<1x32xf32> to vector<16x32xf32>
    %127 = arith.addf %123, %126 : vector<16x32xf32>
    %128 = vector.shape_cast %127 : vector<16x32xf32> to vector<2x8x32xf32>
    %129 = vector.shape_cast %12 : vector<2x32xf32> to vector<2x1x32xf32>
    %130 = vector.broadcast %129 : vector<2x1x32xf32> to vector<2x8x32xf32>
    %131 = arith.mulf %128, %130 : vector<2x8x32xf32>
    %132 = arith.addf %42, %131 : vector<2x8x32xf32>
    %133 = vector.shape_cast %14 : vector<2x32xf32> to vector<2x1x32xf32>
    %cst_62 = arith.constant dense<0.000000e+00> : vector<2x8xf32>
    %134 = vector.multi_reduction <add>, %132, %cst_62 [2] : vector<2x8x32xf32> to vector<2x8xf32>
    %135 = vector.shape_cast %134 : vector<2x8xf32> to vector<2x8x1xf32>
    %cst_63 = arith.constant 3.200000e+01 : f32
    %136 = vector.broadcast %cst_63 : f32 to vector<2x8x1xf32>
    %137 = arith.divf %135, %136 : vector<2x8x1xf32>
    %138 = vector.broadcast %137 : vector<2x8x1xf32> to vector<2x8x32xf32>
    %139 = arith.subf %132, %138 : vector<2x8x32xf32>
    %140 = arith.mulf %139, %139 : vector<2x8x32xf32>
    %cst_64 = arith.constant dense<0.000000e+00> : vector<2x8xf32>
    %141 = vector.multi_reduction <add>, %140, %cst_64 [2] : vector<2x8x32xf32> to vector<2x8xf32>
    %142 = vector.shape_cast %141 : vector<2x8xf32> to vector<2x8x1xf32>
    %cst_65 = arith.constant 3.200000e+01 : f32
    %143 = vector.broadcast %cst_65 : f32 to vector<2x8x1xf32>
    %144 = arith.divf %142, %143 : vector<2x8x1xf32>
    %145 = vector.broadcast %137 : vector<2x8x1xf32> to vector<2x8x32xf32>
    %146 = arith.subf %132, %145 : vector<2x8x32xf32>
    %cst_66 = arith.constant 9.99999974E-6 : f32
    %147 = vector.broadcast %cst_66 : f32 to vector<2x8x1xf32>
    %148 = arith.addf %144, %147 : vector<2x8x1xf32>
    %149 = math.sqrt %148 : vector<2x8x1xf32>
    %150 = vector.broadcast %149 : vector<2x8x1xf32> to vector<2x8x32xf32>
    %151 = arith.divf %146, %150 : vector<2x8x32xf32>
    %152 = vector.broadcast %133 : vector<2x1x32xf32> to vector<2x8x32xf32>
    %153 = arith.mulf %152, %151 : vector<2x8x32xf32>
    %154 = vector.shape_cast %16 : vector<2x32xf32> to vector<2x1x32xf32>
    %155 = vector.broadcast %154 : vector<2x1x32xf32> to vector<2x8x32xf32>
    %156 = arith.addf %153, %155 : vector<2x8x32xf32>
    %157 = vector.shape_cast %156 : vector<2x8x32xf32> to vector<16x32xf32>
    %158 = arith.truncf %157 : vector<16x32xf32> to vector<16x32xbf16>
    %c0_67 = arith.constant 0 : index
    %c0_68 = arith.constant 0 : index
    %c0_69 = arith.constant 0 : index
    %159 = vector.load %arg13[%c0_67, %c0_68, %c0_69] : memref<2x32x64xbf16, #tpu.memory_space<vmem>>, vector<1x32x64xbf16>
    %160 = vector.shape_cast %159 : vector<1x32x64xbf16> to vector<32x64xbf16>
    %cst_70 = arith.constant dense<0.000000e+00> : vector<16x64xf32>
    %161 = tpu.matmul %158, %160, %cst_70 {dimension_numbers = #tpu.dot_dimension_numbers<[1], [0], [0], [1], [0, 0, 1, 1], [], []>} : vector<16x32xbf16>, vector<32x64xbf16>, vector<16x64xf32> -> vector<16x64xf32>
    %c0_71 = arith.constant 0 : index
    %c0_72 = arith.constant 0 : index
    %c0_73 = arith.constant 0 : index
    %162 = vector.load %arg14[%c0_71, %c0_72, %c0_73] : memref<2x1x64xf32, #tpu.memory_space<vmem>>, vector<1x1x64xf32>
    %163 = vector.shape_cast %162 : vector<1x1x64xf32> to vector<1x64xf32>
    %164 = vector.broadcast %163 : vector<1x64xf32> to vector<16x64xf32>
    %165 = arith.addf %161, %164 : vector<16x64xf32>
    %cst_74 = arith.constant 0.000000e+00 : f32
    %166 = vector.broadcast %cst_74 : f32 to vector<16x64xf32>
    %167 = arith.maximumf %165, %166 : vector<16x64xf32>
    %168 = arith.truncf %167 : vector<16x64xf32> to vector<16x64xbf16>
    %c0_75 = arith.constant 0 : index
    %c0_76 = arith.constant 0 : index
    %c0_77 = arith.constant 0 : index
    %169 = vector.load %arg15[%c0_75, %c0_76, %c0_77] : memref<2x64x32xbf16, #tpu.memory_space<vmem>>, vector<1x64x32xbf16>
    %170 = vector.shape_cast %169 : vector<1x64x32xbf16> to vector<64x32xbf16>
    %cst_78 = arith.constant dense<0.000000e+00> : vector<16x32xf32>
    %171 = tpu.matmul %168, %170, %cst_78 {dimension_numbers = #tpu.dot_dimension_numbers<[1], [0], [0], [1], [0, 0, 1, 1], [], []>} : vector<16x64xbf16>, vector<64x32xbf16>, vector<16x32xf32> -> vector<16x32xf32>
    %c0_79 = arith.constant 0 : index
    %c0_80 = arith.constant 0 : index
    %c0_81 = arith.constant 0 : index
    %172 = vector.load %arg16[%c0_79, %c0_80, %c0_81] : memref<2x1x32xf32, #tpu.memory_space<vmem>>, vector<1x1x32xf32>
    %173 = vector.shape_cast %172 : vector<1x1x32xf32> to vector<1x32xf32>
    %174 = vector.broadcast %173 : vector<1x32xf32> to vector<16x32xf32>
    %175 = arith.addf %171, %174 : vector<16x32xf32>
    %176 = vector.shape_cast %175 : vector<16x32xf32> to vector<2x8x32xf32>
    %177 = vector.shape_cast %18 : vector<2x32xf32> to vector<2x1x32xf32>
    %178 = vector.broadcast %177 : vector<2x1x32xf32> to vector<2x8x32xf32>
    %179 = arith.mulf %176, %178 : vector<2x8x32xf32>
    %180 = arith.addf %156, %179 : vector<2x8x32xf32>
    %c1_82 = arith.constant 1 : index
    %c0_83 = arith.constant 0 : index
    %c0_84 = arith.constant 0 : index
    %c0_85 = arith.constant 0 : index
    %181 = vector.load %arg2[%c1_82, %c0_83, %c0_84, %c0_85] : memref<2x6x2x32xf32, #tpu.memory_space<vmem>>, vector<1x1x2x32xf32>
    %182 = vector.shape_cast %181 : vector<1x1x2x32xf32> to vector<2x32xf32>
    %c1_86 = arith.constant 1 : index
    %c1_87 = arith.constant 1 : index
    %c0_88 = arith.constant 0 : index
    %c0_89 = arith.constant 0 : index
    %183 = vector.load %arg2[%c1_86, %c1_87, %c0_88, %c0_89] : memref<2x6x2x32xf32, #tpu.memory_space<vmem>>, vector<1x1x2x32xf32>
    %184 = vector.shape_cast %183 : vector<1x1x2x32xf32> to vector<2x32xf32>
    %c1_90 = arith.constant 1 : index
    %c2_91 = arith.constant 2 : index
    %c0_92 = arith.constant 0 : index
    %c0_93 = arith.constant 0 : index
    %185 = vector.load %arg2[%c1_90, %c2_91, %c0_92, %c0_93] : memref<2x6x2x32xf32, #tpu.memory_space<vmem>>, vector<1x1x2x32xf32>
    %186 = vector.shape_cast %185 : vector<1x1x2x32xf32> to vector<2x32xf32>
    %c1_94 = arith.constant 1 : index
    %c3_95 = arith.constant 3 : index
    %c0_96 = arith.constant 0 : index
    %c0_97 = arith.constant 0 : index
    %187 = vector.load %arg2[%c1_94, %c3_95, %c0_96, %c0_97] : memref<2x6x2x32xf32, #tpu.memory_space<vmem>>, vector<1x1x2x32xf32>
    %188 = vector.shape_cast %187 : vector<1x1x2x32xf32> to vector<2x32xf32>
    %c1_98 = arith.constant 1 : index
    %c4_99 = arith.constant 4 : index
    %c0_100 = arith.constant 0 : index
    %c0_101 = arith.constant 0 : index
    %189 = vector.load %arg2[%c1_98, %c4_99, %c0_100, %c0_101] : memref<2x6x2x32xf32, #tpu.memory_space<vmem>>, vector<1x1x2x32xf32>
    %190 = vector.shape_cast %189 : vector<1x1x2x32xf32> to vector<2x32xf32>
    %c1_102 = arith.constant 1 : index
    %c5_103 = arith.constant 5 : index
    %c0_104 = arith.constant 0 : index
    %c0_105 = arith.constant 0 : index
    %191 = vector.load %arg2[%c1_102, %c5_103, %c0_104, %c0_105] : memref<2x6x2x32xf32, #tpu.memory_space<vmem>>, vector<1x1x2x32xf32>
    %192 = vector.shape_cast %191 : vector<1x1x2x32xf32> to vector<2x32xf32>
    %193 = vector.shape_cast %182 : vector<2x32xf32> to vector<2x1x32xf32>
    %cst_106 = arith.constant dense<0.000000e+00> : vector<2x8xf32>
    %194 = vector.multi_reduction <add>, %180, %cst_106 [2] : vector<2x8x32xf32> to vector<2x8xf32>
    %195 = vector.shape_cast %194 : vector<2x8xf32> to vector<2x8x1xf32>
    %cst_107 = arith.constant 3.200000e+01 : f32
    %196 = vector.broadcast %cst_107 : f32 to vector<2x8x1xf32>
    %197 = arith.divf %195, %196 : vector<2x8x1xf32>
    %198 = vector.broadcast %197 : vector<2x8x1xf32> to vector<2x8x32xf32>
    %199 = arith.subf %180, %198 : vector<2x8x32xf32>
    %200 = arith.mulf %199, %199 : vector<2x8x32xf32>
    %cst_108 = arith.constant dense<0.000000e+00> : vector<2x8xf32>
    %201 = vector.multi_reduction <add>, %200, %cst_108 [2] : vector<2x8x32xf32> to vector<2x8xf32>
    %202 = vector.shape_cast %201 : vector<2x8xf32> to vector<2x8x1xf32>
    %cst_109 = arith.constant 3.200000e+01 : f32
    %203 = vector.broadcast %cst_109 : f32 to vector<2x8x1xf32>
    %204 = arith.divf %202, %203 : vector<2x8x1xf32>
    %205 = vector.broadcast %197 : vector<2x8x1xf32> to vector<2x8x32xf32>
    %206 = arith.subf %180, %205 : vector<2x8x32xf32>
    %cst_110 = arith.constant 9.99999974E-6 : f32
    %207 = vector.broadcast %cst_110 : f32 to vector<2x8x1xf32>
    %208 = arith.addf %204, %207 : vector<2x8x1xf32>
    %209 = math.sqrt %208 : vector<2x8x1xf32>
    %210 = vector.broadcast %209 : vector<2x8x1xf32> to vector<2x8x32xf32>
    %211 = arith.divf %206, %210 : vector<2x8x32xf32>
    %212 = vector.broadcast %193 : vector<2x1x32xf32> to vector<2x8x32xf32>
    %213 = arith.mulf %212, %211 : vector<2x8x32xf32>
    %214 = vector.shape_cast %184 : vector<2x32xf32> to vector<2x1x32xf32>
    %215 = vector.broadcast %214 : vector<2x1x32xf32> to vector<2x8x32xf32>
    %216 = arith.addf %213, %215 : vector<2x8x32xf32>
    %217 = vector.shape_cast %216 : vector<2x8x32xf32> to vector<16x32xf32>
    %218 = arith.truncf %217 : vector<16x32xf32> to vector<16x32xbf16>
    %c1_111 = arith.constant 1 : index
    %c0_112 = arith.constant 0 : index
    %c0_113 = arith.constant 0 : index
    %219 = vector.load %arg5[%c1_111, %c0_112, %c0_113] : memref<2x32x32xbf16, #tpu.memory_space<vmem>>, vector<1x32x32xbf16>
    %220 = vector.shape_cast %219 : vector<1x32x32xbf16> to vector<32x32xbf16>
    %cst_114 = arith.constant dense<0.000000e+00> : vector<16x32xf32>
    %221 = tpu.matmul %218, %220, %cst_114 {dimension_numbers = #tpu.dot_dimension_numbers<[1], [0], [0], [1], [0, 0, 1, 1], [], []>} : vector<16x32xbf16>, vector<32x32xbf16>, vector<16x32xf32> -> vector<16x32xf32>
    %c1_115 = arith.constant 1 : index
    %c0_116 = arith.constant 0 : index
    %c0_117 = arith.constant 0 : index
    %222 = vector.load %arg6[%c1_115, %c0_116, %c0_117] : memref<2x1x32xf32, #tpu.memory_space<vmem>>, vector<1x1x32xf32>
    %223 = vector.shape_cast %222 : vector<1x1x32xf32> to vector<1x32xf32>
    %224 = vector.broadcast %223 : vector<1x32xf32> to vector<16x32xf32>
    %225 = arith.addf %221, %224 : vector<16x32xf32>
    %c1_118 = arith.constant 1 : index
    %c0_119 = arith.constant 0 : index
    %c0_120 = arith.constant 0 : index
    %226 = vector.load %arg7[%c1_118, %c0_119, %c0_120] : memref<2x32x32xbf16, #tpu.memory_space<vmem>>, vector<1x32x32xbf16>
    %227 = vector.shape_cast %226 : vector<1x32x32xbf16> to vector<32x32xbf16>
    %cst_121 = arith.constant dense<0.000000e+00> : vector<16x32xf32>
    %228 = tpu.matmul %218, %227, %cst_121 {dimension_numbers = #tpu.dot_dimension_numbers<[1], [0], [0], [1], [0, 0, 1, 1], [], []>} : vector<16x32xbf16>, vector<32x32xbf16>, vector<16x32xf32> -> vector<16x32xf32>
    %c1_122 = arith.constant 1 : index
    %c0_123 = arith.constant 0 : index
    %c0_124 = arith.constant 0 : index
    %229 = vector.load %arg8[%c1_122, %c0_123, %c0_124] : memref<2x1x32xf32, #tpu.memory_space<vmem>>, vector<1x1x32xf32>
    %230 = vector.shape_cast %229 : vector<1x1x32xf32> to vector<1x32xf32>
    %231 = vector.broadcast %230 : vector<1x32xf32> to vector<16x32xf32>
    %232 = arith.addf %228, %231 : vector<16x32xf32>
    %c1_125 = arith.constant 1 : index
    %c0_126 = arith.constant 0 : index
    %c0_127 = arith.constant 0 : index
    %233 = vector.load %arg9[%c1_125, %c0_126, %c0_127] : memref<2x32x32xbf16, #tpu.memory_space<vmem>>, vector<1x32x32xbf16>
    %234 = vector.shape_cast %233 : vector<1x32x32xbf16> to vector<32x32xbf16>
    %cst_128 = arith.constant dense<0.000000e+00> : vector<16x32xf32>
    %235 = tpu.matmul %218, %234, %cst_128 {dimension_numbers = #tpu.dot_dimension_numbers<[1], [0], [0], [1], [0, 0, 1, 1], [], []>} : vector<16x32xbf16>, vector<32x32xbf16>, vector<16x32xf32> -> vector<16x32xf32>
    %c1_129 = arith.constant 1 : index
    %c0_130 = arith.constant 0 : index
    %c0_131 = arith.constant 0 : index
    %236 = vector.load %arg10[%c1_129, %c0_130, %c0_131] : memref<2x1x32xf32, #tpu.memory_space<vmem>>, vector<1x1x32xf32>
    %237 = vector.shape_cast %236 : vector<1x1x32xf32> to vector<1x32xf32>
    %238 = vector.broadcast %237 : vector<1x32xf32> to vector<16x32xf32>
    %239 = arith.addf %235, %238 : vector<16x32xf32>
    %cst_132 = arith.constant 0.353553385 : f32
    %240 = vector.broadcast %cst_132 : f32 to vector<16x32xf32>
    %241 = arith.mulf %225, %240 : vector<16x32xf32>
    %242 = arith.truncf %241 : vector<16x32xf32> to vector<16x32xbf16>
    %243 = arith.truncf %232 : vector<16x32xf32> to vector<16x32xbf16>
    %244 = arith.truncf %239 : vector<16x32xf32> to vector<16x32xbf16>
    %245 = vector.extract_strided_slice %242 {offsets = [0, 0], sizes = [16, 8], strides = [1, 1]} : vector<16x32xbf16> to vector<16x8xbf16>
    %246 = vector.shape_cast %245 : vector<16x8xbf16> to vector<2x8x8xbf16>
    %247 = vector.extract_strided_slice %242 {offsets = [0, 8], sizes = [16, 8], strides = [1, 1]} : vector<16x32xbf16> to vector<16x8xbf16>
    %248 = vector.shape_cast %247 : vector<16x8xbf16> to vector<2x8x8xbf16>
    %249 = vector.extract_strided_slice %242 {offsets = [0, 16], sizes = [16, 8], strides = [1, 1]} : vector<16x32xbf16> to vector<16x8xbf16>
    %250 = vector.shape_cast %249 : vector<16x8xbf16> to vector<2x8x8xbf16>
    %251 = vector.extract_strided_slice %242 {offsets = [0, 24], sizes = [16, 8], strides = [1, 1]} : vector<16x32xbf16> to vector<16x8xbf16>
    %252 = vector.shape_cast %251 : vector<16x8xbf16> to vector<2x8x8xbf16>
    %253 = tpu.concatenate %246, %248, %250, %252 in 0 : vector<2x8x8xbf16>, vector<2x8x8xbf16>, vector<2x8x8xbf16>, vector<2x8x8xbf16> -> vector<8x8x8xbf16>
    %254 = vector.extract_strided_slice %243 {offsets = [0, 0], sizes = [16, 8], strides = [1, 1]} : vector<16x32xbf16> to vector<16x8xbf16>
    %255 = vector.shape_cast %254 : vector<16x8xbf16> to vector<2x8x8xbf16>
    %256 = vector.extract_strided_slice %243 {offsets = [0, 8], sizes = [16, 8], strides = [1, 1]} : vector<16x32xbf16> to vector<16x8xbf16>
    %257 = vector.shape_cast %256 : vector<16x8xbf16> to vector<2x8x8xbf16>
    %258 = vector.extract_strided_slice %243 {offsets = [0, 16], sizes = [16, 8], strides = [1, 1]} : vector<16x32xbf16> to vector<16x8xbf16>
    %259 = vector.shape_cast %258 : vector<16x8xbf16> to vector<2x8x8xbf16>
    %260 = vector.extract_strided_slice %243 {offsets = [0, 24], sizes = [16, 8], strides = [1, 1]} : vector<16x32xbf16> to vector<16x8xbf16>
    %261 = vector.shape_cast %260 : vector<16x8xbf16> to vector<2x8x8xbf16>
    %262 = tpu.concatenate %255, %257, %259, %261 in 0 : vector<2x8x8xbf16>, vector<2x8x8xbf16>, vector<2x8x8xbf16>, vector<2x8x8xbf16> -> vector<8x8x8xbf16>
    %263 = vector.extract_strided_slice %244 {offsets = [0, 0], sizes = [16, 8], strides = [1, 1]} : vector<16x32xbf16> to vector<16x8xbf16>
    %264 = vector.shape_cast %263 : vector<16x8xbf16> to vector<2x8x8xbf16>
    %265 = vector.extract_strided_slice %244 {offsets = [0, 8], sizes = [16, 8], strides = [1, 1]} : vector<16x32xbf16> to vector<16x8xbf16>
    %266 = vector.shape_cast %265 : vector<16x8xbf16> to vector<2x8x8xbf16>
    %267 = vector.extract_strided_slice %244 {offsets = [0, 16], sizes = [16, 8], strides = [1, 1]} : vector<16x32xbf16> to vector<16x8xbf16>
    %268 = vector.shape_cast %267 : vector<16x8xbf16> to vector<2x8x8xbf16>
    %269 = vector.extract_strided_slice %244 {offsets = [0, 24], sizes = [16, 8], strides = [1, 1]} : vector<16x32xbf16> to vector<16x8xbf16>
    %270 = vector.shape_cast %269 : vector<16x8xbf16> to vector<2x8x8xbf16>
    %271 = tpu.concatenate %264, %266, %268, %270 in 0 : vector<2x8x8xbf16>, vector<2x8x8xbf16>, vector<2x8x8xbf16>, vector<2x8x8xbf16> -> vector<8x8x8xbf16>
    "tpu.trace_start"() <{level = 10 : i32, message = "bqd,bkd->bqk"}> : () -> ()
    %cst_133 = arith.constant dense<0.000000e+00> : vector<8x8x8xf32>
    %272 = tpu.matmul %253, %262, %cst_133 {dimension_numbers = #tpu.dot_dimension_numbers<[2], [2], [1], [1], [0, 0, 0, 1, 1, 1], [0], [0]>} : vector<8x8x8xbf16>, vector<8x8x8xbf16>, vector<8x8x8xf32> -> vector<8x8x8xf32>
    "tpu.trace_stop"() : () -> ()
    %cst_134 = arith.constant dense<0xFF800000> : vector<8x8xf32>
    %273 = vector.multi_reduction <maximumf>, %272, %cst_134 [2] : vector<8x8x8xf32> to vector<8x8xf32>
    %274 = vector.shape_cast %273 : vector<8x8xf32> to vector<8x8x1xf32>
    %275 = vector.broadcast %274 : vector<8x8x1xf32> to vector<8x8x8xf32>
    %276 = arith.subf %272, %275 : vector<8x8x8xf32>
    %277 = math.exp %276 : vector<8x8x8xf32>
    %cst_135 = arith.constant dense<0.000000e+00> : vector<8x8xf32>
    %278 = vector.multi_reduction <add>, %277, %cst_135 [2] : vector<8x8x8xf32> to vector<8x8xf32>
    %279 = vector.shape_cast %278 : vector<8x8xf32> to vector<8x8x1xf32>
    %280 = tpu.reciprocal %279 {approx = true} : vector<8x8x1xf32> -> vector<8x8x1xf32>
    %281 = vector.broadcast %280 : vector<8x8x1xf32> to vector<8x8x8xf32>
    %282 = arith.mulf %277, %281 : vector<8x8x8xf32>
    %283 = arith.truncf %282 : vector<8x8x8xf32> to vector<8x8x8xbf16>
    "tpu.trace_start"() <{level = 10 : i32, message = "bqk,bkd->bqd"}> : () -> ()
    %cst_136 = arith.constant dense<0.000000e+00> : vector<8x8x8xf32>
    %284 = tpu.matmul %283, %271, %cst_136 {dimension_numbers = #tpu.dot_dimension_numbers<[2], [1], [1], [2], [0, 0, 0, 1, 1, 2], [0], [0]>} : vector<8x8x8xbf16>, vector<8x8x8xbf16>, vector<8x8x8xf32> -> vector<8x8x8xf32>
    "tpu.trace_stop"() : () -> ()
    %285 = arith.truncf %284 : vector<8x8x8xf32> to vector<8x8x8xbf16>
    %286 = vector.extract_strided_slice %285 {offsets = [0, 0, 0], sizes = [2, 8, 8], strides = [1, 1, 1]} : vector<8x8x8xbf16> to vector<2x8x8xbf16>
    %287 = vector.shape_cast %286 : vector<2x8x8xbf16> to vector<16x8xbf16>
    %288 = vector.extract_strided_slice %285 {offsets = [2, 0, 0], sizes = [2, 8, 8], strides = [1, 1, 1]} : vector<8x8x8xbf16> to vector<2x8x8xbf16>
    %289 = vector.shape_cast %288 : vector<2x8x8xbf16> to vector<16x8xbf16>
    %290 = vector.extract_strided_slice %285 {offsets = [4, 0, 0], sizes = [2, 8, 8], strides = [1, 1, 1]} : vector<8x8x8xbf16> to vector<2x8x8xbf16>
    %291 = vector.shape_cast %290 : vector<2x8x8xbf16> to vector<16x8xbf16>
    %292 = vector.extract_strided_slice %285 {offsets = [6, 0, 0], sizes = [2, 8, 8], strides = [1, 1, 1]} : vector<8x8x8xbf16> to vector<2x8x8xbf16>
    %293 = vector.shape_cast %292 : vector<2x8x8xbf16> to vector<16x8xbf16>
    %294 = tpu.concatenate %287, %289, %291, %293 in 1 : vector<16x8xbf16>, vector<16x8xbf16>, vector<16x8xbf16>, vector<16x8xbf16> -> vector<16x32xbf16>
    %c1_137 = arith.constant 1 : index
    %c0_138 = arith.constant 0 : index
    %c0_139 = arith.constant 0 : index
    %295 = vector.load %arg11[%c1_137, %c0_138, %c0_139] : memref<2x32x32xbf16, #tpu.memory_space<vmem>>, vector<1x32x32xbf16>
    %296 = vector.shape_cast %295 : vector<1x32x32xbf16> to vector<32x32xbf16>
    %cst_140 = arith.constant dense<0.000000e+00> : vector<16x32xf32>
    %297 = tpu.matmul %294, %296, %cst_140 {dimension_numbers = #tpu.dot_dimension_numbers<[1], [0], [0], [1], [0, 0, 1, 1], [], []>} : vector<16x32xbf16>, vector<32x32xbf16>, vector<16x32xf32> -> vector<16x32xf32>
    %c1_141 = arith.constant 1 : index
    %c0_142 = arith.constant 0 : index
    %c0_143 = arith.constant 0 : index
    %298 = vector.load %arg12[%c1_141, %c0_142, %c0_143] : memref<2x1x32xf32, #tpu.memory_space<vmem>>, vector<1x1x32xf32>
    %299 = vector.shape_cast %298 : vector<1x1x32xf32> to vector<1x32xf32>
    %300 = vector.broadcast %299 : vector<1x32xf32> to vector<16x32xf32>
    %301 = arith.addf %297, %300 : vector<16x32xf32>
    %302 = vector.shape_cast %301 : vector<16x32xf32> to vector<2x8x32xf32>
    %303 = vector.shape_cast %186 : vector<2x32xf32> to vector<2x1x32xf32>
    %304 = vector.broadcast %303 : vector<2x1x32xf32> to vector<2x8x32xf32>
    %305 = arith.mulf %302, %304 : vector<2x8x32xf32>
    %306 = arith.addf %216, %305 : vector<2x8x32xf32>
    %307 = vector.shape_cast %188 : vector<2x32xf32> to vector<2x1x32xf32>
    %cst_144 = arith.constant dense<0.000000e+00> : vector<2x8xf32>
    %308 = vector.multi_reduction <add>, %306, %cst_144 [2] : vector<2x8x32xf32> to vector<2x8xf32>
    %309 = vector.shape_cast %308 : vector<2x8xf32> to vector<2x8x1xf32>
    %cst_145 = arith.constant 3.200000e+01 : f32
    %310 = vector.broadcast %cst_145 : f32 to vector<2x8x1xf32>
    %311 = arith.divf %309, %310 : vector<2x8x1xf32>
    %312 = vector.broadcast %311 : vector<2x8x1xf32> to vector<2x8x32xf32>
    %313 = arith.subf %306, %312 : vector<2x8x32xf32>
    %314 = arith.mulf %313, %313 : vector<2x8x32xf32>
    %cst_146 = arith.constant dense<0.000000e+00> : vector<2x8xf32>
    %315 = vector.multi_reduction <add>, %314, %cst_146 [2] : vector<2x8x32xf32> to vector<2x8xf32>
    %316 = vector.shape_cast %315 : vector<2x8xf32> to vector<2x8x1xf32>
    %cst_147 = arith.constant 3.200000e+01 : f32
    %317 = vector.broadcast %cst_147 : f32 to vector<2x8x1xf32>
    %318 = arith.divf %316, %317 : vector<2x8x1xf32>
    %319 = vector.broadcast %311 : vector<2x8x1xf32> to vector<2x8x32xf32>
    %320 = arith.subf %306, %319 : vector<2x8x32xf32>
    %cst_148 = arith.constant 9.99999974E-6 : f32
    %321 = vector.broadcast %cst_148 : f32 to vector<2x8x1xf32>
    %322 = arith.addf %318, %321 : vector<2x8x1xf32>
    %323 = math.sqrt %322 : vector<2x8x1xf32>
    %324 = vector.broadcast %323 : vector<2x8x1xf32> to vector<2x8x32xf32>
    %325 = arith.divf %320, %324 : vector<2x8x32xf32>
    %326 = vector.broadcast %307 : vector<2x1x32xf32> to vector<2x8x32xf32>
    %327 = arith.mulf %326, %325 : vector<2x8x32xf32>
    %328 = vector.shape_cast %190 : vector<2x32xf32> to vector<2x1x32xf32>
    %329 = vector.broadcast %328 : vector<2x1x32xf32> to vector<2x8x32xf32>
    %330 = arith.addf %327, %329 : vector<2x8x32xf32>
    %331 = vector.shape_cast %330 : vector<2x8x32xf32> to vector<16x32xf32>
    %332 = arith.truncf %331 : vector<16x32xf32> to vector<16x32xbf16>
    %c1_149 = arith.constant 1 : index
    %c0_150 = arith.constant 0 : index
    %c0_151 = arith.constant 0 : index
    %333 = vector.load %arg13[%c1_149, %c0_150, %c0_151] : memref<2x32x64xbf16, #tpu.memory_space<vmem>>, vector<1x32x64xbf16>
    %334 = vector.shape_cast %333 : vector<1x32x64xbf16> to vector<32x64xbf16>
    %cst_152 = arith.constant dense<0.000000e+00> : vector<16x64xf32>
    %335 = tpu.matmul %332, %334, %cst_152 {dimension_numbers = #tpu.dot_dimension_numbers<[1], [0], [0], [1], [0, 0, 1, 1], [], []>} : vector<16x32xbf16>, vector<32x64xbf16>, vector<16x64xf32> -> vector<16x64xf32>
    %c1_153 = arith.constant 1 : index
    %c0_154 = arith.constant 0 : index
    %c0_155 = arith.constant 0 : index
    %336 = vector.load %arg14[%c1_153, %c0_154, %c0_155] : memref<2x1x64xf32, #tpu.memory_space<vmem>>, vector<1x1x64xf32>
    %337 = vector.shape_cast %336 : vector<1x1x64xf32> to vector<1x64xf32>
    %338 = vector.broadcast %337 : vector<1x64xf32> to vector<16x64xf32>
    %339 = arith.addf %335, %338 : vector<16x64xf32>
    %cst_156 = arith.constant 0.000000e+00 : f32
    %340 = vector.broadcast %cst_156 : f32 to vector<16x64xf32>
    %341 = arith.maximumf %339, %340 : vector<16x64xf32>
    %342 = arith.truncf %341 : vector<16x64xf32> to vector<16x64xbf16>
    %c1_157 = arith.constant 1 : index
    %c0_158 = arith.constant 0 : index
    %c0_159 = arith.constant 0 : index
    %343 = vector.load %arg15[%c1_157, %c0_158, %c0_159] : memref<2x64x32xbf16, #tpu.memory_space<vmem>>, vector<1x64x32xbf16>
    %344 = vector.shape_cast %343 : vector<1x64x32xbf16> to vector<64x32xbf16>
    %cst_160 = arith.constant dense<0.000000e+00> : vector<16x32xf32>
    %345 = tpu.matmul %342, %344, %cst_160 {dimension_numbers = #tpu.dot_dimension_numbers<[1], [0], [0], [1], [0, 0, 1, 1], [], []>} : vector<16x64xbf16>, vector<64x32xbf16>, vector<16x32xf32> -> vector<16x32xf32>
    %c1_161 = arith.constant 1 : index
    %c0_162 = arith.constant 0 : index
    %c0_163 = arith.constant 0 : index
    %346 = vector.load %arg16[%c1_161, %c0_162, %c0_163] : memref<2x1x32xf32, #tpu.memory_space<vmem>>, vector<1x1x32xf32>
    %347 = vector.shape_cast %346 : vector<1x1x32xf32> to vector<1x32xf32>
    %348 = vector.broadcast %347 : vector<1x32xf32> to vector<16x32xf32>
    %349 = arith.addf %345, %348 : vector<16x32xf32>
    %350 = vector.shape_cast %349 : vector<16x32xf32> to vector<2x8x32xf32>
    %351 = vector.shape_cast %192 : vector<2x32xf32> to vector<2x1x32xf32>
    %352 = vector.broadcast %351 : vector<2x1x32xf32> to vector<2x8x32xf32>
    %353 = arith.mulf %350, %352 : vector<2x8x32xf32>
    %354 = arith.addf %330, %353 : vector<2x8x32xf32>
    %355 = vector.shape_cast %354 : vector<2x8x32xf32> to vector<2x256xf32>
    %c0_164 = arith.constant 0 : index
    %c0_165 = arith.constant 0 : index
    %356 = vector.load %arg17[%c0_164, %c0_165] : memref<2x256xf32, #tpu.memory_space<vmem>>, vector<2x256xf32>
    tpu.vector_store %arg17[%c0_164, %c0_165], %355 {strides = array<i32>} : memref<2x256xf32, #tpu.memory_space<vmem>>, vector<2x256xf32>,
    return
  }
  func.func @transform_0(%arg0: i32) -> (i32, i32) {
    %c0_i32 = arith.constant 0 : i32
    %c0_i32_0 = arith.constant 0 : i32
    return %arg0, %c0_i32 : i32, i32
  }
  func.func @transform_1(%arg0: i32) -> (i32, i32, i32, i32) {
    %c0_i32 = arith.constant 0 : i32
    %c0_i32_0 = arith.constant 0 : i32
    %c0_i32_1 = arith.constant 0 : i32
    %c0_i32_2 = arith.constant 0 : i32
    return %c0_i32, %c0_i32_0, %arg0, %c0_i32_1 : i32, i32, i32, i32
  }
  func.func @transform_2(%arg0: i32) -> (i32, i32) {
    %c0_i32 = arith.constant 0 : i32
    %c0_i32_0 = arith.constant 0 : i32
    %c0_i32_1 = arith.constant 0 : i32
    return %c0_i32, %c0_i32_0 : i32, i32
  }
  func.func @transform_3(%arg0: i32) -> (i32, i32) {
    %c0_i32 = arith.constant 0 : i32
    %c0_i32_0 = arith.constant 0 : i32
    %c0_i32_1 = arith.constant 0 : i32
    return %c0_i32, %c0_i32_0 : i32, i32
  }
  func.func @transform_4(%arg0: i32) -> (i32, i32, i32) {
    %c0_i32 = arith.constant 0 : i32
    %c0_i32_0 = arith.constant 0 : i32
    %c0_i32_1 = arith.constant 0 : i32
    %c0_i32_2 = arith.constant 0 : i32
    return %c0_i32, %c0_i32_0, %c0_i32_1 : i32, i32, i32
  }
  func.func @transform_5(%arg0: i32) -> (i32, i32, i32) {
    %c0_i32 = arith.constant 0 : i32
    %c0_i32_0 = arith.constant 0 : i32
    %c0_i32_1 = arith.constant 0 : i32
    %c0_i32_2 = arith.constant 0 : i32
    return %c0_i32, %c0_i32_0, %c0_i32_1 : i32, i32, i32
  }
  func.func @transform_6(%arg0: i32) -> (i32, i32, i32) {
    %c0_i32 = arith.constant 0 : i32
    %c0_i32_0 = arith.constant 0 : i32
    %c0_i32_1 = arith.constant 0 : i32
    %c0_i32_2 = arith.constant 0 : i32
    return %c0_i32, %c0_i32_0, %c0_i32_1 : i32, i32, i32
  }
  func.func @transform_7(%arg0: i32) -> (i32, i32, i32) {
    %c0_i32 = arith.constant 0 : i32
    %c0_i32_0 = arith.constant 0 : i32
    %c0_i32_1 = arith.constant 0 : i32
    %c0_i32_2 = arith.constant 0 : i32
    return %c0_i32, %c0_i32_0, %c0_i32_1 : i32, i32, i32
  }
  func.func @transform_8(%arg0: i32) -> (i32, i32, i32) {
    %c0_i32 = arith.constant 0 : i32
    %c0_i32_0 = arith.constant 0 : i32
    %c0_i32_1 = arith.constant 0 : i32
    %c0_i32_2 = arith.constant 0 : i32
    return %c0_i32, %c0_i32_0, %c0_i32_1 : i32, i32, i32
  }
  func.func @transform_9(%arg0: i32) -> (i32, i32, i32) {
    %c0_i32 = arith.constant 0 : i32
    %c0_i32_0 = arith.constant 0 : i32
    %c0_i32_1 = arith.constant 0 : i32
    %c0_i32_2 = arith.constant 0 : i32
    return %c0_i32, %c0_i32_0, %c0_i32_1 : i32, i32, i32
  }
  func.func @transform_10(%arg0: i32) -> (i32, i32, i32) {
    %c0_i32 = arith.constant 0 : i32
    %c0_i32_0 = arith.constant 0 : i32
    %c0_i32_1 = arith.constant 0 : i32
    %c0_i32_2 = arith.constant 0 : i32
    return %c0_i32, %c0_i32_0, %c0_i32_1 : i32, i32, i32
  }
  func.func @transform_11(%arg0: i32) -> (i32, i32, i32) {
    %c0_i32 = arith.constant 0 : i32
    %c0_i32_0 = arith.constant 0 : i32
    %c0_i32_1 = arith.constant 0 : i32
    %c0_i32_2 = arith.constant 0 : i32
    return %c0_i32, %c0_i32_0, %c0_i32_1 : i32, i32, i32
  }
  func.func @transform_12(%arg0: i32) -> (i32, i32, i32) {
    %c0_i32 = arith.constant 0 : i32
    %c0_i32_0 = arith.constant 0 : i32
    %c0_i32_1 = arith.constant 0 : i32
    %c0_i32_2 = arith.constant 0 : i32
    return %c0_i32, %c0_i32_0, %c0_i32_1 : i32, i32, i32
  }
  func.func @transform_13(%arg0: i32) -> (i32, i32, i32) {
    %c0_i32 = arith.constant 0 : i32
    %c0_i32_0 = arith.constant 0 : i32
    %c0_i32_1 = arith.constant 0 : i32
    %c0_i32_2 = arith.constant 0 : i32
    return %c0_i32, %c0_i32_0, %c0_i32_1 : i32, i32, i32
  }
  func.func @transform_14(%arg0: i32) -> (i32, i32, i32) {
    %c0_i32 = arith.constant 0 : i32
    %c0_i32_0 = arith.constant 0 : i32
    %c0_i32_1 = arith.constant 0 : i32
    %c0_i32_2 = arith.constant 0 : i32
    return %c0_i32, %c0_i32_0, %c0_i32_1 : i32, i32, i32
  }
  func.func @transform_15(%arg0: i32) -> (i32, i32, i32) {
    %c0_i32 = arith.constant 0 : i32
    %c0_i32_0 = arith.constant 0 : i32
    %c0_i32_1 = arith.constant 0 : i32
    %c0_i32_2 = arith.constant 0 : i32
    return %c0_i32, %c0_i32_0, %c0_i32_1 : i32, i32, i32
  }
  func.func @transform_16(%arg0: i32) -> (i32, i32) {
    %c0_i32 = arith.constant 0 : i32
    %c0_i32_0 = arith.constant 0 : i32
    return %arg0, %c0_i32 : i32, i32
  }
}

</mosaic_0001>

<llo_original>
// kernel: tpu_custom_call.1
$region0: #{tpu_custom_call.1}
  #allocation0 [shape = 'u32[]', space=smem, size = 0x4, offset = 0x4, fixed_abs, tag = 'smem constant byte address 0x4 - core index']
  #allocation1 [shape = 'u32[144,128]{1,0:T(1,128)}', space=vmem, size = 0x12000, scoped, tag = 'internal scratch']
  %s0 = inlined_call_operand.hbm [shape: bf16[16,16], index: 0, kind: input, shape index: {}]
  %s1 = inlined_call_operand.hbm [shape: f32[2,6,2,32], index: 1, kind: input, shape index: {}]
  %s2 = inlined_call_operand.hbm [shape: bf16[16,32], index: 2, kind: input, shape index: {}]
  %s3 = inlined_call_operand.vmem [shape: f32[1,32], index: 3, kind: input, shape index: {}]
  %s4 = inlined_call_operand.vmem [shape: bf16[2,32,32], index: 4, kind: input, shape index: {}]
  %s5 = inlined_call_operand.vmem [shape: f32[2,1,32], index: 5, kind: input, shape index: {}]
  %s6 = inlined_call_operand.vmem [shape: bf16[2,32,32], index: 6, kind: input, shape index: {}]
  %s7 = inlined_call_operand.vmem [shape: f32[2,1,32], index: 7, kind: input, shape index: {}]
  %s8 = inlined_call_operand.vmem [shape: bf16[2,32,32], index: 8, kind: input, shape index: {}]
  %s9 = inlined_call_operand.vmem [shape: f32[2,1,32], index: 9, kind: input, shape index: {}]
  %s10 = inlined_call_operand.hbm [shape: bf16[2,32,32], index: 10, kind: input, shape index: {}]
  %s11 = inlined_call_operand.vmem [shape: f32[2,1,32], index: 11, kind: input, shape index: {}]
  %s12 = inlined_call_operand.hbm [shape: bf16[2,32,64], index: 12, kind: input, shape index: {}]
  %s13 = inlined_call_operand.vmem [shape: f32[2,1,64], index: 13, kind: input, shape index: {}]
  %s14 = inlined_call_operand.vmem [shape: bf16[2,64,32], index: 14, kind: input, shape index: {}]
  %s15 = inlined_call_operand.vmem [shape: f32[2,1,32], index: 15, kind: input, shape index: {}]
  %s16 = inlined_call_operand.hbm [shape: f32[2,256], index: 16, kind: output, shape index: {}]
  %s17 = sld [smem:[#allocation0]]
  $region94: #{tpu_custom_call.1} parent=0
    _
  %s19 = ssub.s32 1, %s17
  %s20 = scalar_select 0, %s19, %s17
  $region1: #{tpu_custom_call.1} parent=0
    #allocation2 [shape = 'u8[4096]{0}', space=vmem, size = 0x1000, scoped, tag = 'input window, operand 0, single buffered']
    #allocation3 [shape = 's32[1]{0}', space=sflag, size = 0x4, scoped, tag = 'scoped memory for tpu_custom_call.1']
    #allocation4 [shape = 's32[1]{0}', space=sflag, size = 0x4, scoped, tag = 'scoped memory for tpu_custom_call.1']
    #allocation5 [shape = 'u8[12288]{0}', space=vmem, size = 0x3000, scoped, tag = 'input window, operand 1, single buffered']
    #allocation6 [shape = 's32[1]{0}', space=sflag, size = 0x4, scoped, tag = 'scoped memory for tpu_custom_call.1']
    #allocation7 [shape = 'u8[4096]{0}', space=vmem, size = 0x1000, scoped, tag = 'input window, operand 2, single buffered']
    #allocation8 [shape = 'u8[16384]{0}', space=vmem, size = 0x4000, scoped, tag = 'input window, operand 10, single buffered']
    #allocation9 [shape = 's32[1]{0}', space=sflag, size = 0x4, scoped, tag = 'scoped memory for tpu_custom_call.1']
    #allocation10 [shape = 'u8[16384]{0}', space=vmem, size = 0x4000, scoped, tag = 'input window, operand 12, single buffered']
    #allocation11 [shape = 'u8[2048]{0}', space=vmem, size = 0x800, scoped, tag = 'output window, operand 0, single buffered']
    %21 = vsyncpa [#allocation3], 0
    %22 = vsyncpa [#allocation6], 0
    %23 = vsyncpa [#allocation9], 0
    %24 = vsyncpa [#allocation4], 0
    // Predicated region
    $region2: #{tpu_custom_call.1} parent=1 // pred_check
      _
    $region3: #{tpu_custom_call.1} parent=1 // pred_check_branch
      %26 = sbr.rel (0) target = $region5
    $region4: #{tpu_custom_call.1} parent=1 // pred_region
      %s28 = ssub.s32 128, 128
      %29 = vsyncadd [#allocation3], %s28
      %s30 = sshll.u32 [#allocation2], 4
      %s31 = int_to_ptr.vmem [resolvable:$true] %s30
      %36 = dma.hbm_to_vmem [thread:$0]  %s0, 128, %s31, [#allocation3], 64, 64, 4
    $region5: #{tpu_custom_call.1} parent=1 // pred_fallthru
      _
    // Predicated region
    $region6: #{tpu_custom_call.1} parent=1 // pred_check
      _
    $region7: #{tpu_custom_call.1} parent=1 // pred_check_branch
      %38 = sbr.rel (0) target = $region9
    $region8: #{tpu_custom_call.1} parent=1 // pred_region
      %s40 = ssub.s32 384, 384
      %41 = vsyncadd [#allocation6], %s40
      %s42 = sshll.u32 [#allocation5], 4
      %s43 = int_to_ptr.vmem [resolvable:$true] %s42
      %48 = dma.hbm_to_vmem [thread:$0]  %s1, 384, %s43, [#allocation6], 32, 32, 2
    $region9: #{tpu_custom_call.1} parent=1 // pred_fallthru
      _
    // Predicated region
    $region10: #{tpu_custom_call.1} parent=1 // pred_check
      _
    $region11: #{tpu_custom_call.1} parent=1 // pred_check_branch
      %50 = sbr.rel (0) target = $region13
    $region12: #{tpu_custom_call.1} parent=1 // pred_region
      %s52 = ssub.s32 128, 128
      %53 = vsyncadd [#allocation6], %s52
      %s54 = sshll.u32 [#allocation7], 4
      %s55 = int_to_ptr.vmem [resolvable:$true] %s54
      %60 = dma.hbm_to_vmem [thread:$0]  %s2, 128, %s55, [#allocation6], 64, 64, 4
    $region13: #{tpu_custom_call.1} parent=1 // pred_fallthru
      _
    // Predicated region
    $region14: #{tpu_custom_call.1} parent=1 // pred_check
      _
    $region15: #{tpu_custom_call.1} parent=1 // pred_check_branch
      %62 = sbr.rel (0) target = $region17
    $region16: #{tpu_custom_call.1} parent=1 // pred_region
      _
    $region17: #{tpu_custom_call.1} parent=1 // pred_fallthru
      _
    // Predicated region
    $region18: #{tpu_custom_call.1} parent=1 // pred_check
      _
    $region19: #{tpu_custom_call.1} parent=1 // pred_check_branch
      %64 = sbr.rel (0) target = $region21
    $region20: #{tpu_custom_call.1} parent=1 // pred_region
      _
    $region21: #{tpu_custom_call.1} parent=1 // pred_fallthru
      _
    // Predicated region
    $region22: #{tpu_custom_call.1} parent=1 // pred_check
      _
    $region23: #{tpu_custom_call.1} parent=1 // pred_check_branch
      %66 = sbr.rel (0) target = $region25
    $region24: #{tpu_custom_call.1} parent=1 // pred_region
      _
    $region25: #{tpu_custom_call.1} parent=1 // pred_fallthru
      _
    // Predicated region
    $region26: #{tpu_custom_call.1} parent=1 // pred_check
      _
    $region27: #{tpu_custom_call.1} parent=1 // pred_check_branch
      %68 = sbr.rel (0) target = $region29
    $region28: #{tpu_custom_call.1} parent=1 // pred_region
      _
    $region29: #{tpu_custom_call.1} parent=1 // pred_fallthru
      _
    // Predicated region
    $region30: #{tpu_custom_call.1} parent=1 // pred_check
      _
    $region31: #{tpu_custom_call.1} parent=1 // pred_check_branch
      %70 = sbr.rel (0) target = $region33
    $region32: #{tpu_custom_call.1} parent=1 // pred_region
      _
    $region33: #{tpu_custom_call.1} parent=1 // pred_fallthru
      _
    // Predicated region
    $region34: #{tpu_custom_call.1} parent=1 // pred_check
      _
    $region35: #{tpu_custom_call.1} parent=1 // pred_check_branch
      %72 = sbr.rel (0) target = $region37
    $region36: #{tpu_custom_call.1} parent=1 // pred_region
      _
    $region37: #{tpu_custom_call.1} parent=1 // pred_fallthru
      _
    // Predicated region
    $region38: #{tpu_custom_call.1} parent=1 // pred_check
      _
    $region39: #{tpu_custom_call.1} parent=1 // pred_check_branch
      %74 = sbr.rel (0) target = $region41
    $region40: #{tpu_custom_call.1} parent=1 // pred_region
      _
    $region41: #{tpu_custom_call.1} parent=1 // pred_fallthru
      _
    // Predicated region
    $region42: #{tpu_custom_call.1} parent=1 // pred_check
      _
    $region43: #{tpu_custom_call.1} parent=1 // pred_check_branch
      %76 = sbr.rel (0) target = $region45
    $region44: #{tpu_custom_call.1} parent=1 // pred_region
      %s78 = ssub.s32 512, 512
      %79 = vsyncadd [#allocation9], %s78
      %s80 = sshll.u32 [#allocation8], 4
      %s81 = int_to_ptr.vmem [resolvable:$true] %s80
      %86 = dma.hbm_to_vmem [thread:$0]  %s10, 512, %s81, [#allocation9], 64, 64, 4
    $region45: #{tpu_custom_call.1} parent=1 // pred_fallthru
      _
    // Predicated region
    $region46: #{tpu_custom_call.1} parent=1 // pred_check
      _
    $region47: #{tpu_custom_call.1} parent=1 // pred_check_branch
      %88 = sbr.rel (0) target = $region49
    $region48: #{tpu_custom_call.1} parent=1 // pred_region
      _
    $region49: #{tpu_custom_call.1} parent=1 // pred_fallthru
      _
    // Predicated region
    $region50: #{tpu_custom_call.1} parent=1 // pred_check
      _
    $region51: #{tpu_custom_call.1} parent=1 // pred_check_branch
      %90 = sbr.rel (0) target = $region53
    $region52: #{tpu_custom_call.1} parent=1 // pred_region
      %s92 = ssub.s32 512, 512
      %93 = vsyncadd [#allocation9], %s92
      %s94 = sshll.u32 [#allocation10], 4
      %s95 = int_to_ptr.vmem [resolvable:$true] %s94
      %100 = dma.hbm_to_vmem [thread:$0]  %s12, 512, %s95, [#allocation9], 64, 64, 4
    $region53: #{tpu_custom_call.1} parent=1 // pred_fallthru
      _
    // Predicated region
    $region54: #{tpu_custom_call.1} parent=1 // pred_check
      _
    $region55: #{tpu_custom_call.1} parent=1 // pred_check_branch
      %102 = sbr.rel (0) target = $region57
    $region56: #{tpu_custom_call.1} parent=1 // pred_region
      _
    $region57: #{tpu_custom_call.1} parent=1 // pred_fallthru
      _
    // Predicated region
    $region58: #{tpu_custom_call.1} parent=1 // pred_check
      _
    $region59: #{tpu_custom_call.1} parent=1 // pred_check_branch
      %104 = sbr.rel (0) target = $region61
    $region60: #{tpu_custom_call.1} parent=1 // pred_region
      _
    $region61: #{tpu_custom_call.1} parent=1 // pred_fallthru
      _
    // Predicated region
    $region62: #{tpu_custom_call.1} parent=1 // pred_check
      _
    $region63: #{tpu_custom_call.1} parent=1 // pred_check_branch
      %106 = sbr.rel (0) target = $region65
    $region64: #{tpu_custom_call.1} parent=1 // pred_region
      _
    $region65: #{tpu_custom_call.1} parent=1 // pred_fallthru
      _
    // Predicated region
    $region66: #{tpu_custom_call.1} parent=1 // pred_check
      _
    $region67: #{tpu_custom_call.1} parent=1 // pred_check_branch
      %108 = sbr.rel (0) target = $region69
    $region68: #{tpu_custom_call.1} parent=1 // pred_region
      %109 = dma.done [#allocation3], 128
    $region69: #{tpu_custom_call.1} parent=1 // pred_fallthru
      _
    // Predicated region
    $region70: #{tpu_custom_call.1} parent=1 // pred_check
      _
    $region71: #{tpu_custom_call.1} parent=1 // pred_check_branch
      %111 = sbr.rel (0) target = $region73
    $region72: #{tpu_custom_call.1} parent=1 // pred_region
      %112 = dma.done [#allocation6], 384
    $region73: #{tpu_custom_call.1} parent=1 // pred_fallthru
      _
    // Predicated region
    $region74: #{tpu_custom_call.1} parent=1 // pred_check
      _
    $region75: #{tpu_custom_call.1} parent=1 // pred_check_branch
      %114 = sbr.rel (0) target = $region77
    $region76: #{tpu_custom_call.1} parent=1 // pred_region
      %115 = dma.done [#allocation6], 128
    $region77: #{tpu_custom_call.1} parent=1 // pred_fallthru
      _
    // Predicated region
    $region78: #{tpu_custom_call.1} parent=1 // pred_check
      _
    $region79: #{tpu_custom_call.1} parent=1 // pred_check_branch
      %117 = sbr.rel (0) target = $region81
    $region80: #{tpu_custom_call.1} parent=1 // pred_region
      %118 = dma.done [#allocation9], 512
    $region81: #{tpu_custom_call.1} parent=1 // pred_fallthru
      _
    // Predicated region
    $region82: #{tpu_custom_call.1} parent=1 // pred_check
      _
    $region83: #{tpu_custom_call.1} parent=1 // pred_check_branch
      %120 = sbr.rel (0) target = $region85
    $region84: #{tpu_custom_call.1} parent=1 // pred_region
      %121 = dma.done [#allocation9], 512
    $region85: #{tpu_custom_call.1} parent=1 // pred_fallthru
      _
    %v123 = vld [vmem:[#allocation2] sm:$0xf]
    %v124 = vld [vmem:[#allocation2 + $0x4] sm:$0xf]
    %v125 = vld [vmem:[#allocation7] sm:$0xf]
    %v126 = vld [vmem:[#allocation7 + $0x4] sm:$0xf]
    %v127 = vld [vmem:[%s3] sm:$0x1]
    %v129 = vlaneseq
    %v130 = vshrl.u32 %v129, 7
    %v131 = vsub.s32 0, %v130
    %v132 = vrot.slane %v127, %v131
    %v136 = vunpack.c.l.b16 %v123
    %v137 = vunpack.c.l.b16 %v124
    %v138 = vpack.c.b16 %v137, %v136
    %v141 = vunpack.c.l.b16 %v125
    %v142 = vunpack.c.l.b16 %v126
    %v143 = vpack.c.b16 %v142, %v141
    %vm145 = vcmask 130048
    %v147 = vsel %vm145, %v138, 0
    %149 = vmatprep.subr.bf16.mxu0 0
    %150 = vmatpush1.bf16.msra.mxu0 %v143
    %151 = vmatprep.subr.bf16.mxu0 0
    %152 = vmatpush1.bf16.msra.mxu0 0
    %153 = vmatprep.subr.bf16.mxu0 0
    %154 = vmatpush1.bf16.msra.mxu0 0
    %155 = vmatprep.subr.bf16.mxu0 0
    %156 = vmatpush1.bf16.msra.mxu0 0
    %157 = vmatprep.subr.bf16.mxu0 0
    %158 = vmatpush1.bf16.msra.mxu0 0
    %159 = vmatprep.subr.bf16.mxu0 0
    %160 = vmatpush1.bf16.msra.mxu0 0
    %161 = vmatprep.subr.bf16.mxu0 0
    %162 = vmatpush1.bf16.msra.mxu0 0
    %163 = vmatprep.subr.bf16.mxu0 0
    %164 = vmatpush1.bf16.msra.mxu0 0
    %165 = vmatprep.subr.bf16.mxu0 0
    %166 = vmatpush1.bf16.msra.mxu0 0
    %167 = vmatprep.subr.bf16.mxu0 0
    %168 = vmatpush1.bf16.msra.mxu0 0
    %169 = vmatprep.subr.bf16.mxu0 0
    %170 = vmatpush1.bf16.msra.mxu0 0
    %171 = vmatprep.subr.bf16.mxu0 0
    %172 = vmatpush1.bf16.msra.mxu0 0
    %173 = vmatprep.subr.bf16.mxu0 0
    %174 = vmatpush1.bf16.msra.mxu0 0
    %175 = vmatprep.subr.bf16.mxu0 0
    %176 = vmatpush1.bf16.msra.mxu0 0
    %177 = vmatprep.subr.bf16.mxu0 0
    %178 = vmatpush1.bf16.msra.mxu0 0
    %179 = vmatprep.subr.bf16.mxu0 0
    %180 = vmatpush1.bf16.msra.mxu0 0
    %181 = vmatprep.mubr.bf16.mxu0 0
    %182 = vmatmul.mubr.bf16.gmra.mrb[0].mxu0 %v147
    %v183 = vpop.f32.mrb[0].mxu0
    %v184 = vadd.f32 %v132, %v183
    %v185 = vpop.f32.mrb[0].mxu0
    %v186 = vpop.f32.mrb[0].mxu0
    %v187 = vadd.f32 %v132, %v186
    %v188 = vpop.f32.mrb[0].mxu0
    %189 = vdwg.mxu0
    %v190 = vld [vmem:[#allocation5] sm:$0x3]
    %s191 = scalar_lea.vmem [#allocation5], 2
    %v192 = vld [vmem:[%s191] sm:$0x3]
    %s193 = scalar_lea.vmem [#allocation5], 4
    %v194 = vld [vmem:[%s193] sm:$0x3]
    %s195 = scalar_lea.vmem [#allocation5], 6
    %v196 = vld [vmem:[%s195] sm:$0x3]
    %s197 = scalar_lea.vmem [#allocation5], 8
    %v198 = vld [vmem:[%s197] sm:$0x3]
    %s199 = scalar_lea.vmem [#allocation5], 10
    %v200 = vld [vmem:[%s199] sm:$0x3]
    %v203 = vunpack.c.l.s4 1966171168
    %v204 = vunpack.c.0.s8 %v203
    %v205 = vlaneseq
    %v206 = vshrl.u32 %v205, 7
    %v207 = vsub.s32 %v204, %v206
    %v208 = vrot.slane %v190, %v207
    %v209 = vcombine.high %v208, %v208
    %v211 = vunpack.c.l.s4 1966171168
    %v212 = vunpack.c.0.s8 %v211
    %v213 = vlaneseq
    %v214 = vshrl.u32 %v213, 7
    %v215 = vsub.s32 %v212, %v214
    %v216 = vrot.slane %v208, %v215
    %v218 = vunpack.c.l.s4 1966171168
    %v219 = vunpack.c.0.s8 %v218
    %v220 = vlaneseq
    %v221 = vshrl.u32 %v220, 7
    %v222 = vsub.s32 %v219, %v221
    %v223 = vrot.slane %v209, %v222
    %vm224 = vcmask 261120
    %v225 = vsel %vm224, %v184, 0.0
    %226 = vadd.xlane.f32.xlu0 %v225
    %v227 = vpop.xlane.xlu0 %226
    %v228 = vsel %vm224, %v187, 0.0
    %229 = vadd.xlane.f32.xlu0 %v228
    %v230 = vpop.xlane.xlu0 %229
    %v231 = vrcp.pop 32.0
    %v232 = vmul.f32 %v227, %v231
    %v233 = vmul.f32 %v230, %v231
    %v234 = vsub.f32 %v184, %v232
    %v235 = vsub.f32 %v187, %v233
    %v236 = vmul.f32 %v234, %v234
    %v237 = vmul.f32 %v235, %v235
    %v238 = vsel %vm224, %v236, 0.0
    %239 = vadd.xlane.f32.xlu0 %v238
    %v240 = vpop.xlane.xlu0 %239
    %v241 = vsel %vm224, %v237, 0.0
    %242 = vadd.xlane.f32.xlu0 %v241
    %v243 = vpop.xlane.xlu0 %242
    %v244 = vmul.f32 %v240, %v231
    %v245 = vmul.f32 %v243, %v231
    %v246 = vadd.f32 %v244, 1e-05
    %v247 = vadd.f32 %v245, 1e-05
    %v248 = vrsqrt.pop %v246
    %v249 = vmul.f32 %v246, %v248
    %vm250 = vcmp.eq.f32.partialorder %v246, inf
    %v251 = vsel %vm250, %v246, %v249
    %vm252 = vcmp.eq.f32.partialorder %v246, 0.0
    %v253 = vand.u32 %v246, 2147483648
    %v254 = vsel %vm252, %v253, %v251
    %v255 = vrsqrt.pop %v247
    %v256 = vmul.f32 %v247, %v255
    %vm257 = vcmp.eq.f32.partialorder %v247, inf
    %v258 = vsel %vm257, %v247, %v256
    %vm259 = vcmp.eq.f32.partialorder %v247, 0.0
    %v260 = vand.u32 %v247, 2147483648
    %v261 = vsel %vm259, %v260, %v258
    %v262 = vrcp.pop %v254
    %v263 = vmul.f32 %v234, %v262
    %v264 = vrcp.pop %v261
    %v265 = vmul.f32 %v235, %v264
    %v266 = vlaneseq
    %v267 = vshrl.u32 %v266, 7
    %v268 = vsub.s32 0, %v267
    %v269 = vrot.slane %v216, %v268
    %v270 = vlaneseq
    %v271 = vshrl.u32 %v270, 7
    %v272 = vsub.s32 0, %v271
    %v273 = vrot.slane %v223, %v272
    %v276 = vmul.f32 %v269, %v263
    %v277 = vmul.f32 %v273, %v265
    %v280 = vunpack.c.l.s4 1966171168
    %v281 = vunpack.c.0.s8 %v280
    %v282 = vlaneseq
    %v283 = vshrl.u32 %v282, 7
    %v284 = vsub.s32 %v281, %v283
    %v285 = vrot.slane %v192, %v284
    %v286 = vcombine.high %v285, %v285
    %v288 = vunpack.c.l.s4 1966171168
    %v289 = vunpack.c.0.s8 %v288
    %v290 = vlaneseq
    %v291 = vshrl.u32 %v290, 7
    %v292 = vsub.s32 %v289, %v291
    %v293 = vrot.slane %v285, %v292
    %v295 = vunpack.c.l.s4 1966171168
    %v296 = vunpack.c.0.s8 %v295
    %v297 = vlaneseq
    %v298 = vshrl.u32 %v297, 7
    %v299 = vsub.s32 %v296, %v298
    %v300 = vrot.slane %v286, %v299
    %v301 = vlaneseq
    %v302 = vshrl.u32 %v301, 7
    %v303 = vsub.s32 0, %v302
    %v304 = vrot.slane %v293, %v303
    %v305 = vlaneseq
    %v306 = vshrl.u32 %v305, 7
    %v307 = vsub.s32 0, %v306
    %v308 = vrot.slane %v300, %v307
    %v311 = vadd.f32 %v276, %v304
    %v312 = vadd.f32 %v277, %v308
    %v313 = vpack.c.bf16 %v312, %v311
    %v314 = vld [vmem:[%s4] sm:$0xf]
    %v315 = vld [vmem:[%s4 + $0x4] sm:$0xf]
    %v316 = vld [vmem:[%s4 + $0x8] sm:$0xf]
    %v317 = vld [vmem:[%s4 + $0xc] sm:$0xf]
    %v318 = vld [vmem:[%s5] sm:$0x1]
    %v320 = vlaneseq
    %v321 = vshrl.u32 %v320, 7
    %v322 = vsub.s32 0, %v321
    %v323 = vrot.slane %v318, %v322
    %v329 = vunpack.c.l.b16 %v314
    %v330 = vunpack.c.l.b16 %v315
    %v331 = vunpack.c.l.b16 %v316
    %v332 = vunpack.c.l.b16 %v317
    %v333 = vpack.c.b16 %v330, %v329
    %v334 = vpack.c.b16 %v332, %v331
    %v338 = vsel %vm224, %v313, 0
    %340 = vmatprep.subr.bf16.mxu0 0
    %341 = vmatpush1.bf16.msra.mxu0 %v333
    %342 = vmatprep.subr.bf16.mxu0 0
    %343 = vmatpush1.bf16.msra.mxu0 %v334
    %344 = vmatprep.subr.bf16.mxu0 0
    %345 = vmatpush1.bf16.msra.mxu0 0
    %346 = vmatprep.subr.bf16.mxu0 0
    %347 = vmatpush1.bf16.msra.mxu0 0
    %348 = vmatprep.subr.bf16.mxu0 0
    %349 = vmatpush1.bf16.msra.mxu0 0
    %350 = vmatprep.subr.bf16.mxu0 0
    %351 = vmatpush1.bf16.msra.mxu0 0
    %352 = vmatprep.subr.bf16.mxu0 0
    %353 = vmatpush1.bf16.msra.mxu0 0
    %354 = vmatprep.subr.bf16.mxu0 0
    %355 = vmatpush1.bf16.msra.mxu0 0
    %356 = vmatprep.subr.bf16.mxu0 0
    %357 = vmatpush1.bf16.msra.mxu0 0
    %358 = vmatprep.subr.bf16.mxu0 0
    %359 = vmatpush1.bf16.msra.mxu0 0
    %360 = vmatprep.subr.bf16.mxu0 0
    %361 = vmatpush1.bf16.msra.mxu0 0
    %362 = vmatprep.subr.bf16.mxu0 0
    %363 = vmatpush1.bf16.msra.mxu0 0
    %364 = vmatprep.subr.bf16.mxu0 0
    %365 = vmatpush1.bf16.msra.mxu0 0
    %366 = vmatprep.subr.bf16.mxu0 0
    %367 = vmatpush1.bf16.msra.mxu0 0
    %368 = vmatprep.subr.bf16.mxu0 0
    %369 = vmatpush1.bf16.msra.mxu0 0
    %370 = vmatprep.subr.bf16.mxu0 0
    %371 = vmatpush1.bf16.msra.mxu0 0
    %372 = vmatprep.mubr.bf16.mxu0 0
    %373 = vmatmul.mubr.bf16.gmra.mrb[0].mxu0 %v338
    %v374 = vpop.f32.mrb[0].mxu0
    %v375 = vadd.f32 %v323, %v374
    %v376 = vpop.f32.mrb[0].mxu0
    %v377 = vpop.f32.mrb[0].mxu0
    %v378 = vadd.f32 %v323, %v377
    %v379 = vpop.f32.mrb[0].mxu0
    %380 = vdwg.mxu0
    %v381 = vld [vmem:[%s6] sm:$0xf]
    %v382 = vld [vmem:[%s6 + $0x4] sm:$0xf]
    %v383 = vld [vmem:[%s6 + $0x8] sm:$0xf]
    %v384 = vld [vmem:[%s6 + $0xc] sm:$0xf]
    %v385 = vld [vmem:[%s7] sm:$0x1]
    %v387 = vlaneseq
    %v388 = vshrl.u32 %v387, 7
    %v389 = vsub.s32 0, %v388
    %v390 = vrot.slane %v385, %v389
    %v396 = vunpack.c.l.b16 %v381
    %v397 = vunpack.c.l.b16 %v382
    %v398 = vunpack.c.l.b16 %v383
    %v399 = vunpack.c.l.b16 %v384
    %v400 = vpack.c.b16 %v397, %v396
    %v401 = vpack.c.b16 %v399, %v398
    %404 = vmatprep.subr.bf16.mxu0 0
    %405 = vmatpush1.bf16.msra.mxu0 %v400
    %406 = vmatprep.subr.bf16.mxu0 0
    %407 = vmatpush1.bf16.msra.mxu0 %v401
    %408 = vmatprep.subr.bf16.mxu0 0
    %409 = vmatpush1.bf16.msra.mxu0 0
    %410 = vmatprep.subr.bf16.mxu0 0
    %411 = vmatpush1.bf16.msra.mxu0 0
    %412 = vmatprep.subr.bf16.mxu0 0
    %413 = vmatpush1.bf16.msra.mxu0 0
    %414 = vmatprep.subr.bf16.mxu0 0
    %415 = vmatpush1.bf16.msra.mxu0 0
    %416 = vmatprep.subr.bf16.mxu0 0
    %417 = vmatpush1.bf16.msra.mxu0 0
    %418 = vmatprep.subr.bf16.mxu0 0
    %419 = vmatpush1.bf16.msra.mxu0 0
    %420 = vmatprep.subr.bf16.mxu0 0
    %421 = vmatpush1.bf16.msra.mxu0 0
    %422 = vmatprep.subr.bf16.mxu0 0
    %423 = vmatpush1.bf16.msra.mxu0 0
    %424 = vmatprep.subr.bf16.mxu0 0
    %425 = vmatpush1.bf16.msra.mxu0 0
    %426 = vmatprep.subr.bf16.mxu0 0
    %427 = vmatpush1.bf16.msra.mxu0 0
    %428 = vmatprep.subr.bf16.mxu0 0
    %429 = vmatpush1.bf16.msra.mxu0 0
    %430 = vmatprep.subr.bf16.mxu0 0
    %431 = vmatpush1.bf16.msra.mxu0 0
    %432 = vmatprep.subr.bf16.mxu0 0
    %433 = vmatpush1.bf16.msra.mxu0 0
    %434 = vmatprep.subr.bf16.mxu0 0
    %435 = vmatpush1.bf16.msra.mxu0 0
    %436 = vmatprep.mubr.bf16.mxu0 0
    %437 = vmatmul.mubr.bf16.gmra.mrb[0].mxu0 %v338
    %v438 = vpop.f32.mrb[0].mxu0
    %v439 = vadd.f32 %v390, %v438
    %v440 = vpop.f32.mrb[0].mxu0
    %v441 = vpop.f32.mrb[0].mxu0
    %v442 = vadd.f32 %v390, %v441
    %v443 = vpop.f32.mrb[0].mxu0
    %444 = vdwg.mxu0
    %v445 = vld [vmem:[%s8] sm:$0xf]
    %v446 = vld [vmem:[%s8 + $0x4] sm:$0xf]
    %v447 = vld [vmem:[%s8 + $0x8] sm:$0xf]
    %v448 = vld [vmem:[%s8 + $0xc] sm:$0xf]
    %v449 = vld [vmem:[%s9] sm:$0x1]
    %v451 = vlaneseq
    %v452 = vshrl.u32 %v451, 7
    %v453 = vsub.s32 0, %v452
    %v454 = vrot.slane %v449, %v453
    %v460 = vunpack.c.l.b16 %v445
    %v461 = vunpack.c.l.b16 %v446
    %v462 = vunpack.c.l.b16 %v447
    %v463 = vunpack.c.l.b16 %v448
    %v464 = vpack.c.b16 %v461, %v460
    %v465 = vpack.c.b16 %v463, %v462
    %468 = vmatprep.subr.bf16.mxu0 0
    %469 = vmatpush1.bf16.msra.mxu0 %v464
    %470 = vmatprep.subr.bf16.mxu0 0
    %471 = vmatpush1.bf16.msra.mxu0 %v465
    %472 = vmatprep.subr.bf16.mxu0 0
    %473 = vmatpush1.bf16.msra.mxu0 0
    %474 = vmatprep.subr.bf16.mxu0 0
    %475 = vmatpush1.bf16.msra.mxu0 0
    %476 = vmatprep.subr.bf16.mxu0 0
    %477 = vmatpush1.bf16.msra.mxu0 0
    %478 = vmatprep.subr.bf16.mxu0 0
    %479 = vmatpush1.bf16.msra.mxu0 0
    %480 = vmatprep.subr.bf16.mxu0 0
    %481 = vmatpush1.bf16.msra.mxu0 0
    %482 = vmatprep.subr.bf16.mxu0 0
    %483 = vmatpush1.bf16.msra.mxu0 0
    %484 = vmatprep.subr.bf16.mxu0 0
    %485 = vmatpush1.bf16.msra.mxu0 0
    %486 = vmatprep.subr.bf16.mxu0 0
    %487 = vmatpush1.bf16.msra.mxu0 0
    %488 = vmatprep.subr.bf16.mxu0 0
    %489 = vmatpush1.bf16.msra.mxu0 0
    %490 = vmatprep.subr.bf16.mxu0 0
    %491 = vmatpush1.bf16.msra.mxu0 0
    %492 = vmatprep.subr.bf16.mxu0 0
    %493 = vmatpush1.bf16.msra.mxu0 0
    %494 = vmatprep.subr.bf16.mxu0 0
    %495 = vmatpush1.bf16.msra.mxu0 0
    %496 = vmatprep.subr.bf16.mxu0 0
    %497 = vmatpush1.bf16.msra.mxu0 0
    %498 = vmatprep.subr.bf16.mxu0 0
    %499 = vmatpush1.bf16.msra.mxu0 0
    %500 = vmatprep.mubr.bf16.mxu0 0
    %501 = vmatmul.mubr.bf16.gmra.mrb[0].mxu0 %v338
    %v502 = vpop.f32.mrb[0].mxu0
    %v503 = vadd.f32 %v454, %v502
    %v504 = vpop.f32.mrb[0].mxu0
    %v505 = vpop.f32.mrb[0].mxu0
    %v506 = vadd.f32 %v454, %v505
    %v507 = vpop.f32.mrb[0].mxu0
    %508 = vdwg.mxu0
    %v509 = vmul.f32 %v375, 0.35355338
    %v510 = vmul.f32 %v378, 0.35355338
    %v511 = vpack.c.bf16 %v510, %v509
    %v512 = vpack.c.bf16 %v442, %v439
    %v513 = vpack.c.bf16 %v506, %v503
    %v515 = vunpack.c.l.b16 %v511
    %v516 = vunpack.c.h.b16 %v511
    %v517 = vpack.c.b16 %v515, %v515
    %v518 = vpack.c.b16 %v516, %v516
    %519 = vrot.lane.b32.xlu0 %v517, 120
    %v520 = vpop.permute.xlu0 %519
    %521 = vrot.lane.b32.xlu0 %v518, 120
    %v522 = vpop.permute.xlu0 %521
    %523 = vrot.lane.b32.xlu0 %v517, 112
    %v524 = vpop.permute.xlu0 %523
    %525 = vrot.lane.b32.xlu0 %v518, 112
    %v526 = vpop.permute.xlu0 %525
    %527 = vrot.lane.b32.xlu0 %v517, 104
    %v528 = vpop.permute.xlu0 %527
    %529 = vrot.lane.b32.xlu0 %v518, 104
    %v530 = vpop.permute.xlu0 %529
    %v532 = vunpack.c.l.b16 %v512
    %v533 = vunpack.c.h.b16 %v512
    %v534 = vpack.c.b16 %v532, %v532
    %v535 = vpack.c.b16 %v533, %v533
    %536 = vrot.lane.b32.xlu0 %v534, 120
    %v537 = vpop.permute.xlu0 %536
    %538 = vrot.lane.b32.xlu0 %v535, 120
    %v539 = vpop.permute.xlu0 %538
    %540 = vrot.lane.b32.xlu0 %v534, 112
    %v541 = vpop.permute.xlu0 %540
    %542 = vrot.lane.b32.xlu0 %v535, 112
    %v543 = vpop.permute.xlu0 %542
    %544 = vrot.lane.b32.xlu0 %v534, 104
    %v545 = vpop.permute.xlu0 %544
    %546 = vrot.lane.b32.xlu0 %v535, 104
    %v547 = vpop.permute.xlu0 %546
    %v549 = vunpack.c.l.b16 %v513
    %v550 = vunpack.c.h.b16 %v513
    %v551 = vpack.c.b16 %v549, %v549
    %v552 = vpack.c.b16 %v550, %v550
    %553 = vrot.lane.b32.xlu0 %v551, 120
    %v554 = vpop.permute.xlu0 %553
    %555 = vrot.lane.b32.xlu0 %v552, 120
    %v556 = vpop.permute.xlu0 %555
    %557 = vrot.lane.b32.xlu0 %v551, 112
    %v558 = vpop.permute.xlu0 %557
    %559 = vrot.lane.b32.xlu0 %v552, 112
    %v560 = vpop.permute.xlu0 %559
    %561 = vrot.lane.b32.xlu0 %v551, 104
    %v562 = vpop.permute.xlu0 %561
    %563 = vrot.lane.b32.xlu0 %v552, 104
    %v564 = vpop.permute.xlu0 %563
    %vm565 = vcmask 64512
    %v567 = vsel %vm565, %v517, 0
    %v570 = vsel %vm565, %v534, 0
    %572 = vmatprep.subr.bf16.mxu0 0
    %573 = vmatpush1.bf16.xpose.msra.mxu0 %v570
    %574 = vmatprep.subr.bf16.mxu0 0
    %575 = vmatpush1.bf16.xpose.msra.mxu0 0
    %576 = vmatprep.subr.bf16.mxu0 0
    %577 = vmatpush1.bf16.xpose.msra.mxu0 0
    %578 = vmatprep.subr.bf16.mxu0 0
    %579 = vmatpush1.bf16.xpose.msra.mxu0 0
    %580 = vmatprep.subr.bf16.mxu0 0
    %581 = vmatpush1.bf16.xpose.msra.mxu0 0
    %582 = vmatprep.subr.bf16.mxu0 0
    %583 = vmatpush1.bf16.xpose.msra.mxu0 0
    %584 = vmatprep.subr.bf16.mxu0 0
    %585 = vmatpush1.bf16.xpose.msra.mxu0 0
    %586 = vmatprep.subr.bf16.mxu0 0
    %587 = vmatpush1.bf16.xpose.msra.mxu0 0
    %588 = vmatprep.subr.bf16.mxu0 0
    %589 = vmatpush1.bf16.xpose.msra.mxu0 0
    %590 = vmatprep.subr.bf16.mxu0 0
    %591 = vmatpush1.bf16.xpose.msra.mxu0 0
    %592 = vmatprep.subr.bf16.mxu0 0
    %593 = vmatpush1.bf16.xpose.msra.mxu0 0
    %594 = vmatprep.subr.bf16.mxu0 0
    %595 = vmatpush1.bf16.xpose.msra.mxu0 0
    %596 = vmatprep.subr.bf16.mxu0 0
    %597 = vmatpush1.bf16.xpose.msra.mxu0 0
    %598 = vmatprep.subr.bf16.mxu0 0
    %599 = vmatpush1.bf16.xpose.msra.mxu0 0
    %600 = vmatprep.subr.bf16.mxu0 0
    %601 = vmatpush1.bf16.xpose.msra.mxu0 0
    %602 = vmatprep.subr.bf16.mxu0 0
    %603 = vmatpush1.bf16.xpose.msra.mxu0 0
    %604 = vmatprep.mubr.bf16.mxu0 0
    %605 = vmatmul.mubr.bf16.gmra.mrb[0].mxu0 %v567
    %v606 = vpop.f32.mrb[0].mxu0
    %v607 = vadd.f32 0.0, %v606
    %v608 = vpop.f32.mrb[0].mxu0
    %v609 = vpop.f32.mrb[0].mxu0
    %v610 = vpop.f32.mrb[0].mxu0
    %611 = vdwg.mxu0
    %v613 = vsel %vm565, %v518, 0
    %v616 = vsel %vm565, %v535, 0
    %618 = vmatprep.subr.bf16.mxu0 0
    %619 = vmatpush1.bf16.xpose.msra.mxu0 %v616
    %620 = vmatprep.subr.bf16.mxu0 0
    %621 = vmatpush1.bf16.xpose.msra.mxu0 0
    %622 = vmatprep.subr.bf16.mxu0 0
    %623 = vmatpush1.bf16.xpose.msra.mxu0 0
    %624 = vmatprep.subr.bf16.mxu0 0
    %625 = vmatpush1.bf16.xpose.msra.mxu0 0
    %626 = vmatprep.subr.bf16.mxu0 0
    %627 = vmatpush1.bf16.xpose.msra.mxu0 0
    %628 = vmatprep.subr.bf16.mxu0 0
    %629 = vmatpush1.bf16.xpose.msra.mxu0 0
    %630 = vmatprep.subr.bf16.mxu0 0
    %631 = vmatpush1.bf16.xpose.msra.mxu0 0
    %632 = vmatprep.subr.bf16.mxu0 0
    %633 = vmatpush1.bf16.xpose.msra.mxu0 0
    %634 = vmatprep.subr.bf16.mxu0 0
    %635 = vmatpush1.bf16.xpose.msra.mxu0 0
    %636 = vmatprep.subr.bf16.mxu0 0
    %637 = vmatpush1.bf16.xpose.msra.mxu0 0
    %638 = vmatprep.subr.bf16.mxu0 0
    %639 = vmatpush1.bf16.xpose.msra.mxu0 0
    %640 = vmatprep.subr.bf16.mxu0 0
    %641 = vmatpush1.bf16.xpose.msra.mxu0 0
    %642 = vmatprep.subr.bf16.mxu0 0
    %643 = vmatpush1.bf16.xpose.msra.mxu0 0
    %644 = vmatprep.subr.bf16.mxu0 0
    %645 = vmatpush1.bf16.xpose.msra.mxu0 0
    %646 = vmatprep.subr.bf16.mxu0 0
    %647 = vmatpush1.bf16.xpose.msra.mxu0 0
    %648 = vmatprep.subr.bf16.mxu0 0
    %649 = vmatpush1.bf16.xpose.msra.mxu0 0
    %650 = vmatprep.mubr.bf16.mxu0 0
    %651 = vmatmul.mubr.bf16.gmra.mrb[0].mxu0 %v613
    %v652 = vpop.f32.mrb[0].mxu0
    %v653 = vadd.f32 0.0, %v652
    %v654 = vpop.f32.mrb[0].mxu0
    %v655 = vpop.f32.mrb[0].mxu0
    %v656 = vpop.f32.mrb[0].mxu0
    %657 = vdwg.mxu0
    %v659 = vsel %vm565, %v520, 0
    %v662 = vsel %vm565, %v537, 0
    %664 = vmatprep.subr.bf16.mxu0 0
    %665 = vmatpush1.bf16.xpose.msra.mxu0 %v662
    %666 = vmatprep.subr.bf16.mxu0 0
    %667 = vmatpush1.bf16.xpose.msra.mxu0 0
    %668 = vmatprep.subr.bf16.mxu0 0
    %669 = vmatpush1.bf16.xpose.msra.mxu0 0
    %670 = vmatprep.subr.bf16.mxu0 0
    %671 = vmatpush1.bf16.xpose.msra.mxu0 0
    %672 = vmatprep.subr.bf16.mxu0 0
    %673 = vmatpush1.bf16.xpose.msra.mxu0 0
    %674 = vmatprep.subr.bf16.mxu0 0
    %675 = vmatpush1.bf16.xpose.msra.mxu0 0
    %676 = vmatprep.subr.bf16.mxu0 0
    %677 = vmatpush1.bf16.xpose.msra.mxu0 0
    %678 = vmatprep.subr.bf16.mxu0 0
    %679 = vmatpush1.bf16.xpose.msra.mxu0 0
    %680 = vmatprep.subr.bf16.mxu0 0
    %681 = vmatpush1.bf16.xpose.msra.mxu0 0
    %682 = vmatprep.subr.bf16.mxu0 0
    %683 = vmatpush1.bf16.xpose.msra.mxu0 0
    %684 = vmatprep.subr.bf16.mxu0 0
    %685 = vmatpush1.bf16.xpose.msra.mxu0 0
    %686 = vmatprep.subr.bf16.mxu0 0
    %687 = vmatpush1.bf16.xpose.msra.mxu0 0
    %688 = vmatprep.subr.bf16.mxu0 0
    %689 = vmatpush1.bf16.xpose.msra.mxu0 0
    %690 = vmatprep.subr.bf16.mxu0 0
    %691 = vmatpush1.bf16.xpose.msra.mxu0 0
    %692 = vmatprep.subr.bf16.mxu0 0
    %693 = vmatpush1.bf16.xpose.msra.mxu0 0
    %694 = vmatprep.subr.bf16.mxu0 0
    %695 = vmatpush1.bf16.xpose.msra.mxu0 0
    %696 = vmatprep.mubr.bf16.mxu0 0
    %697 = vmatmul.mubr.bf16.gmra.mrb[0].mxu0 %v659
    %v698 = vpop.f32.mrb[0].mxu0
    %v699 = vadd.f32 0.0, %v698
    %v700 = vpop.f32.mrb[0].mxu0
    %v701 = vpop.f32.mrb[0].mxu0
    %v702 = vpop.f32.mrb[0].mxu0
    %703 = vdwg.mxu0
    %v705 = vsel %vm565, %v522, 0
    %v708 = vsel %vm565, %v539, 0
    %710 = vmatprep.subr.bf16.mxu0 0
    %711 = vmatpush1.bf16.xpose.msra.mxu0 %v708
    %712 = vmatprep.subr.bf16.mxu0 0
    %713 = vmatpush1.bf16.xpose.msra.mxu0 0
    %714 = vmatprep.subr.bf16.mxu0 0
    %715 = vmatpush1.bf16.xpose.msra.mxu0 0
    %716 = vmatprep.subr.bf16.mxu0 0
    %717 = vmatpush1.bf16.xpose.msra.mxu0 0
    %718 = vmatprep.subr.bf16.mxu0 0
    %719 = vmatpush1.bf16.xpose.msra.mxu0 0
    %720 = vmatprep.subr.bf16.mxu0 0
    %721 = vmatpush1.bf16.xpose.msra.mxu0 0
    %722 = vmatprep.subr.bf16.mxu0 0
    %723 = vmatpush1.bf16.xpose.msra.mxu0 0
    %724 = vmatprep.subr.bf16.mxu0 0
    %725 = vmatpush1.bf16.xpose.msra.mxu0 0
    %726 = vmatprep.subr.bf16.mxu0 0
    %727 = vmatpush1.bf16.xpose.msra.mxu0 0
    %728 = vmatprep.subr.bf16.mxu0 0
    %729 = vmatpush1.bf16.xpose.msra.mxu0 0
    %730 = vmatprep.subr.bf16.mxu0 0
    %731 = vmatpush1.bf16.xpose.msra.mxu0 0
    %732 = vmatprep.subr.bf16.mxu0 0
    %733 = vmatpush1.bf16.xpose.msra.mxu0 0
    %734 = vmatprep.subr.bf16.mxu0 0
    %735 = vmatpush1.bf16.xpose.msra.mxu0 0
    %736 = vmatprep.subr.bf16.mxu0 0
    %737 = vmatpush1.bf16.xpose.msra.mxu0 0
    %738 = vmatprep.subr.bf16.mxu0 0
    %739 = vmatpush1.bf16.xpose.msra.mxu0 0
    %740 = vmatprep.subr.bf16.mxu0 0
    %741 = vmatpush1.bf16.xpose.msra.mxu0 0
    %742 = vmatprep.mubr.bf16.mxu0 0
    %743 = vmatmul.mubr.bf16.gmra.mrb[0].mxu0 %v705
    %v744 = vpop.f32.mrb[0].mxu0
    %v745 = vadd.f32 0.0, %v744
    %v746 = vpop.f32.mrb[0].mxu0
    %v747 = vpop.f32.mrb[0].mxu0
    %v748 = vpop.f32.mrb[0].mxu0
    %749 = vdwg.mxu0
    %v751 = vsel %vm565, %v524, 0
    %v754 = vsel %vm565, %v541, 0
    %756 = vmatprep.subr.bf16.mxu0 0
    %757 = vmatpush1.bf16.xpose.msra.mxu0 %v754
    %758 = vmatprep.subr.bf16.mxu0 0
    %759 = vmatpush1.bf16.xpose.msra.mxu0 0
    %760 = vmatprep.subr.bf16.mxu0 0
    %761 = vmatpush1.bf16.xpose.msra.mxu0 0
    %762 = vmatprep.subr.bf16.mxu0 0
    %763 = vmatpush1.bf16.xpose.msra.mxu0 0
    %764 = vmatprep.subr.bf16.mxu0 0
    %765 = vmatpush1.bf16.xpose.msra.mxu0 0
    %766 = vmatprep.subr.bf16.mxu0 0
    %767 = vmatpush1.bf16.xpose.msra.mxu0 0
    %768 = vmatprep.subr.bf16.mxu0 0
    %769 = vmatpush1.bf16.xpose.msra.mxu0 0
    %770 = vmatprep.subr.bf16.mxu0 0
    %771 = vmatpush1.bf16.xpose.msra.mxu0 0
    %772 = vmatprep.subr.bf16.mxu0 0
    %773 = vmatpush1.bf16.xpose.msra.mxu0 0
    %774 = vmatprep.subr.bf16.mxu0 0
    %775 = vmatpush1.bf16.xpose.msra.mxu0 0
    %776 = vmatprep.subr.bf16.mxu0 0
    %777 = vmatpush1.bf16.xpose.msra.mxu0 0
    %778 = vmatprep.subr.bf16.mxu0 0
    %779 = vmatpush1.bf16.xpose.msra.mxu0 0
    %780 = vmatprep.subr.bf16.mxu0 0
    %781 = vmatpush1.bf16.xpose.msra.mxu0 0
    %782 = vmatprep.subr.bf16.mxu0 0
    %783 = vmatpush1.bf16.xpose.msra.mxu0 0
    %784 = vmatprep.subr.bf16.mxu0 0
    %785 = vmatpush1.bf16.xpose.msra.mxu0 0
    %786 = vmatprep.subr.bf16.mxu0 0
    %787 = vmatpush1.bf16.xpose.msra.mxu0 0
    %788 = vmatprep.mubr.bf16.mxu0 0
    %789 = vmatmul.mubr.bf16.gmra.mrb[0].mxu0 %v751
    %v790 = vpop.f32.mrb[0].mxu0
    %v791 = vadd.f32 0.0, %v790
    %v792 = vpop.f32.mrb[0].mxu0
    %v793 = vpop.f32.mrb[0].mxu0
    %v794 = vpop.f32.mrb[0].mxu0
    %795 = vdwg.mxu0
    %v797 = vsel %vm565, %v526, 0
    %v800 = vsel %vm565, %v543, 0
    %802 = vmatprep.subr.bf16.mxu0 0
    %803 = vmatpush1.bf16.xpose.msra.mxu0 %v800
    %804 = vmatprep.subr.bf16.mxu0 0
    %805 = vmatpush1.bf16.xpose.msra.mxu0 0
    %806 = vmatprep.subr.bf16.mxu0 0
    %807 = vmatpush1.bf16.xpose.msra.mxu0 0
    %808 = vmatprep.subr.bf16.mxu0 0
    %809 = vmatpush1.bf16.xpose.msra.mxu0 0
    %810 = vmatprep.subr.bf16.mxu0 0
    %811 = vmatpush1.bf16.xpose.msra.mxu0 0
    %812 = vmatprep.subr.bf16.mxu0 0
    %813 = vmatpush1.bf16.xpose.msra.mxu0 0
    %814 = vmatprep.subr.bf16.mxu0 0
    %815 = vmatpush1.bf16.xpose.msra.mxu0 0
    %816 = vmatprep.subr.bf16.mxu0 0
    %817 = vmatpush1.bf16.xpose.msra.mxu0 0
    %818 = vmatprep.subr.bf16.mxu0 0
    %819 = vmatpush1.bf16.xpose.msra.mxu0 0
    %820 = vmatprep.subr.bf16.mxu0 0
    %821 = vmatpush1.bf16.xpose.msra.mxu0 0
    %822 = vmatprep.subr.bf16.mxu0 0
    %823 = vmatpush1.bf16.xpose.msra.mxu0 0
    %824 = vmatprep.subr.bf16.mxu0 0
    %825 = vmatpush1.bf16.xpose.msra.mxu0 0
    %826 = vmatprep.subr.bf16.mxu0 0
    %827 = vmatpush1.bf16.xpose.msra.mxu0 0
    %828 = vmatprep.subr.bf16.mxu0 0
    %829 = vmatpush1.bf16.xpose.msra.mxu0 0
    %830 = vmatprep.subr.bf16.mxu0 0
    %831 = vmatpush1.bf16.xpose.msra.mxu0 0
    %832 = vmatprep.subr.bf16.mxu0 0
    %833 = vmatpush1.bf16.xpose.msra.mxu0 0
    %834 = vmatprep.mubr.bf16.mxu0 0
    %835 = vmatmul.mubr.bf16.gmra.mrb[0].mxu0 %v797
    %v836 = vpop.f32.mrb[0].mxu0
    %v837 = vadd.f32 0.0, %v836
    %v838 = vpop.f32.mrb[0].mxu0
    %v839 = vpop.f32.mrb[0].mxu0
    %v840 = vpop.f32.mrb[0].mxu0
    %841 = vdwg.mxu0
    %v843 = vsel %vm565, %v528, 0
    %v846 = vsel %vm565, %v545, 0
    %848 = vmatprep.subr.bf16.mxu0 0
    %849 = vmatpush1.bf16.xpose.msra.mxu0 %v846
    %850 = vmatprep.subr.bf16.mxu0 0
    %851 = vmatpush1.bf16.xpose.msra.mxu0 0
    %852 = vmatprep.subr.bf16.mxu0 0
    %853 = vmatpush1.bf16.xpose.msra.mxu0 0
    %854 = vmatprep.subr.bf16.mxu0 0
    %855 = vmatpush1.bf16.xpose.msra.mxu0 0
    %856 = vmatprep.subr.bf16.mxu0 0
    %857 = vmatpush1.bf16.xpose.msra.mxu0 0
    %858 = vmatprep.subr.bf16.mxu0 0
    %859 = vmatpush1.bf16.xpose.msra.mxu0 0
    %860 = vmatprep.subr.bf16.mxu0 0
    %861 = vmatpush1.bf16.xpose.msra.mxu0 0
    %862 = vmatprep.subr.bf16.mxu0 0
    %863 = vmatpush1.bf16.xpose.msra.mxu0 0
    %864 = vmatprep.subr.bf16.mxu0 0
    %865 = vmatpush1.bf16.xpose.msra.mxu0 0
    %866 = vmatprep.subr.bf16.mxu0 0
    %867 = vmatpush1.bf16.xpose.msra.mxu0 0
    %868 = vmatprep.subr.bf16.mxu0 0
    %869 = vmatpush1.bf16.xpose.msra.mxu0 0
    %870 = vmatprep.subr.bf16.mxu0 0
    %871 = vmatpush1.bf16.xpose.msra.mxu0 0
    %872 = vmatprep.subr.bf16.mxu0 0
    %873 = vmatpush1.bf16.xpose.msra.mxu0 0
    %874 = vmatprep.subr.bf16.mxu0 0
    %875 = vmatpush1.bf16.xpose.msra.mxu0 0
    %876 = vmatprep.subr.bf16.mxu0 0
    %877 = vmatpush1.bf16.xpose.msra.mxu0 0
    %878 = vmatprep.subr.bf16.mxu0 0
    %879 = vmatpush1.bf16.xpose.msra.mxu0 0
    %880 = vmatprep.mubr.bf16.mxu0 0
    %881 = vmatmul.mubr.bf16.gmra.mrb[0].mxu0 %v843
    %v882 = vpop.f32.mrb[0].mxu0
    %v883 = vadd.f32 0.0, %v882
    %v884 = vpop.f32.mrb[0].mxu0
    %v885 = vpop.f32.mrb[0].mxu0
    %v886 = vpop.f32.mrb[0].mxu0
    %887 = vdwg.mxu0
    %v889 = vsel %vm565, %v530, 0
    %v892 = vsel %vm565, %v547, 0
    %894 = vmatprep.subr.bf16.mxu0 0
    %895 = vmatpush1.bf16.xpose.msra.mxu0 %v892
    %896 = vmatprep.subr.bf16.mxu0 0
    %897 = vmatpush1.bf16.xpose.msra.mxu0 0
    %898 = vmatprep.subr.bf16.mxu0 0
    %899 = vmatpush1.bf16.xpose.msra.mxu0 0
    %900 = vmatprep.subr.bf16.mxu0 0
    %901 = vmatpush1.bf16.xpose.msra.mxu0 0
    %902 = vmatprep.subr.bf16.mxu0 0
    %903 = vmatpush1.bf16.xpose.msra.mxu0 0
    %904 = vmatprep.subr.bf16.mxu0 0
    %905 = vmatpush1.bf16.xpose.msra.mxu0 0
    %906 = vmatprep.subr.bf16.mxu0 0
    %907 = vmatpush1.bf16.xpose.msra.mxu0 0
    %908 = vmatprep.subr.bf16.mxu0 0
    %909 = vmatpush1.bf16.xpose.msra.mxu0 0
    %910 = vmatprep.subr.bf16.mxu0 0
    %911 = vmatpush1.bf16.xpose.msra.mxu0 0
    %912 = vmatprep.subr.bf16.mxu0 0
    %913 = vmatpush1.bf16.xpose.msra.mxu0 0
    %914 = vmatprep.subr.bf16.mxu0 0
    %915 = vmatpush1.bf16.xpose.msra.mxu0 0
    %916 = vmatprep.subr.bf16.mxu0 0
    %917 = vmatpush1.bf16.xpose.msra.mxu0 0
    %918 = vmatprep.subr.bf16.mxu0 0
    %919 = vmatpush1.bf16.xpose.msra.mxu0 0
    %920 = vmatprep.subr.bf16.mxu0 0
    %921 = vmatpush1.bf16.xpose.msra.mxu0 0
    %922 = vmatprep.subr.bf16.mxu0 0
    %923 = vmatpush1.bf16.xpose.msra.mxu0 0
    %924 = vmatprep.subr.bf16.mxu0 0
    %925 = vmatpush1.bf16.xpose.msra.mxu0 0
    %926 = vmatprep.mubr.bf16.mxu0 0
    %927 = vmatmul.mubr.bf16.gmra.mrb[0].mxu0 %v889
    %v928 = vpop.f32.mrb[0].mxu0
    %v929 = vadd.f32 0.0, %v928
    %v930 = vpop.f32.mrb[0].mxu0
    %v931 = vpop.f32.mrb[0].mxu0
    %v932 = vpop.f32.mrb[0].mxu0
    %933 = vdwg.mxu0
    %v934 = vsel %vm565, %v607, -inf
    %935 = vmax.xlane.f32.xlu0 %v934
    %v936 = vpop.xlane.xlu0 %935
    %v937 = vsel %vm565, %v653, -inf
    %938 = vmax.xlane.f32.xlu0 %v937
    %v939 = vpop.xlane.xlu0 %938
    %v940 = vsel %vm565, %v699, -inf
    %941 = vmax.xlane.f32.xlu0 %v940
    %v942 = vpop.xlane.xlu0 %941
    %v943 = vsel %vm565, %v745, -inf
    %944 = vmax.xlane.f32.xlu0 %v943
    %v945 = vpop.xlane.xlu0 %944
    %v946 = vsel %vm565, %v791, -inf
    %947 = vmax.xlane.f32.xlu0 %v946
    %v948 = vpop.xlane.xlu0 %947
    %v949 = vsel %vm565, %v837, -inf
    %950 = vmax.xlane.f32.xlu0 %v949
    %v951 = vpop.xlane.xlu0 %950
    %v952 = vsel %vm565, %v883, -inf
    %953 = vmax.xlane.f32.xlu0 %v952
    %v954 = vpop.xlane.xlu0 %953
    %v955 = vsel %vm565, %v929, -inf
    %956 = vmax.xlane.f32.xlu0 %v955
    %v957 = vpop.xlane.xlu0 %956
    %v958 = vsub.f32 %v607, %v936
    %v959 = vsub.f32 %v653, %v939
    %v960 = vsub.f32 %v699, %v942
    %v961 = vsub.f32 %v745, %v945
    %v962 = vsub.f32 %v791, %v948
    %v963 = vsub.f32 %v837, %v951
    %v964 = vsub.f32 %v883, %v954
    %v965 = vsub.f32 %v929, %v957
    %v966 = vmul.f32 %v958, 1.442695
    %v967 = vpow.pop %v966
    %v968 = vmul.f32 %v959, 1.442695
    %v969 = vpow.pop %v968
    %v970 = vmul.f32 %v960, 1.442695
    %v971 = vpow.pop %v970
    %v972 = vmul.f32 %v961, 1.442695
    %v973 = vpow.pop %v972
    %v974 = vmul.f32 %v962, 1.442695
    %v975 = vpow.pop %v974
    %v976 = vmul.f32 %v963, 1.442695
    %v977 = vpow.pop %v976
    %v978 = vmul.f32 %v964, 1.442695
    %v979 = vpow.pop %v978
    %v980 = vmul.f32 %v965, 1.442695
    %v981 = vpow.pop %v980
    %v982 = vsel %vm565, %v967, 0.0
    %983 = vadd.xlane.f32.xlu0 %v982
    %v984 = vpop.xlane.xlu0 %983
    %v985 = vsel %vm565, %v969, 0.0
    %986 = vadd.xlane.f32.xlu0 %v985
    %v987 = vpop.xlane.xlu0 %986
    %v988 = vsel %vm565, %v971, 0.0
    %989 = vadd.xlane.f32.xlu0 %v988
    %v990 = vpop.xlane.xlu0 %989
    %v991 = vsel %vm565, %v973, 0.0
    %992 = vadd.xlane.f32.xlu0 %v991
    %v993 = vpop.xlane.xlu0 %992
    %v994 = vsel %vm565, %v975, 0.0
    %995 = vadd.xlane.f32.xlu0 %v994
    %v996 = vpop.xlane.xlu0 %995
    %v997 = vsel %vm565, %v977, 0.0
    %998 = vadd.xlane.f32.xlu0 %v997
    %v999 = vpop.xlane.xlu0 %998
    %v1000 = vsel %vm565, %v979, 0.0
    %1001 = vadd.xlane.f32.xlu0 %v1000
    %v1002 = vpop.xlane.xlu0 %1001
    %v1003 = vsel %vm565, %v981, 0.0
    %1004 = vadd.xlane.f32.xlu0 %v1003
    %v1005 = vpop.xlane.xlu0 %1004
    %v1006 = vrcp.pop %v984
    %v1007 = vrcp.pop %v987
    %v1008 = vrcp.pop %v990
    %v1009 = vrcp.pop %v993
    %v1010 = vrcp.pop %v996
    %v1011 = vrcp.pop %v999
    %v1012 = vrcp.pop %v1002
    %v1013 = vrcp.pop %v1005
    %v1014 = vmul.f32 %v967, %v1006
    %v1015 = vmul.f32 %v969, %v1007
    %v1016 = vmul.f32 %v971, %v1008
    %v1017 = vmul.f32 %v973, %v1009
    %v1018 = vmul.f32 %v975, %v1010
    %v1019 = vmul.f32 %v977, %v1011
    %v1020 = vmul.f32 %v979, %v1012
    %v1021 = vmul.f32 %v981, %v1013
    %v1022 = vpack.c.bf16 %v1014, %v1014
    %v1023 = vpack.c.bf16 %v1015, %v1015
    %v1024 = vpack.c.bf16 %v1016, %v1016
    %v1025 = vpack.c.bf16 %v1017, %v1017
    %v1026 = vpack.c.bf16 %v1018, %v1018
    %v1027 = vpack.c.bf16 %v1019, %v1019
    %v1028 = vpack.c.bf16 %v1020, %v1020
    %v1029 = vpack.c.bf16 %v1021, %v1021
    %v1031 = vsel %vm565, %v1022, 0
    %vm1033 = vcmask 1043456
    %v1035 = vsel %vm1033, %v551, 0
    %1037 = vmatprep.subr.bf16.mxu0 0
    %1038 = vmatpush1.bf16.msra.mxu0 %v1035
    %1039 = vmatprep.subr.bf16.mxu0 0
    %1040 = vmatpush1.bf16.msra.mxu0 0
    %1041 = vmatprep.subr.bf16.mxu0 0
    %1042 = vmatpush1.bf16.msra.mxu0 0
    %1043 = vmatprep.subr.bf16.mxu0 0
    %1044 = vmatpush1.bf16.msra.mxu0 0
    %1045 = vmatprep.subr.bf16.mxu0 0
    %1046 = vmatpush1.bf16.msra.mxu0 0
    %1047 = vmatprep.subr.bf16.mxu0 0
    %1048 = vmatpush1.bf16.msra.mxu0 0
    %1049 = vmatprep.subr.bf16.mxu0 0
    %1050 = vmatpush1.bf16.msra.mxu0 0
    %1051 = vmatprep.subr.bf16.mxu0 0
    %1052 = vmatpush1.bf16.msra.mxu0 0
    %1053 = vmatprep.subr.bf16.mxu0 0
    %1054 = vmatpush1.bf16.msra.mxu0 0
    %1055 = vmatprep.subr.bf16.mxu0 0
    %1056 = vmatpush1.bf16.msra.mxu0 0
    %1057 = vmatprep.subr.bf16.mxu0 0
    %1058 = vmatpush1.bf16.msra.mxu0 0
    %1059 = vmatprep.subr.bf16.mxu0 0
    %1060 = vmatpush1.bf16.msra.mxu0 0
    %1061 = vmatprep.subr.bf16.mxu0 0
    %1062 = vmatpush1.bf16.msra.mxu0 0
    %1063 = vmatprep.subr.bf16.mxu0 0
    %1064 = vmatpush1.bf16.msra.mxu0 0
    %1065 = vmatprep.subr.bf16.mxu0 0
    %1066 = vmatpush1.bf16.msra.mxu0 0
    %1067 = vmatprep.subr.bf16.mxu0 0
    %1068 = vmatpush1.bf16.msra.mxu0 0
    %1069 = vmatprep.mubr.bf16.mxu0 0
    %1070 = vmatmul.mubr.bf16.gmra.mrb[0].mxu0 %v1031
    %v1071 = vpop.f32.mrb[0].mxu0
    %v1072 = vadd.f32 0.0, %v1071
    %v1073 = vpop.f32.mrb[0].mxu0
    %v1074 = vpop.f32.mrb[0].mxu0
    %v1075 = vpop.f32.mrb[0].mxu0
    %1076 = vdwg.mxu0
    %v1078 = vsel %vm565, %v1023, 0
    %v1081 = vsel %vm1033, %v552, 0
    %1083 = vmatprep.subr.bf16.mxu0 0
    %1084 = vmatpush1.bf16.msra.mxu0 %v1081
    %1085 = vmatprep.subr.bf16.mxu0 0
    %1086 = vmatpush1.bf16.msra.mxu0 0
    %1087 = vmatprep.subr.bf16.mxu0 0
    %1088 = vmatpush1.bf16.msra.mxu0 0
    %1089 = vmatprep.subr.bf16.mxu0 0
    %1090 = vmatpush1.bf16.msra.mxu0 0
    %1091 = vmatprep.subr.bf16.mxu0 0
    %1092 = vmatpush1.bf16.msra.mxu0 0
    %1093 = vmatprep.subr.bf16.mxu0 0
    %1094 = vmatpush1.bf16.msra.mxu0 0
    %1095 = vmatprep.subr.bf16.mxu0 0
    %1096 = vmatpush1.bf16.msra.mxu0 0
    %1097 = vmatprep.subr.bf16.mxu0 0
    %1098 = vmatpush1.bf16.msra.mxu0 0
    %1099 = vmatprep.subr.bf16.mxu0 0
    %1100 = vmatpush1.bf16.msra.mxu0 0
    %1101 = vmatprep.subr.bf16.mxu0 0
    %1102 = vmatpush1.bf16.msra.mxu0 0
    %1103 = vmatprep.subr.bf16.mxu0 0
    %1104 = vmatpush1.bf16.msra.mxu0 0
    %1105 = vmatprep.subr.bf16.mxu0 0
    %1106 = vmatpush1.bf16.msra.mxu0 0
    %1107 = vmatprep.subr.bf16.mxu0 0
    %1108 = vmatpush1.bf16.msra.mxu0 0
    %1109 = vmatprep.subr.bf16.mxu0 0
    %1110 = vmatpush1.bf16.msra.mxu0 0
    %1111 = vmatprep.subr.bf16.mxu0 0
    %1112 = vmatpush1.bf16.msra.mxu0 0
    %1113 = vmatprep.subr.bf16.mxu0 0
    %1114 = vmatpush1.bf16.msra.mxu0 0
    %1115 = vmatprep.mubr.bf16.mxu0 0
    %1116 = vmatmul.mubr.bf16.gmra.mrb[0].mxu0 %v1078
    %v1117 = vpop.f32.mrb[0].mxu0
    %v1118 = vadd.f32 0.0, %v1117
    %v1119 = vpop.f32.mrb[0].mxu0
    %v1120 = vpop.f32.mrb[0].mxu0
    %v1121 = vpop.f32.mrb[0].mxu0
    %1122 = vdwg.mxu0
    %v1124 = vsel %vm565, %v1024, 0
    %v1127 = vsel %vm1033, %v554, 0
    %1129 = vmatprep.subr.bf16.mxu0 0
    %1130 = vmatpush1.bf16.msra.mxu0 %v1127
    %1131 = vmatprep.subr.bf16.mxu0 0
    %1132 = vmatpush1.bf16.msra.mxu0 0
    %1133 = vmatprep.subr.bf16.mxu0 0
    %1134 = vmatpush1.bf16.msra.mxu0 0
    %1135 = vmatprep.subr.bf16.mxu0 0
    %1136 = vmatpush1.bf16.msra.mxu0 0
    %1137 = vmatprep.subr.bf16.mxu0 0
    %1138 = vmatpush1.bf16.msra.mxu0 0
    %1139 = vmatprep.subr.bf16.mxu0 0
    %1140 = vmatpush1.bf16.msra.mxu0 0
    %1141 = vmatprep.subr.bf16.mxu0 0
    %1142 = vmatpush1.bf16.msra.mxu0 0
    %1143 = vmatprep.subr.bf16.mxu0 0
    %1144 = vmatpush1.bf16.msra.mxu0 0
    %1145 = vmatprep.subr.bf16.mxu0 0
    %1146 = vmatpush1.bf16.msra.mxu0 0
    %1147 = vmatprep.subr.bf16.mxu0 0
    %1148 = vmatpush1.bf16.msra.mxu0 0
    %1149 = vmatprep.subr.bf16.mxu0 0
    %1150 = vmatpush1.bf16.msra.mxu0 0
    %1151 = vmatprep.subr.bf16.mxu0 0
    %1152 = vmatpush1.bf16.msra.mxu0 0
    %1153 = vmatprep.subr.bf16.mxu0 0
    %1154 = vmatpush1.bf16.msra.mxu0 0
    %1155 = vmatprep.subr.bf16.mxu0 0
    %1156 = vmatpush1.bf16.msra.mxu0 0
    %1157 = vmatprep.subr.bf16.mxu0 0
    %1158 = vmatpush1.bf16.msra.mxu0 0
    %1159 = vmatprep.subr.bf16.mxu0 0
    %1160 = vmatpush1.bf16.msra.mxu0 0
    %1161 = vmatprep.mubr.bf16.mxu0 0
    %1162 = vmatmul.mubr.bf16.gmra.mrb[0].mxu0 %v1124
    %v1163 = vpop.f32.mrb[0].mxu0
    %v1164 = vadd.f32 0.0, %v1163
    %v1165 = vpop.f32.mrb[0].mxu0
    %v1166 = vpop.f32.mrb[0].mxu0
    %v1167 = vpop.f32.mrb[0].mxu0
    %1168 = vdwg.mxu0
    %v1170 = vsel %vm565, %v1025, 0
    %v1173 = vsel %vm1033, %v556, 0
    %1175 = vmatprep.subr.bf16.mxu0 0
    %1176 = vmatpush1.bf16.msra.mxu0 %v1173
    %1177 = vmatprep.subr.bf16.mxu0 0
    %1178 = vmatpush1.bf16.msra.mxu0 0
    %1179 = vmatprep.subr.bf16.mxu0 0
    %1180 = vmatpush1.bf16.msra.mxu0 0
    %1181 = vmatprep.subr.bf16.mxu0 0
    %1182 = vmatpush1.bf16.msra.mxu0 0
    %1183 = vmatprep.subr.bf16.mxu0 0
    %1184 = vmatpush1.bf16.msra.mxu0 0
    %1185 = vmatprep.subr.bf16.mxu0 0
    %1186 = vmatpush1.bf16.msra.mxu0 0
    %1187 = vmatprep.subr.bf16.mxu0 0
    %1188 = vmatpush1.bf16.msra.mxu0 0
    %1189 = vmatprep.subr.bf16.mxu0 0
    %1190 = vmatpush1.bf16.msra.mxu0 0
    %1191 = vmatprep.subr.bf16.mxu0 0
    %1192 = vmatpush1.bf16.msra.mxu0 0
    %1193 = vmatprep.subr.bf16.mxu0 0
    %1194 = vmatpush1.bf16.msra.mxu0 0
    %1195 = vmatprep.subr.bf16.mxu0 0
    %1196 = vmatpush1.bf16.msra.mxu0 0
    %1197 = vmatprep.subr.bf16.mxu0 0
    %1198 = vmatpush1.bf16.msra.mxu0 0
    %1199 = vmatprep.subr.bf16.mxu0 0
    %1200 = vmatpush1.bf16.msra.mxu0 0
    %1201 = vmatprep.subr.bf16.mxu0 0
    %1202 = vmatpush1.bf16.msra.mxu0 0
    %1203 = vmatprep.subr.bf16.mxu0 0
    %1204 = vmatpush1.bf16.msra.mxu0 0
    %1205 = vmatprep.subr.bf16.mxu0 0
    %1206 = vmatpush1.bf16.msra.mxu0 0
    %1207 = vmatprep.mubr.bf16.mxu0 0
    %1208 = vmatmul.mubr.bf16.gmra.mrb[0].mxu0 %v1170
    %v1209 = vpop.f32.mrb[0].mxu0
    %v1210 = vadd.f32 0.0, %v1209
    %v1211 = vpop.f32.mrb[0].mxu0
    %v1212 = vpop.f32.mrb[0].mxu0
    %v1213 = vpop.f32.mrb[0].mxu0
    %1214 = vdwg.mxu0
    %v1216 = vsel %vm565, %v1026, 0
    %v1219 = vsel %vm1033, %v558, 0
    %1221 = vmatprep.subr.bf16.mxu0 0
    %1222 = vmatpush1.bf16.msra.mxu0 %v1219
    %1223 = vmatprep.subr.bf16.mxu0 0
    %1224 = vmatpush1.bf16.msra.mxu0 0
    %1225 = vmatprep.subr.bf16.mxu0 0
    %1226 = vmatpush1.bf16.msra.mxu0 0
    %1227 = vmatprep.subr.bf16.mxu0 0
    %1228 = vmatpush1.bf16.msra.mxu0 0
    %1229 = vmatprep.subr.bf16.mxu0 0
    %1230 = vmatpush1.bf16.msra.mxu0 0
    %1231 = vmatprep.subr.bf16.mxu0 0
    %1232 = vmatpush1.bf16.msra.mxu0 0
    %1233 = vmatprep.subr.bf16.mxu0 0
    %1234 = vmatpush1.bf16.msra.mxu0 0
    %1235 = vmatprep.subr.bf16.mxu0 0
    %1236 = vmatpush1.bf16.msra.mxu0 0
    %1237 = vmatprep.subr.bf16.mxu0 0
    %1238 = vmatpush1.bf16.msra.mxu0 0
    %1239 = vmatprep.subr.bf16.mxu0 0
    %1240 = vmatpush1.bf16.msra.mxu0 0
    %1241 = vmatprep.subr.bf16.mxu0 0
    %1242 = vmatpush1.bf16.msra.mxu0 0
    %1243 = vmatprep.subr.bf16.mxu0 0
    %1244 = vmatpush1.bf16.msra.mxu0 0
    %1245 = vmatprep.subr.bf16.mxu0 0
    %1246 = vmatpush1.bf16.msra.mxu0 0
    %1247 = vmatprep.subr.bf16.mxu0 0
    %1248 = vmatpush1.bf16.msra.mxu0 0
    %1249 = vmatprep.subr.bf16.mxu0 0
    %1250 = vmatpush1.bf16.msra.mxu0 0
    %1251 = vmatprep.subr.bf16.mxu0 0
    %1252 = vmatpush1.bf16.msra.mxu0 0
    %1253 = vmatprep.mubr.bf16.mxu0 0
    %1254 = vmatmul.mubr.bf16.gmra.mrb[0].mxu0 %v1216
    %v1255 = vpop.f32.mrb[0].mxu0
    %v1256 = vadd.f32 0.0, %v1255
    %v1257 = vpop.f32.mrb[0].mxu0
    %v1258 = vpop.f32.mrb[0].mxu0
    %v1259 = vpop.f32.mrb[0].mxu0
    %1260 = vdwg.mxu0
    %v1262 = vsel %vm565, %v1027, 0
    %v1265 = vsel %vm1033, %v560, 0
    %1267 = vmatprep.subr.bf16.mxu0 0
    %1268 = vmatpush1.bf16.msra.mxu0 %v1265
    %1269 = vmatprep.subr.bf16.mxu0 0
    %1270 = vmatpush1.bf16.msra.mxu0 0
    %1271 = vmatprep.subr.bf16.mxu0 0
    %1272 = vmatpush1.bf16.msra.mxu0 0
    %1273 = vmatprep.subr.bf16.mxu0 0
    %1274 = vmatpush1.bf16.msra.mxu0 0
    %1275 = vmatprep.subr.bf16.mxu0 0
    %1276 = vmatpush1.bf16.msra.mxu0 0
    %1277 = vmatprep.subr.bf16.mxu0 0
    %1278 = vmatpush1.bf16.msra.mxu0 0
    %1279 = vmatprep.subr.bf16.mxu0 0
    %1280 = vmatpush1.bf16.msra.mxu0 0
    %1281 = vmatprep.subr.bf16.mxu0 0
    %1282 = vmatpush1.bf16.msra.mxu0 0
    %1283 = vmatprep.subr.bf16.mxu0 0
    %1284 = vmatpush1.bf16.msra.mxu0 0
    %1285 = vmatprep.subr.bf16.mxu0 0
    %1286 = vmatpush1.bf16.msra.mxu0 0
    %1287 = vmatprep.subr.bf16.mxu0 0
    %1288 = vmatpush1.bf16.msra.mxu0 0
    %1289 = vmatprep.subr.bf16.mxu0 0
    %1290 = vmatpush1.bf16.msra.mxu0 0
    %1291 = vmatprep.subr.bf16.mxu0 0
    %1292 = vmatpush1.bf16.msra.mxu0 0
    %1293 = vmatprep.subr.bf16.mxu0 0
    %1294 = vmatpush1.bf16.msra.mxu0 0
    %1295 = vmatprep.subr.bf16.mxu0 0
    %1296 = vmatpush1.bf16.msra.mxu0 0
    %1297 = vmatprep.subr.bf16.mxu0 0
    %1298 = vmatpush1.bf16.msra.mxu0 0
    %1299 = vmatprep.mubr.bf16.mxu0 0
    %1300 = vmatmul.mubr.bf16.gmra.mrb[0].mxu0 %v1262
    %v1301 = vpop.f32.mrb[0].mxu0
    %v1302 = vadd.f32 0.0, %v1301
    %v1303 = vpop.f32.mrb[0].mxu0
    %v1304 = vpop.f32.mrb[0].mxu0
    %v1305 = vpop.f32.mrb[0].mxu0
    %1306 = vdwg.mxu0
    %v1308 = vsel %vm565, %v1028, 0
    %v1311 = vsel %vm1033, %v562, 0
    %1313 = vmatprep.subr.bf16.mxu0 0
    %1314 = vmatpush1.bf16.msra.mxu0 %v1311
    %1315 = vmatprep.subr.bf16.mxu0 0
    %1316 = vmatpush1.bf16.msra.mxu0 0
    %1317 = vmatprep.subr.bf16.mxu0 0
    %1318 = vmatpush1.bf16.msra.mxu0 0
    %1319 = vmatprep.subr.bf16.mxu0 0
    %1320 = vmatpush1.bf16.msra.mxu0 0
    %1321 = vmatprep.subr.bf16.mxu0 0
    %1322 = vmatpush1.bf16.msra.mxu0 0
    %1323 = vmatprep.subr.bf16.mxu0 0
    %1324 = vmatpush1.bf16.msra.mxu0 0
    %1325 = vmatprep.subr.bf16.mxu0 0
    %1326 = vmatpush1.bf16.msra.mxu0 0
    %1327 = vmatprep.subr.bf16.mxu0 0
    %1328 = vmatpush1.bf16.msra.mxu0 0
    %1329 = vmatprep.subr.bf16.mxu0 0
    %1330 = vmatpush1.bf16.msra.mxu0 0
    %1331 = vmatprep.subr.bf16.mxu0 0
    %1332 = vmatpush1.bf16.msra.mxu0 0
    %1333 = vmatprep.subr.bf16.mxu0 0
    %1334 = vmatpush1.bf16.msra.mxu0 0
    %1335 = vmatprep.subr.bf16.mxu0 0
    %1336 = vmatpush1.bf16.msra.mxu0 0
    %1337 = vmatprep.subr.bf16.mxu0 0
    %1338 = vmatpush1.bf16.msra.mxu0 0
    %1339 = vmatprep.subr.bf16.mxu0 0
    %1340 = vmatpush1.bf16.msra.mxu0 0
    %1341 = vmatprep.subr.bf16.mxu0 0
    %1342 = vmatpush1.bf16.msra.mxu0 0
    %1343 = vmatprep.subr.bf16.mxu0 0
    %1344 = vmatpush1.bf16.msra.mxu0 0
    %1345 = vmatprep.mubr.bf16.mxu0 0
    %1346 = vmatmul.mubr.bf16.gmra.mrb[0].mxu0 %v1308
    %v1347 = vpop.f32.mrb[0].mxu0
    %v1348 = vadd.f32 0.0, %v1347
    %v1349 = vpop.f32.mrb[0].mxu0
    %v1350 = vpop.f32.mrb[0].mxu0
    %v1351 = vpop.f32.mrb[0].mxu0
    %1352 = vdwg.mxu0
    %v1354 = vsel %vm565, %v1029, 0
    %v1357 = vsel %vm1033, %v564, 0
    %1359 = vmatprep.subr.bf16.mxu0 0
    %1360 = vmatpush1.bf16.msra.mxu0 %v1357
    %1361 = vmatprep.subr.bf16.mxu0 0
    %1362 = vmatpush1.bf16.msra.mxu0 0
    %1363 = vmatprep.subr.bf16.mxu0 0
    %1364 = vmatpush1.bf16.msra.mxu0 0
    %1365 = vmatprep.subr.bf16.mxu0 0
    %1366 = vmatpush1.bf16.msra.mxu0 0
    %1367 = vmatprep.subr.bf16.mxu0 0
    %1368 = vmatpush1.bf16.msra.mxu0 0
    %1369 = vmatprep.subr.bf16.mxu0 0
    %1370 = vmatpush1.bf16.msra.mxu0 0
    %1371 = vmatprep.subr.bf16.mxu0 0
    %1372 = vmatpush1.bf16.msra.mxu0 0
    %1373 = vmatprep.subr.bf16.mxu0 0
    %1374 = vmatpush1.bf16.msra.mxu0 0
    %1375 = vmatprep.subr.bf16.mxu0 0
    %1376 = vmatpush1.bf16.msra.mxu0 0
    %1377 = vmatprep.subr.bf16.mxu0 0
    %1378 = vmatpush1.bf16.msra.mxu0 0
    %1379 = vmatprep.subr.bf16.mxu0 0
    %1380 = vmatpush1.bf16.msra.mxu0 0
    %1381 = vmatprep.subr.bf16.mxu0 0
    %1382 = vmatpush1.bf16.msra.mxu0 0
    %1383 = vmatprep.subr.bf16.mxu0 0
    %1384 = vmatpush1.bf16.msra.mxu0 0
    %1385 = vmatprep.subr.bf16.mxu0 0
    %1386 = vmatpush1.bf16.msra.mxu0 0
    %1387 = vmatprep.subr.bf16.mxu0 0
    %1388 = vmatpush1.bf16.msra.mxu0 0
    %1389 = vmatprep.subr.bf16.mxu0 0
    %1390 = vmatpush1.bf16.msra.mxu0 0
    %1391 = vmatprep.mubr.bf16.mxu0 0
    %1392 = vmatmul.mubr.bf16.gmra.mrb[0].mxu0 %v1354
    %v1393 = vpop.f32.mrb[0].mxu0
    %v1394 = vadd.f32 0.0, %v1393
    %v1395 = vpop.f32.mrb[0].mxu0
    %v1396 = vpop.f32.mrb[0].mxu0
    %v1397 = vpop.f32.mrb[0].mxu0
    %1398 = vdwg.mxu0
    %v1399 = vpack.c.bf16 %v1072, %v1072
    %v1400 = vpack.c.bf16 %v1118, %v1118
    %v1401 = vpack.c.bf16 %v1164, %v1164
    %v1402 = vpack.c.bf16 %v1210, %v1210
    %v1403 = vpack.c.bf16 %v1256, %v1256
    %v1404 = vpack.c.bf16 %v1302, %v1302
    %v1405 = vpack.c.bf16 %v1348, %v1348
    %v1406 = vpack.c.bf16 %v1394, %v1394
    %v1409 = vunpack.c.l.b16 %v1399
    %v1410 = vunpack.c.l.b16 %v1400
    %v1411 = vpack.c.b16 %v1410, %v1409
    %v1414 = vunpack.c.l.b16 %v1401
    %v1415 = vunpack.c.l.b16 %v1402
    %v1416 = vpack.c.b16 %v1415, %v1414
    %1417 = vrot.lane.b32.xlu0 %v1416, 8
    %v1418 = vpop.permute.xlu0 %1417
    %v1421 = vunpack.c.l.b16 %v1403
    %v1422 = vunpack.c.l.b16 %v1404
    %v1423 = vpack.c.b16 %v1422, %v1421
    %1424 = vrot.lane.b32.xlu0 %v1423, 16
    %v1425 = vpop.permute.xlu0 %1424
    %v1428 = vunpack.c.l.b16 %v1405
    %v1429 = vunpack.c.l.b16 %v1406
    %v1430 = vpack.c.b16 %v1429, %v1428
    %1431 = vrot.lane.b32.xlu0 %v1430, 24
    %v1432 = vpop.permute.xlu0 %1431
    %v1435 = vsel %vm565, %v1411, %v1418
    %v1437 = vsel %vm145, %v1435, %v1425
    %vm1438 = vcmask 195584
    %v1440 = vsel %vm1438, %v1437, %v1432
    %v1441 = vld [vmem:[#allocation8] sm:$0xf]
    %v1442 = vld [vmem:[#allocation8 + $0x4] sm:$0xf]
    %v1443 = vld [vmem:[#allocation8 + $0x8] sm:$0xf]
    %v1444 = vld [vmem:[#allocation8 + $0xc] sm:$0xf]
    %v1445 = vld [vmem:[%s11] sm:$0x1]
    %v1447 = vlaneseq
    %v1448 = vshrl.u32 %v1447, 7
    %v1449 = vsub.s32 0, %v1448
    %v1450 = vrot.slane %v1445, %v1449
    %v1456 = vunpack.c.l.b16 %v1441
    %v1457 = vunpack.c.l.b16 %v1442
    %v1458 = vunpack.c.l.b16 %v1443
    %v1459 = vunpack.c.l.b16 %v1444
    %v1460 = vpack.c.b16 %v1457, %v1456
    %v1461 = vpack.c.b16 %v1459, %v1458
    %v1464 = vsel %vm224, %v1440, 0
    %1466 = vmatprep.subr.bf16.mxu0 0
    %1467 = vmatpush1.bf16.msra.mxu0 %v1460
    %1468 = vmatprep.subr.bf16.mxu0 0
    %1469 = vmatpush1.bf16.msra.mxu0 %v1461
    %1470 = vmatprep.subr.bf16.mxu0 0
    %1471 = vmatpush1.bf16.msra.mxu0 0
    %1472 = vmatprep.subr.bf16.mxu0 0
    %1473 = vmatpush1.bf16.msra.mxu0 0
    %1474 = vmatprep.subr.bf16.mxu0 0
    %1475 = vmatpush1.bf16.msra.mxu0 0
    %1476 = vmatprep.subr.bf16.mxu0 0
    %1477 = vmatpush1.bf16.msra.mxu0 0
    %1478 = vmatprep.subr.bf16.mxu0 0
    %1479 = vmatpush1.bf16.msra.mxu0 0
    %1480 = vmatprep.subr.bf16.mxu0 0
    %1481 = vmatpush1.bf16.msra.mxu0 0
    %1482 = vmatprep.subr.bf16.mxu0 0
    %1483 = vmatpush1.bf16.msra.mxu0 0
    %1484 = vmatprep.subr.bf16.mxu0 0
    %1485 = vmatpush1.bf16.msra.mxu0 0
    %1486 = vmatprep.subr.bf16.mxu0 0
    %1487 = vmatpush1.bf16.msra.mxu0 0
    %1488 = vmatprep.subr.bf16.mxu0 0
    %1489 = vmatpush1.bf16.msra.mxu0 0
    %1490 = vmatprep.subr.bf16.mxu0 0
    %1491 = vmatpush1.bf16.msra.mxu0 0
    %1492 = vmatprep.subr.bf16.mxu0 0
    %1493 = vmatpush1.bf16.msra.mxu0 0
    %1494 = vmatprep.subr.bf16.mxu0 0
    %1495 = vmatpush1.bf16.msra.mxu0 0
    %1496 = vmatprep.subr.bf16.mxu0 0
    %1497 = vmatpush1.bf16.msra.mxu0 0
    %1498 = vmatprep.mubr.bf16.mxu0 0
    %1499 = vmatmul.mubr.bf16.gmra.mrb[0].mxu0 %v1464
    %v1500 = vpop.f32.mrb[0].mxu0
    %v1501 = vadd.f32 %v1450, %v1500
    %v1502 = vpop.f32.mrb[0].mxu0
    %v1503 = vpop.f32.mrb[0].mxu0
    %v1504 = vadd.f32 %v1450, %v1503
    %v1505 = vpop.f32.mrb[0].mxu0
    %1506 = vdwg.mxu0
    %v1509 = vunpack.c.l.s4 1966171168
    %v1510 = vunpack.c.0.s8 %v1509
    %v1511 = vlaneseq
    %v1512 = vshrl.u32 %v1511, 7
    %v1513 = vsub.s32 %v1510, %v1512
    %v1514 = vrot.slane %v194, %v1513
    %v1515 = vcombine.high %v1514, %v1514
    %v1517 = vunpack.c.l.s4 1966171168
    %v1518 = vunpack.c.0.s8 %v1517
    %v1519 = vlaneseq
    %v1520 = vshrl.u32 %v1519, 7
    %v1521 = vsub.s32 %v1518, %v1520
    %v1522 = vrot.slane %v1514, %v1521
    %v1524 = vunpack.c.l.s4 1966171168
    %v1525 = vunpack.c.0.s8 %v1524
    %v1526 = vlaneseq
    %v1527 = vshrl.u32 %v1526, 7
    %v1528 = vsub.s32 %v1525, %v1527
    %v1529 = vrot.slane %v1515, %v1528
    %v1530 = vlaneseq
    %v1531 = vshrl.u32 %v1530, 7
    %v1532 = vsub.s32 0, %v1531
    %v1533 = vrot.slane %v1522, %v1532
    %v1534 = vlaneseq
    %v1535 = vshrl.u32 %v1534, 7
    %v1536 = vsub.s32 0, %v1535
    %v1537 = vrot.slane %v1529, %v1536
    %v1540 = vmul.f32 %v1501, %v1533
    %v1541 = vmul.f32 %v1504, %v1537
    %v1542 = vadd.f32 %v311, %v1540
    %v1543 = vadd.f32 %v312, %v1541
    %v1546 = vunpack.c.l.s4 1966171168
    %v1547 = vunpack.c.0.s8 %v1546
    %v1548 = vlaneseq
    %v1549 = vshrl.u32 %v1548, 7
    %v1550 = vsub.s32 %v1547, %v1549
    %v1551 = vrot.slane %v196, %v1550
    %v1552 = vcombine.high %v1551, %v1551
    %v1554 = vunpack.c.l.s4 1966171168
    %v1555 = vunpack.c.0.s8 %v1554
    %v1556 = vlaneseq
    %v1557 = vshrl.u32 %v1556, 7
    %v1558 = vsub.s32 %v1555, %v1557
    %v1559 = vrot.slane %v1551, %v1558
    %v1561 = vunpack.c.l.s4 1966171168
    %v1562 = vunpack.c.0.s8 %v1561
    %v1563 = vlaneseq
    %v1564 = vshrl.u32 %v1563, 7
    %v1565 = vsub.s32 %v1562, %v1564
    %v1566 = vrot.slane %v1552, %v1565
    %v1567 = vsel %vm224, %v1542, 0.0
    %1568 = vadd.xlane.f32.xlu0 %v1567
    %v1569 = vpop.xlane.xlu0 %1568
    %v1570 = vsel %vm224, %v1543, 0.0
    %1571 = vadd.xlane.f32.xlu0 %v1570
    %v1572 = vpop.xlane.xlu0 %1571
    %v1573 = vmul.f32 %v1569, %v231
    %v1574 = vmul.f32 %v1572, %v231
    %v1575 = vsub.f32 %v1542, %v1573
    %v1576 = vsub.f32 %v1543, %v1574
    %v1577 = vmul.f32 %v1575, %v1575
    %v1578 = vmul.f32 %v1576, %v1576
    %v1579 = vsel %vm224, %v1577, 0.0
    %1580 = vadd.xlane.f32.xlu0 %v1579
    %v1581 = vpop.xlane.xlu0 %1580
    %v1582 = vsel %vm224, %v1578, 0.0
    %1583 = vadd.xlane.f32.xlu0 %v1582
    %v1584 = vpop.xlane.xlu0 %1583
    %v1585 = vmul.f32 %v1581, %v231
    %v1586 = vmul.f32 %v1584, %v231
    %v1587 = vadd.f32 %v1585, 1e-05
    %v1588 = vadd.f32 %v1586, 1e-05
    %v1589 = vrsqrt.pop %v1587
    %v1590 = vmul.f32 %v1587, %v1589
    %vm1591 = vcmp.eq.f32.partialorder %v1587, inf
    %v1592 = vsel %vm1591, %v1587, %v1590
    %vm1593 = vcmp.eq.f32.partialorder %v1587, 0.0
    %v1594 = vand.u32 %v1587, 2147483648
    %v1595 = vsel %vm1593, %v1594, %v1592
    %v1596 = vrsqrt.pop %v1588
    %v1597 = vmul.f32 %v1588, %v1596
    %vm1598 = vcmp.eq.f32.partialorder %v1588, inf
    %v1599 = vsel %vm1598, %v1588, %v1597
    %vm1600 = vcmp.eq.f32.partialorder %v1588, 0.0
    %v1601 = vand.u32 %v1588, 2147483648
    %v1602 = vsel %vm1600, %v1601, %v1599
    %v1603 = vrcp.pop %v1595
    %v1604 = vmul.f32 %v1575, %v1603
    %v1605 = vrcp.pop %v1602
    %v1606 = vmul.f32 %v1576, %v1605
    %v1607 = vlaneseq
    %v1608 = vshrl.u32 %v1607, 7
    %v1609 = vsub.s32 0, %v1608
    %v1610 = vrot.slane %v1559, %v1609
    %v1611 = vlaneseq
    %v1612 = vshrl.u32 %v1611, 7
    %v1613 = vsub.s32 0, %v1612
    %v1614 = vrot.slane %v1566, %v1613
    %v1617 = vmul.f32 %v1610, %v1604
    %v1618 = vmul.f32 %v1614, %v1606
    %v1621 = vunpack.c.l.s4 1966171168
    %v1622 = vunpack.c.0.s8 %v1621
    %v1623 = vlaneseq
    %v1624 = vshrl.u32 %v1623, 7
    %v1625 = vsub.s32 %v1622, %v1624
    %v1626 = vrot.slane %v198, %v1625
    %v1627 = vcombine.high %v1626, %v1626
    %v1629 = vunpack.c.l.s4 1966171168
    %v1630 = vunpack.c.0.s8 %v1629
    %v1631 = vlaneseq
    %v1632 = vshrl.u32 %v1631, 7
    %v1633 = vsub.s32 %v1630, %v1632
    %v1634 = vrot.slane %v1626, %v1633
    %v1636 = vunpack.c.l.s4 1966171168
    %v1637 = vunpack.c.0.s8 %v1636
    %v1638 = vlaneseq
    %v1639 = vshrl.u32 %v1638, 7
    %v1640 = vsub.s32 %v1637, %v1639
    %v1641 = vrot.slane %v1627, %v1640
    %v1642 = vlaneseq
    %v1643 = vshrl.u32 %v1642, 7
    %v1644 = vsub.s32 0, %v1643
    %v1645 = vrot.slane %v1634, %v1644
    %v1646 = vlaneseq
    %v1647 = vshrl.u32 %v1646, 7
    %v1648 = vsub.s32 0, %v1647
    %v1649 = vrot.slane %v1641, %v1648
    %v1652 = vadd.f32 %v1617, %v1645
    %v1653 = vadd.f32 %v1618, %v1649
    %v1654 = vpack.c.bf16 %v1653, %v1652
    %v1655 = vld [vmem:[#allocation10] sm:$0xf]
    %v1656 = vld [vmem:[#allocation10 + $0x4] sm:$0xf]
    %v1657 = vld [vmem:[#allocation10 + $0x8] sm:$0xf]
    %v1658 = vld [vmem:[#allocation10 + $0xc] sm:$0xf]
    %v1659 = vld [vmem:[%s13] sm:$0x1]
    %v1661 = vlaneseq
    %v1662 = vshrl.u32 %v1661, 7
    %v1663 = vsub.s32 0, %v1662
    %v1664 = vrot.slane %v1659, %v1663
    %v1670 = vunpack.c.l.b16 %v1655
    %v1671 = vunpack.c.l.b16 %v1656
    %v1672 = vunpack.c.l.b16 %v1657
    %v1673 = vunpack.c.l.b16 %v1658
    %v1674 = vpack.c.b16 %v1671, %v1670
    %v1675 = vpack.c.b16 %v1673, %v1672
    %v1679 = vsel %vm224, %v1654, 0
    %1681 = vmatprep.subr.bf16.mxu0 0
    %1682 = vmatpush1.bf16.msra.mxu0 %v1674
    %1683 = vmatprep.subr.bf16.mxu0 0
    %1684 = vmatpush1.bf16.msra.mxu0 %v1675
    %1685 = vmatprep.subr.bf16.mxu0 0
    %1686 = vmatpush1.bf16.msra.mxu0 0
    %1687 = vmatprep.subr.bf16.mxu0 0
    %1688 = vmatpush1.bf16.msra.mxu0 0
    %1689 = vmatprep.subr.bf16.mxu0 0
    %1690 = vmatpush1.bf16.msra.mxu0 0
    %1691 = vmatprep.subr.bf16.mxu0 0
    %1692 = vmatpush1.bf16.msra.mxu0 0
    %1693 = vmatprep.subr.bf16.mxu0 0
    %1694 = vmatpush1.bf16.msra.mxu0 0
    %1695 = vmatprep.subr.bf16.mxu0 0
    %1696 = vmatpush1.bf16.msra.mxu0 0
    %1697 = vmatprep.subr.bf16.mxu0 0
    %1698 = vmatpush1.bf16.msra.mxu0 0
    %1699 = vmatprep.subr.bf16.mxu0 0
    %1700 = vmatpush1.bf16.msra.mxu0 0
    %1701 = vmatprep.subr.bf16.mxu0 0
    %1702 = vmatpush1.bf16.msra.mxu0 0
    %1703 = vmatprep.subr.bf16.mxu0 0
    %1704 = vmatpush1.bf16.msra.mxu0 0
    %1705 = vmatprep.subr.bf16.mxu0 0
    %1706 = vmatpush1.bf16.msra.mxu0 0
    %1707 = vmatprep.subr.bf16.mxu0 0
    %1708 = vmatpush1.bf16.msra.mxu0 0
    %1709 = vmatprep.subr.bf16.mxu0 0
    %1710 = vmatpush1.bf16.msra.mxu0 0
    %1711 = vmatprep.subr.bf16.mxu0 0
    %1712 = vmatpush1.bf16.msra.mxu0 0
    %1713 = vmatprep.mubr.bf16.mxu0 0
    %1714 = vmatmul.mubr.bf16.gmra.mrb[0].mxu0 %v1679
    %v1715 = vpop.f32.mrb[0].mxu0
    %v1716 = vadd.f32 %v1664, %v1715
    %v1717 = vpop.f32.mrb[0].mxu0
    %v1718 = vpop.f32.mrb[0].mxu0
    %v1719 = vadd.f32 %v1664, %v1718
    %v1720 = vpop.f32.mrb[0].mxu0
    %1721 = vdwg.mxu0
    %v1722 = vmax.f32 %v1716, 0.0
    %v1723 = vmax.f32 %v1719, 0.0
    %v1724 = vpack.c.bf16 %v1723, %v1722
    %v1725 = vld [vmem:[%s14] sm:$0xf]
    %v1726 = vld [vmem:[%s14 + $0x4] sm:$0xf]
    %v1727 = vld [vmem:[%s14 + $0x8] sm:$0xf]
    %v1728 = vld [vmem:[%s14 + $0xc] sm:$0xf]
    %v1729 = vld [vmem:[%s14 + $0x10] sm:$0xf]
    %v1730 = vld [vmem:[%s14 + $0x14] sm:$0xf]
    %v1731 = vld [vmem:[%s14 + $0x18] sm:$0xf]
    %v1732 = vld [vmem:[%s14 + $0x1c] sm:$0xf]
    %v1733 = vld [vmem:[%s15] sm:$0x1]
    %v1735 = vlaneseq
    %v1736 = vshrl.u32 %v1735, 7
    %v1737 = vsub.s32 0, %v1736
    %v1738 = vrot.slane %v1733, %v1737
    %v1748 = vunpack.c.l.b16 %v1725
    %v1749 = vunpack.c.l.b16 %v1726
    %v1750 = vunpack.c.l.b16 %v1727
    %v1751 = vunpack.c.l.b16 %v1728
    %v1752 = vunpack.c.l.b16 %v1729
    %v1753 = vunpack.c.l.b16 %v1730
    %v1754 = vunpack.c.l.b16 %v1731
    %v1755 = vunpack.c.l.b16 %v1732
    %v1756 = vpack.c.b16 %v1749, %v1748
    %v1757 = vpack.c.b16 %v1751, %v1750
    %v1758 = vpack.c.b16 %v1753, %v1752
    %v1759 = vpack.c.b16 %v1755, %v1754
    %vm1764 = vcmask 523264
    %v1766 = vsel %vm1764, %v1724, 0
    %1768 = vmatprep.subr.bf16.mxu0 0
    %1769 = vmatpush1.bf16.msra.mxu0 %v1756
    %1770 = vmatprep.subr.bf16.mxu0 0
    %1771 = vmatpush1.bf16.msra.mxu0 %v1757
    %1772 = vmatprep.subr.bf16.mxu0 0
    %1773 = vmatpush1.bf16.msra.mxu0 %v1758
    %1774 = vmatprep.subr.bf16.mxu0 0
    %1775 = vmatpush1.bf16.msra.mxu0 %v1759
    %1776 = vmatprep.subr.bf16.mxu0 0
    %1777 = vmatpush1.bf16.msra.mxu0 0
    %1778 = vmatprep.subr.bf16.mxu0 0
    %1779 = vmatpush1.bf16.msra.mxu0 0
    %1780 = vmatprep.subr.bf16.mxu0 0
    %1781 = vmatpush1.bf16.msra.mxu0 0
    %1782 = vmatprep.subr.bf16.mxu0 0
    %1783 = vmatpush1.bf16.msra.mxu0 0
    %1784 = vmatprep.subr.bf16.mxu0 0
    %1785 = vmatpush1.bf16.msra.mxu0 0
    %1786 = vmatprep.subr.bf16.mxu0 0
    %1787 = vmatpush1.bf16.msra.mxu0 0
    %1788 = vmatprep.subr.bf16.mxu0 0
    %1789 = vmatpush1.bf16.msra.mxu0 0
    %1790 = vmatprep.subr.bf16.mxu0 0
    %1791 = vmatpush1.bf16.msra.mxu0 0
    %1792 = vmatprep.subr.bf16.mxu0 0
    %1793 = vmatpush1.bf16.msra.mxu0 0
    %1794 = vmatprep.subr.bf16.mxu0 0
    %1795 = vmatpush1.bf16.msra.mxu0 0
    %1796 = vmatprep.subr.bf16.mxu0 0
    %1797 = vmatpush1.bf16.msra.mxu0 0
    %1798 = vmatprep.subr.bf16.mxu0 0
    %1799 = vmatpush1.bf16.msra.mxu0 0
    %1800 = vmatprep.mubr.bf16.mxu0 0
    %1801 = vmatmul.mubr.bf16.gmra.mrb[0].mxu0 %v1766
    %v1802 = vpop.f32.mrb[0].mxu0
    %v1803 = vadd.f32 %v1738, %v1802
    %v1804 = vpop.f32.mrb[0].mxu0
    %v1805 = vpop.f32.mrb[0].mxu0
    %v1806 = vadd.f32 %v1738, %v1805
    %v1807 = vpop.f32.mrb[0].mxu0
    %1808 = vdwg.mxu0
    %v1811 = vunpack.c.l.s4 1966171168
    %v1812 = vunpack.c.0.s8 %v1811
    %v1813 = vlaneseq
    %v1814 = vshrl.u32 %v1813, 7
    %v1815 = vsub.s32 %v1812, %v1814
    %v1816 = vrot.slane %v200, %v1815
    %v1817 = vcombine.high %v1816, %v1816
    %v1819 = vunpack.c.l.s4 1966171168
    %v1820 = vunpack.c.0.s8 %v1819
    %v1821 = vlaneseq
    %v1822 = vshrl.u32 %v1821, 7
    %v1823 = vsub.s32 %v1820, %v1822
    %v1824 = vrot.slane %v1816, %v1823
    %v1826 = vunpack.c.l.s4 1966171168
    %v1827 = vunpack.c.0.s8 %v1826
    %v1828 = vlaneseq
    %v1829 = vshrl.u32 %v1828, 7
    %v1830 = vsub.s32 %v1827, %v1829
    %v1831 = vrot.slane %v1817, %v1830
    %v1832 = vlaneseq
    %v1833 = vshrl.u32 %v1832, 7
    %v1834 = vsub.s32 0, %v1833
    %v1835 = vrot.slane %v1824, %v1834
    %v1836 = vlaneseq
    %v1837 = vshrl.u32 %v1836, 7
    %v1838 = vsub.s32 0, %v1837
    %v1839 = vrot.slane %v1831, %v1838
    %v1842 = vmul.f32 %v1803, %v1835
    %v1843 = vmul.f32 %v1806, %v1839
    %v1844 = vadd.f32 %v1652, %v1842
    %v1845 = vadd.f32 %v1653, %v1843
    %s1846 = scalar_lea.vmem [#allocation5], 12
    %v1847 = vld [vmem:[%s1846] sm:$0x3]
    %s1848 = scalar_lea.vmem [#allocation5], 14
    %v1849 = vld [vmem:[%s1848] sm:$0x3]
    %s1850 = scalar_lea.vmem [#allocation5], 16
    %v1851 = vld [vmem:[%s1850] sm:$0x3]
    %s1852 = scalar_lea.vmem [#allocation5], 18
    %v1853 = vld [vmem:[%s1852] sm:$0x3]
    %s1854 = scalar_lea.vmem [#allocation5], 20
    %v1855 = vld [vmem:[%s1854] sm:$0x3]
    %s1856 = scalar_lea.vmem [#allocation5], 22
    %v1857 = vld [vmem:[%s1856] sm:$0x3]
    %v1860 = vunpack.c.l.s4 1966171168
    %v1861 = vunpack.c.0.s8 %v1860
    %v1862 = vlaneseq
    %v1863 = vshrl.u32 %v1862, 7
    %v1864 = vsub.s32 %v1861, %v1863
    %v1865 = vrot.slane %v1847, %v1864
    %v1866 = vcombine.high %v1865, %v1865
    %v1868 = vunpack.c.l.s4 1966171168
    %v1869 = vunpack.c.0.s8 %v1868
    %v1870 = vlaneseq
    %v1871 = vshrl.u32 %v1870, 7
    %v1872 = vsub.s32 %v1869, %v1871
    %v1873 = vrot.slane %v1865, %v1872
    %v1875 = vunpack.c.l.s4 1966171168
    %v1876 = vunpack.c.0.s8 %v1875
    %v1877 = vlaneseq
    %v1878 = vshrl.u32 %v1877, 7
    %v1879 = vsub.s32 %v1876, %v1878
    %v1880 = vrot.slane %v1866, %v1879
    %v1881 = vsel %vm224, %v1844, 0.0
    %1882 = vadd.xlane.f32.xlu0 %v1881
    %v1883 = vpop.xlane.xlu0 %1882
    %v1884 = vsel %vm224, %v1845, 0.0
    %1885 = vadd.xlane.f32.xlu0 %v1884
    %v1886 = vpop.xlane.xlu0 %1885
    %v1887 = vmul.f32 %v1883, %v231
    %v1888 = vmul.f32 %v1886, %v231
    %v1889 = vsub.f32 %v1844, %v1887
    %v1890 = vsub.f32 %v1845, %v1888
    %v1891 = vmul.f32 %v1889, %v1889
    %v1892 = vmul.f32 %v1890, %v1890
    %v1893 = vsel %vm224, %v1891, 0.0
    %1894 = vadd.xlane.f32.xlu0 %v1893
    %v1895 = vpop.xlane.xlu0 %1894
    %v1896 = vsel %vm224, %v1892, 0.0
    %1897 = vadd.xlane.f32.xlu0 %v1896
    %v1898 = vpop.xlane.xlu0 %1897
    %v1899 = vmul.f32 %v1895, %v231
    %v1900 = vmul.f32 %v1898, %v231
    %v1901 = vadd.f32 %v1899, 1e-05
    %v1902 = vadd.f32 %v1900, 1e-05
    %v1903 = vrsqrt.pop %v1901
    %v1904 = vmul.f32 %v1901, %v1903
    %vm1905 = vcmp.eq.f32.partialorder %v1901, inf
    %v1906 = vsel %vm1905, %v1901, %v1904
    %vm1907 = vcmp.eq.f32.partialorder %v1901, 0.0
    %v1908 = vand.u32 %v1901, 2147483648
    %v1909 = vsel %vm1907, %v1908, %v1906
    %v1910 = vrsqrt.pop %v1902
    %v1911 = vmul.f32 %v1902, %v1910
    %vm1912 = vcmp.eq.f32.partialorder %v1902, inf
    %v1913 = vsel %vm1912, %v1902, %v1911
    %vm1914 = vcmp.eq.f32.partialorder %v1902, 0.0
    %v1915 = vand.u32 %v1902, 2147483648
    %v1916 = vsel %vm1914, %v1915, %v1913
    %v1917 = vrcp.pop %v1909
    %v1918 = vmul.f32 %v1889, %v1917
    %v1919 = vrcp.pop %v1916
    %v1920 = vmul.f32 %v1890, %v1919
    %v1921 = vlaneseq
    %v1922 = vshrl.u32 %v1921, 7
    %v1923 = vsub.s32 0, %v1922
    %v1924 = vrot.slane %v1873, %v1923
    %v1925 = vlaneseq
    %v1926 = vshrl.u32 %v1925, 7
    %v1927 = vsub.s32 0, %v1926
    %v1928 = vrot.slane %v1880, %v1927
    %v1931 = vmul.f32 %v1924, %v1918
    %v1932 = vmul.f32 %v1928, %v1920
    %v1935 = vunpack.c.l.s4 1966171168
    %v1936 = vunpack.c.0.s8 %v1935
    %v1937 = vlaneseq
    %v1938 = vshrl.u32 %v1937, 7
    %v1939 = vsub.s32 %v1936, %v1938
    %v1940 = vrot.slane %v1849, %v1939
    %v1941 = vcombine.high %v1940, %v1940
    %v1943 = vunpack.c.l.s4 1966171168
    %v1944 = vunpack.c.0.s8 %v1943
    %v1945 = vlaneseq
    %v1946 = vshrl.u32 %v1945, 7
    %v1947 = vsub.s32 %v1944, %v1946
    %v1948 = vrot.slane %v1940, %v1947
    %v1950 = vunpack.c.l.s4 1966171168
    %v1951 = vunpack.c.0.s8 %v1950
    %v1952 = vlaneseq
    %v1953 = vshrl.u32 %v1952, 7
    %v1954 = vsub.s32 %v1951, %v1953
    %v1955 = vrot.slane %v1941, %v1954
    %v1956 = vlaneseq
    %v1957 = vshrl.u32 %v1956, 7
    %v1958 = vsub.s32 0, %v1957
    %v1959 = vrot.slane %v1948, %v1958
    %v1960 = vlaneseq
    %v1961 = vshrl.u32 %v1960, 7
    %v1962 = vsub.s32 0, %v1961
    %v1963 = vrot.slane %v1955, %v1962
    %v1966 = vadd.f32 %v1931, %v1959
    %v1967 = vadd.f32 %v1932, %v1963
    %v1968 = vpack.c.bf16 %v1967, %v1966
    %s1969 = scalar_lea.vmem %s4, 16
    %v1970 = vld [vmem:[%s1969] sm:$0xf]
    %v1971 = vld [vmem:[%s1969 + $0x4] sm:$0xf]
    %v1972 = vld [vmem:[%s1969 + $0x8] sm:$0xf]
    %v1973 = vld [vmem:[%s1969 + $0xc] sm:$0xf]
    %s1974 = scalar_lea.vmem %s5, 1
    %v1975 = vld [vmem:[%s1974] sm:$0x1]
    %v1977 = vlaneseq
    %v1978 = vshrl.u32 %v1977, 7
    %v1979 = vsub.s32 0, %v1978
    %v1980 = vrot.slane %v1975, %v1979
    %v1986 = vunpack.c.l.b16 %v1970
    %v1987 = vunpack.c.l.b16 %v1971
    %v1988 = vunpack.c.l.b16 %v1972
    %v1989 = vunpack.c.l.b16 %v1973
    %v1990 = vpack.c.b16 %v1987, %v1986
    %v1991 = vpack.c.b16 %v1989, %v1988
    %v1995 = vsel %vm224, %v1968, 0
    %1997 = vmatprep.subr.bf16.mxu0 0
    %1998 = vmatpush1.bf16.msra.mxu0 %v1990
    %1999 = vmatprep.subr.bf16.mxu0 0
    %2000 = vmatpush1.bf16.msra.mxu0 %v1991
    %2001 = vmatprep.subr.bf16.mxu0 0
    %2002 = vmatpush1.bf16.msra.mxu0 0
    %2003 = vmatprep.subr.bf16.mxu0 0
    %2004 = vmatpush1.bf16.msra.mxu0 0
    %2005 = vmatprep.subr.bf16.mxu0 0
    %2006 = vmatpush1.bf16.msra.mxu0 0
    %2007 = vmatprep.subr.bf16.mxu0 0
    %2008 = vmatpush1.bf16.msra.mxu0 0
    %2009 = vmatprep.subr.bf16.mxu0 0
    %2010 = vmatpush1.bf16.msra.mxu0 0
    %2011 = vmatprep.subr.bf16.mxu0 0
    %2012 = vmatpush1.bf16.msra.mxu0 0
    %2013 = vmatprep.subr.bf16.mxu0 0
    %2014 = vmatpush1.bf16.msra.mxu0 0
    %2015 = vmatprep.subr.bf16.mxu0 0
    %2016 = vmatpush1.bf16.msra.mxu0 0
    %2017 = vmatprep.subr.bf16.mxu0 0
    %2018 = vmatpush1.bf16.msra.mxu0 0
    %2019 = vmatprep.subr.bf16.mxu0 0
    %2020 = vmatpush1.bf16.msra.mxu0 0
    %2021 = vmatprep.subr.bf16.mxu0 0
    %2022 = vmatpush1.bf16.msra.mxu0 0
    %2023 = vmatprep.subr.bf16.mxu0 0
    %2024 = vmatpush1.bf16.msra.mxu0 0
    %2025 = vmatprep.subr.bf16.mxu0 0
    %2026 = vmatpush1.bf16.msra.mxu0 0
    %2027 = vmatprep.subr.bf16.mxu0 0
    %2028 = vmatpush1.bf16.msra.mxu0 0
    %2029 = vmatprep.mubr.bf16.mxu0 0
    %2030 = vmatmul.mubr.bf16.gmra.mrb[0].mxu0 %v1995
    %v2031 = vpop.f32.mrb[0].mxu0
    %v2032 = vadd.f32 %v1980, %v2031
    %v2033 = vpop.f32.mrb[0].mxu0
    %v2034 = vpop.f32.mrb[0].mxu0
    %v2035 = vadd.f32 %v1980, %v2034
    %v2036 = vpop.f32.mrb[0].mxu0
    %2037 = vdwg.mxu0
    %s2038 = scalar_lea.vmem %s6, 16
    %v2039 = vld [vmem:[%s2038] sm:$0xf]
    %v2040 = vld [vmem:[%s2038 + $0x4] sm:$0xf]
    %v2041 = vld [vmem:[%s2038 + $0x8] sm:$0xf]
    %v2042 = vld [vmem:[%s2038 + $0xc] sm:$0xf]
    %s2043 = scalar_lea.vmem %s7, 1
    %v2044 = vld [vmem:[%s2043] sm:$0x1]
    %v2046 = vlaneseq
    %v2047 = vshrl.u32 %v2046, 7
    %v2048 = vsub.s32 0, %v2047
    %v2049 = vrot.slane %v2044, %v2048
    %v2055 = vunpack.c.l.b16 %v2039
    %v2056 = vunpack.c.l.b16 %v2040
    %v2057 = vunpack.c.l.b16 %v2041
    %v2058 = vunpack.c.l.b16 %v2042
    %v2059 = vpack.c.b16 %v2056, %v2055
    %v2060 = vpack.c.b16 %v2058, %v2057
    %2063 = vmatprep.subr.bf16.mxu0 0
    %2064 = vmatpush1.bf16.msra.mxu0 %v2059
    %2065 = vmatprep.subr.bf16.mxu0 0
    %2066 = vmatpush1.bf16.msra.mxu0 %v2060
    %2067 = vmatprep.subr.bf16.mxu0 0
    %2068 = vmatpush1.bf16.msra.mxu0 0
    %2069 = vmatprep.subr.bf16.mxu0 0
    %2070 = vmatpush1.bf16.msra.mxu0 0
    %2071 = vmatprep.subr.bf16.mxu0 0
    %2072 = vmatpush1.bf16.msra.mxu0 0
    %2073 = vmatprep.subr.bf16.mxu0 0
    %2074 = vmatpush1.bf16.msra.mxu0 0
    %2075 = vmatprep.subr.bf16.mxu0 0
    %2076 = vmatpush1.bf16.msra.mxu0 0
    %2077 = vmatprep.subr.bf16.mxu0 0
    %2078 = vmatpush1.bf16.msra.mxu0 0
    %2079 = vmatprep.subr.bf16.mxu0 0
    %2080 = vmatpush1.bf16.msra.mxu0 0
    %2081 = vmatprep.subr.bf16.mxu0 0
    %2082 = vmatpush1.bf16.msra.mxu0 0
    %2083 = vmatprep.subr.bf16.mxu0 0
    %2084 = vmatpush1.bf16.msra.mxu0 0
    %2085 = vmatprep.subr.bf16.mxu0 0
    %2086 = vmatpush1.bf16.msra.mxu0 0
    %2087 = vmatprep.subr.bf16.mxu0 0
    %2088 = vmatpush1.bf16.msra.mxu0 0
    %2089 = vmatprep.subr.bf16.mxu0 0
    %2090 = vmatpush1.bf16.msra.mxu0 0
    %2091 = vmatprep.subr.bf16.mxu0 0
    %2092 = vmatpush1.bf16.msra.mxu0 0
    %2093 = vmatprep.subr.bf16.mxu0 0
    %2094 = vmatpush1.bf16.msra.mxu0 0
    %2095 = vmatprep.mubr.bf16.mxu0 0
    %2096 = vmatmul.mubr.bf16.gmra.mrb[0].mxu0 %v1995
    %v2097 = vpop.f32.mrb[0].mxu0
    %v2098 = vadd.f32 %v2049, %v2097
    %v2099 = vpop.f32.mrb[0].mxu0
    %v2100 = vpop.f32.mrb[0].mxu0
    %v2101 = vadd.f32 %v2049, %v2100
    %v2102 = vpop.f32.mrb[0].mxu0
    %2103 = vdwg.mxu0
    %s2104 = scalar_lea.vmem %s8, 16
    %v2105 = vld [vmem:[%s2104] sm:$0xf]
    %v2106 = vld [vmem:[%s2104 + $0x4] sm:$0xf]
    %v2107 = vld [vmem:[%s2104 + $0x8] sm:$0xf]
    %v2108 = vld [vmem:[%s2104 + $0xc] sm:$0xf]
    %s2109 = scalar_lea.vmem %s9, 1
    %v2110 = vld [vmem:[%s2109] sm:$0x1]
    %v2112 = vlaneseq
    %v2113 = vshrl.u32 %v2112, 7
    %v2114 = vsub.s32 0, %v2113
    %v2115 = vrot.slane %v2110, %v2114
    %v2121 = vunpack.c.l.b16 %v2105
    %v2122 = vunpack.c.l.b16 %v2106
    %v2123 = vunpack.c.l.b16 %v2107
    %v2124 = vunpack.c.l.b16 %v2108
    %v2125 = vpack.c.b16 %v2122, %v2121
    %v2126 = vpack.c.b16 %v2124, %v2123
    %2129 = vmatprep.subr.bf16.mxu0 0
    %2130 = vmatpush1.bf16.msra.mxu0 %v2125
    %2131 = vmatprep.subr.bf16.mxu0 0
    %2132 = vmatpush1.bf16.msra.mxu0 %v2126
    %2133 = vmatprep.subr.bf16.mxu0 0
    %2134 = vmatpush1.bf16.msra.mxu0 0
    %2135 = vmatprep.subr.bf16.mxu0 0
    %2136 = vmatpush1.bf16.msra.mxu0 0
    %2137 = vmatprep.subr.bf16.mxu0 0
    %2138 = vmatpush1.bf16.msra.mxu0 0
    %2139 = vmatprep.subr.bf16.mxu0 0
    %2140 = vmatpush1.bf16.msra.mxu0 0
    %2141 = vmatprep.subr.bf16.mxu0 0
    %2142 = vmatpush1.bf16.msra.mxu0 0
    %2143 = vmatprep.subr.bf16.mxu0 0
    %2144 = vmatpush1.bf16.msra.mxu0 0
    %2145 = vmatprep.subr.bf16.mxu0 0
    %2146 = vmatpush1.bf16.msra.mxu0 0
    %2147 = vmatprep.subr.bf16.mxu0 0
    %2148 = vmatpush1.bf16.msra.mxu0 0
    %2149 = vmatprep.subr.bf16.mxu0 0
    %2150 = vmatpush1.bf16.msra.mxu0 0
    %2151 = vmatprep.subr.bf16.mxu0 0
    %2152 = vmatpush1.bf16.msra.mxu0 0
    %2153 = vmatprep.subr.bf16.mxu0 0
    %2154 = vmatpush1.bf16.msra.mxu0 0
    %2155 = vmatprep.subr.bf16.mxu0 0
    %2156 = vmatpush1.bf16.msra.mxu0 0
    %2157 = vmatprep.subr.bf16.mxu0 0
    %2158 = vmatpush1.bf16.msra.mxu0 0
    %2159 = vmatprep.subr.bf16.mxu0 0
    %2160 = vmatpush1.bf16.msra.mxu0 0
    %2161 = vmatprep.mubr.bf16.mxu0 0
    %2162 = vmatmul.mubr.bf16.gmra.mrb[0].mxu0 %v1995
    %v2163 = vpop.f32.mrb[0].mxu0
    %v2164 = vadd.f32 %v2115, %v2163
    %v2165 = vpop.f32.mrb[0].mxu0
    %v2166 = vpop.f32.mrb[0].mxu0
    %v2167 = vadd.f32 %v2115, %v2166
    %v2168 = vpop.f32.mrb[0].mxu0
    %2169 = vdwg.mxu0
    %v2170 = vmul.f32 %v2032, 0.35355338
    %v2171 = vmul.f32 %v2035, 0.35355338
    %v2172 = vpack.c.bf16 %v2171, %v2170
    %v2173 = vpack.c.bf16 %v2101, %v2098
    %v2174 = vpack.c.bf16 %v2167, %v2164
    %v2176 = vunpack.c.l.b16 %v2172
    %v2177 = vunpack.c.h.b16 %v2172
    %v2178 = vpack.c.b16 %v2176, %v2176
    %v2179 = vpack.c.b16 %v2177, %v2177
    %2180 = vrot.lane.b32.xlu0 %v2178, 120
    %v2181 = vpop.permute.xlu0 %2180
    %2182 = vrot.lane.b32.xlu0 %v2179, 120
    %v2183 = vpop.permute.xlu0 %2182
    %2184 = vrot.lane.b32.xlu0 %v2178, 112
    %v2185 = vpop.permute.xlu0 %2184
    %2186 = vrot.lane.b32.xlu0 %v2179, 112
    %v2187 = vpop.permute.xlu0 %2186
    %2188 = vrot.lane.b32.xlu0 %v2178, 104
    %v2189 = vpop.permute.xlu0 %2188
    %2190 = vrot.lane.b32.xlu0 %v2179, 104
    %v2191 = vpop.permute.xlu0 %2190
    %v2193 = vunpack.c.l.b16 %v2173
    %v2194 = vunpack.c.h.b16 %v2173
    %v2195 = vpack.c.b16 %v2193, %v2193
    %v2196 = vpack.c.b16 %v2194, %v2194
    %2197 = vrot.lane.b32.xlu0 %v2195, 120
    %v2198 = vpop.permute.xlu0 %2197
    %2199 = vrot.lane.b32.xlu0 %v2196, 120
    %v2200 = vpop.permute.xlu0 %2199
    %2201 = vrot.lane.b32.xlu0 %v2195, 112
    %v2202 = vpop.permute.xlu0 %2201
    %2203 = vrot.lane.b32.xlu0 %v2196, 112
    %v2204 = vpop.permute.xlu0 %2203
    %2205 = vrot.lane.b32.xlu0 %v2195, 104
    %v2206 = vpop.permute.xlu0 %2205
    %2207 = vrot.lane.b32.xlu0 %v2196, 104
    %v2208 = vpop.permute.xlu0 %2207
    %v2210 = vunpack.c.l.b16 %v2174
    %v2211 = vunpack.c.h.b16 %v2174
    %v2212 = vpack.c.b16 %v2210, %v2210
    %v2213 = vpack.c.b16 %v2211, %v2211
    %2214 = vrot.lane.b32.xlu0 %v2212, 120
    %v2215 = vpop.permute.xlu0 %2214
    %2216 = vrot.lane.b32.xlu0 %v2213, 120
    %v2217 = vpop.permute.xlu0 %2216
    %2218 = vrot.lane.b32.xlu0 %v2212, 112
    %v2219 = vpop.permute.xlu0 %2218
    %2220 = vrot.lane.b32.xlu0 %v2213, 112
    %v2221 = vpop.permute.xlu0 %2220
    %2222 = vrot.lane.b32.xlu0 %v2212, 104
    %v2223 = vpop.permute.xlu0 %2222
    %2224 = vrot.lane.b32.xlu0 %v2213, 104
    %v2225 = vpop.permute.xlu0 %2224
    %v2227 = vsel %vm565, %v2178, 0
    %v2230 = vsel %vm565, %v2195, 0
    %2232 = vmatprep.subr.bf16.mxu0 0
    %2233 = vmatpush1.bf16.xpose.msra.mxu0 %v2230
    %2234 = vmatprep.subr.bf16.mxu0 0
    %2235 = vmatpush1.bf16.xpose.msra.mxu0 0
    %2236 = vmatprep.subr.bf16.mxu0 0
    %2237 = vmatpush1.bf16.xpose.msra.mxu0 0
    %2238 = vmatprep.subr.bf16.mxu0 0
    %2239 = vmatpush1.bf16.xpose.msra.mxu0 0
    %2240 = vmatprep.subr.bf16.mxu0 0
    %2241 = vmatpush1.bf16.xpose.msra.mxu0 0
    %2242 = vmatprep.subr.bf16.mxu0 0
    %2243 = vmatpush1.bf16.xpose.msra.mxu0 0
    %2244 = vmatprep.subr.bf16.mxu0 0
    %2245 = vmatpush1.bf16.xpose.msra.mxu0 0
    %2246 = vmatprep.subr.bf16.mxu0 0
    %2247 = vmatpush1.bf16.xpose.msra.mxu0 0
    %2248 = vmatprep.subr.bf16.mxu0 0
    %2249 = vmatpush1.bf16.xpose.msra.mxu0 0
    %2250 = vmatprep.subr.bf16.mxu0 0
    %2251 = vmatpush1.bf16.xpose.msra.mxu0 0
    %2252 = vmatprep.subr.bf16.mxu0 0
    %2253 = vmatpush1.bf16.xpose.msra.mxu0 0
    %2254 = vmatprep.subr.bf16.mxu0 0
    %2255 = vmatpush1.bf16.xpose.msra.mxu0 0
    %2256 = vmatprep.subr.bf16.mxu0 0
    %2257 = vmatpush1.bf16.xpose.msra.mxu0 0
    %2258 = vmatprep.subr.bf16.mxu0 0
    %2259 = vmatpush1.bf16.xpose.msra.mxu0 0
    %2260 = vmatprep.subr.bf16.mxu0 0
    %2261 = vmatpush1.bf16.xpose.msra.mxu0 0
    %2262 = vmatprep.subr.bf16.mxu0 0
    %2263 = vmatpush1.bf16.xpose.msra.mxu0 0
    %2264 = vmatprep.mubr.bf16.mxu0 0
    %2265 = vmatmul.mubr.bf16.gmra.mrb[0].mxu0 %v2227
    %v2266 = vpop.f32.mrb[0].mxu0
    %v2267 = vadd.f32 0.0, %v2266
    %v2268 = vpop.f32.mrb[0].mxu0
    %v2269 = vpop.f32.mrb[0].mxu0
    %v2270 = vpop.f32.mrb[0].mxu0
    %2271 = vdwg.mxu0
    %v2273 = vsel %vm565, %v2179, 0
    %v2276 = vsel %vm565, %v2196, 0
    %2278 = vmatprep.subr.bf16.mxu0 0
    %2279 = vmatpush1.bf16.xpose.msra.mxu0 %v2276
    %2280 = vmatprep.subr.bf16.mxu0 0
    %2281 = vmatpush1.bf16.xpose.msra.mxu0 0
    %2282 = vmatprep.subr.bf16.mxu0 0
    %2283 = vmatpush1.bf16.xpose.msra.mxu0 0
    %2284 = vmatprep.subr.bf16.mxu0 0
    %2285 = vmatpush1.bf16.xpose.msra.mxu0 0
    %2286 = vmatprep.subr.bf16.mxu0 0
    %2287 = vmatpush1.bf16.xpose.msra.mxu0 0
    %2288 = vmatprep.subr.bf16.mxu0 0
    %2289 = vmatpush1.bf16.xpose.msra.mxu0 0
    %2290 = vmatprep.subr.bf16.mxu0 0
    %2291 = vmatpush1.bf16.xpose.msra.mxu0 0
    %2292 = vmatprep.subr.bf16.mxu0 0
    %2293 = vmatpush1.bf16.xpose.msra.mxu0 0
    %2294 = vmatprep.subr.bf16.mxu0 0
    %2295 = vmatpush1.bf16.xpose.msra.mxu0 0
    %2296 = vmatprep.subr.bf16.mxu0 0
    %2297 = vmatpush1.bf16.xpose.msra.mxu0 0
    %2298 = vmatprep.subr.bf16.mxu0 0
    %2299 = vmatpush1.bf16.xpose.msra.mxu0 0
    %2300 = vmatprep.subr.bf16.mxu0 0
    %2301 = vmatpush1.bf16.xpose.msra.mxu0 0
    %2302 = vmatprep.subr.bf16.mxu0 0
    %2303 = vmatpush1.bf16.xpose.msra.mxu0 0
    %2304 = vmatprep.subr.bf16.mxu0 0
    %2305 = vmatpush1.bf16.xpose.msra.mxu0 0
    %2306 = vmatprep.subr.bf16.mxu0 0
    %2307 = vmatpush1.bf16.xpose.msra.mxu0 0
    %2308 = vmatprep.subr.bf16.mxu0 0
    %2309 = vmatpush1.bf16.xpose.msra.mxu0 0
    %2310 = vmatprep.mubr.bf16.mxu0 0
    %2311 = vmatmul.mubr.bf16.gmra.mrb[0].mxu0 %v2273
    %v2312 = vpop.f32.mrb[0].mxu0
    %v2313 = vadd.f32 0.0, %v2312
    %v2314 = vpop.f32.mrb[0].mxu0
    %v2315 = vpop.f32.mrb[0].mxu0
    %v2316 = vpop.f32.mrb[0].mxu0
    %2317 = vdwg.mxu0
    %v2319 = vsel %vm565, %v2181, 0
    %v2322 = vsel %vm565, %v2198, 0
    %2324 = vmatprep.subr.bf16.mxu0 0
    %2325 = vmatpush1.bf16.xpose.msra.mxu0 %v2322
    %2326 = vmatprep.subr.bf16.mxu0 0
    %2327 = vmatpush1.bf16.xpose.msra.mxu0 0
    %2328 = vmatprep.subr.bf16.mxu0 0
    %2329 = vmatpush1.bf16.xpose.msra.mxu0 0
    %2330 = vmatprep.subr.bf16.mxu0 0
    %2331 = vmatpush1.bf16.xpose.msra.mxu0 0
    %2332 = vmatprep.subr.bf16.mxu0 0
    %2333 = vmatpush1.bf16.xpose.msra.mxu0 0
    %2334 = vmatprep.subr.bf16.mxu0 0
    %2335 = vmatpush1.bf16.xpose.msra.mxu0 0
    %2336 = vmatprep.subr.bf16.mxu0 0
    %2337 = vmatpush1.bf16.xpose.msra.mxu0 0
    %2338 = vmatprep.subr.bf16.mxu0 0
    %2339 = vmatpush1.bf16.xpose.msra.mxu0 0
    %2340 = vmatprep.subr.bf16.mxu0 0
    %2341 = vmatpush1.bf16.xpose.msra.mxu0 0
    %2342 = vmatprep.subr.bf16.mxu0 0
    %2343 = vmatpush1.bf16.xpose.msra.mxu0 0
    %2344 = vmatprep.subr.bf16.mxu0 0
    %2345 = vmatpush1.bf16.xpose.msra.mxu0 0
    %2346 = vmatprep.subr.bf16.mxu0 0
    %2347 = vmatpush1.bf16.xpose.msra.mxu0 0
    %2348 = vmatprep.subr.bf16.mxu0 0
    %2349 = vmatpush1.bf16.xpose.msra.mxu0 0
    %2350 = vmatprep.subr.bf16.mxu0 0
    %2351 = vmatpush1.bf16.xpose.msra.mxu0 0
    %2352 = vmatprep.subr.bf16.mxu0 0
    %2353 = vmatpush1.bf16.xpose.msra.mxu0 0
    %2354 = vmatprep.subr.bf16.mxu0 0
    %2355 = vmatpush1.bf16.xpose.msra.mxu0 0
    %2356 = vmatprep.mubr.bf16.mxu0 0
    %2357 = vmatmul.mubr.bf16.gmra.mrb[0].mxu0 %v2319
    %v2358 = vpop.f32.mrb[0].mxu0
    %v2359 = vadd.f32 0.0, %v2358
    %v2360 = vpop.f32.mrb[0].mxu0
    %v2361 = vpop.f32.mrb[0].mxu0
    %v2362 = vpop.f32.mrb[0].mxu0
    %2363 = vdwg.mxu0
    %v2365 = vsel %vm565, %v2183, 0
    %v2368 = vsel %vm565, %v2200, 0
    %2370 = vmatprep.subr.bf16.mxu0 0
    %2371 = vmatpush1.bf16.xpose.msra.mxu0 %v2368
    %2372 = vmatprep.subr.bf16.mxu0 0
    %2373 = vmatpush1.bf16.xpose.msra.mxu0 0
    %2374 = vmatprep.subr.bf16.mxu0 0
    %2375 = vmatpush1.bf16.xpose.msra.mxu0 0
    %2376 = vmatprep.subr.bf16.mxu0 0
    %2377 = vmatpush1.bf16.xpose.msra.mxu0 0
    %2378 = vmatprep.subr.bf16.mxu0 0
    %2379 = vmatpush1.bf16.xpose.msra.mxu0 0
    %2380 = vmatprep.subr.bf16.mxu0 0
    %2381 = vmatpush1.bf16.xpose.msra.mxu0 0
    %2382 = vmatprep.subr.bf16.mxu0 0
    %2383 = vmatpush1.bf16.xpose.msra.mxu0 0
    %2384 = vmatprep.subr.bf16.mxu0 0
    %2385 = vmatpush1.bf16.xpose.msra.mxu0 0
    %2386 = vmatprep.subr.bf16.mxu0 0
    %2387 = vmatpush1.bf16.xpose.msra.mxu0 0
    %2388 = vmatprep.subr.bf16.mxu0 0
    %2389 = vmatpush1.bf16.xpose.msra.mxu0 0
    %2390 = vmatprep.subr.bf16.mxu0 0
    %2391 = vmatpush1.bf16.xpose.msra.mxu0 0
    %2392 = vmatprep.subr.bf16.mxu0 0
    %2393 = vmatpush1.bf16.xpose.msra.mxu0 0
    %2394 = vmatprep.subr.bf16.mxu0 0
    %2395 = vmatpush1.bf16.xpose.msra.mxu0 0
    %2396 = vmatprep.subr.bf16.mxu0 0
    %2397 = vmatpush1.bf16.xpose.msra.mxu0 0
    %2398 = vmatprep.subr.bf16.mxu0 0
    %2399 = vmatpush1.bf16.xpose.msra.mxu0 0
    %2400 = vmatprep.subr.bf16.mxu0 0
    %2401 = vmatpush1.bf16.xpose.msra.mxu0 0
    %2402 = vmatprep.mubr.bf16.mxu0 0
    %2403 = vmatmul.mubr.bf16.gmra.mrb[0].mxu0 %v2365
    %v2404 = vpop.f32.mrb[0].mxu0
    %v2405 = vadd.f32 0.0, %v2404
    %v2406 = vpop.f32.mrb[0].mxu0
    %v2407 = vpop.f32.mrb[0].mxu0
    %v2408 = vpop.f32.mrb[0].mxu0
    %2409 = vdwg.mxu0
    %v2411 = vsel %vm565, %v2185, 0
    %v2414 = vsel %vm565, %v2202, 0
    %2416 = vmatprep.subr.bf16.mxu0 0
    %2417 = vmatpush1.bf16.xpose.msra.mxu0 %v2414
    %2418 = vmatprep.subr.bf16.mxu0 0
    %2419 = vmatpush1.bf16.xpose.msra.mxu0 0
    %2420 = vmatprep.subr.bf16.mxu0 0
    %2421 = vmatpush1.bf16.xpose.msra.mxu0 0
    %2422 = vmatprep.subr.bf16.mxu0 0
    %2423 = vmatpush1.bf16.xpose.msra.mxu0 0
    %2424 = vmatprep.subr.bf16.mxu0 0
    %2425 = vmatpush1.bf16.xpose.msra.mxu0 0
    %2426 = vmatprep.subr.bf16.mxu0 0
    %2427 = vmatpush1.bf16.xpose.msra.mxu0 0
    %2428 = vmatprep.subr.bf16.mxu0 0
    %2429 = vmatpush1.bf16.xpose.msra.mxu0 0
    %2430 = vmatprep.subr.bf16.mxu0 0
    %2431 = vmatpush1.bf16.xpose.msra.mxu0 0
    %2432 = vmatprep.subr.bf16.mxu0 0
    %2433 = vmatpush1.bf16.xpose.msra.mxu0 0
    %2434 = vmatprep.subr.bf16.mxu0 0
    %2435 = vmatpush1.bf16.xpose.msra.mxu0 0
    %2436 = vmatprep.subr.bf16.mxu0 0
    %2437 = vmatpush1.bf16.xpose.msra.mxu0 0
    %2438 = vmatprep.subr.bf16.mxu0 0
    %2439 = vmatpush1.bf16.xpose.msra.mxu0 0
    %2440 = vmatprep.subr.bf16.mxu0 0
    %2441 = vmatpush1.bf16.xpose.msra.mxu0 0
    %2442 = vmatprep.subr.bf16.mxu0 0
    %2443 = vmatpush1.bf16.xpose.msra.mxu0 0
    %2444 = vmatprep.subr.bf16.mxu0 0
    %2445 = vmatpush1.bf16.xpose.msra.mxu0 0
    %2446 = vmatprep.subr.bf16.mxu0 0
    %2447 = vmatpush1.bf16.xpose.msra.mxu0 0
    %2448 = vmatprep.mubr.bf16.mxu0 0
    %2449 = vmatmul.mubr.bf16.gmra.mrb[0].mxu0 %v2411
    %v2450 = vpop.f32.mrb[0].mxu0
    %v2451 = vadd.f32 0.0, %v2450
    %v2452 = vpop.f32.mrb[0].mxu0
    %v2453 = vpop.f32.mrb[0].mxu0
    %v2454 = vpop.f32.mrb[0].mxu0
    %2455 = vdwg.mxu0
    %v2457 = vsel %vm565, %v2187, 0
    %v2460 = vsel %vm565, %v2204, 0
    %2462 = vmatprep.subr.bf16.mxu0 0
    %2463 = vmatpush1.bf16.xpose.msra.mxu0 %v2460
    %2464 = vmatprep.subr.bf16.mxu0 0
    %2465 = vmatpush1.bf16.xpose.msra.mxu0 0
    %2466 = vmatprep.subr.bf16.mxu0 0
    %2467 = vmatpush1.bf16.xpose.msra.mxu0 0
    %2468 = vmatprep.subr.bf16.mxu0 0
    %2469 = vmatpush1.bf16.xpose.msra.mxu0 0
    %2470 = vmatprep.subr.bf16.mxu0 0
    %2471 = vmatpush1.bf16.xpose.msra.mxu0 0
    %2472 = vmatprep.subr.bf16.mxu0 0
    %2473 = vmatpush1.bf16.xpose.msra.mxu0 0
    %2474 = vmatprep.subr.bf16.mxu0 0
    %2475 = vmatpush1.bf16.xpose.msra.mxu0 0
    %2476 = vmatprep.subr.bf16.mxu0 0
    %2477 = vmatpush1.bf16.xpose.msra.mxu0 0
    %2478 = vmatprep.subr.bf16.mxu0 0
    %2479 = vmatpush1.bf16.xpose.msra.mxu0 0
    %2480 = vmatprep.subr.bf16.mxu0 0
    %2481 = vmatpush1.bf16.xpose.msra.mxu0 0
    %2482 = vmatprep.subr.bf16.mxu0 0
    %2483 = vmatpush1.bf16.xpose.msra.mxu0 0
    %2484 = vmatprep.subr.bf16.mxu0 0
    %2485 = vmatpush1.bf16.xpose.msra.mxu0 0
    %2486 = vmatprep.subr.bf16.mxu0 0
    %2487 = vmatpush1.bf16.xpose.msra.mxu0 0
    %2488 = vmatprep.subr.bf16.mxu0 0
    %2489 = vmatpush1.bf16.xpose.msra.mxu0 0
    %2490 = vmatprep.subr.bf16.mxu0 0
    %2491 = vmatpush1.bf16.xpose.msra.mxu0 0
    %2492 = vmatprep.subr.bf16.mxu0 0
    %2493 = vmatpush1.bf16.xpose.msra.mxu0 0
    %2494 = vmatprep.mubr.bf16.mxu0 0
    %2495 = vmatmul.mubr.bf16.gmra.mrb[0].mxu0 %v2457
    %v2496 = vpop.f32.mrb[0].mxu0
    %v2497 = vadd.f32 0.0, %v2496
    %v2498 = vpop.f32.mrb[0].mxu0
    %v2499 = vpop.f32.mrb[0].mxu0
    %v2500 = vpop.f32.mrb[0].mxu0
    %2501 = vdwg.mxu0
    %v2503 = vsel %vm565, %v2189, 0
    %v2506 = vsel %vm565, %v2206, 0
    %2508 = vmatprep.subr.bf16.mxu0 0
    %2509 = vmatpush1.bf16.xpose.msra.mxu0 %v2506
    %2510 = vmatprep.subr.bf16.mxu0 0
    %2511 = vmatpush1.bf16.xpose.msra.mxu0 0
    %2512 = vmatprep.subr.bf16.mxu0 0
    %2513 = vmatpush1.bf16.xpose.msra.mxu0 0
    %2514 = vmatprep.subr.bf16.mxu0 0
    %2515 = vmatpush1.bf16.xpose.msra.mxu0 0
    %2516 = vmatprep.subr.bf16.mxu0 0
    %2517 = vmatpush1.bf16.xpose.msra.mxu0 0
    %2518 = vmatprep.subr.bf16.mxu0 0
    %2519 = vmatpush1.bf16.xpose.msra.mxu0 0
    %2520 = vmatprep.subr.bf16.mxu0 0
    %2521 = vmatpush1.bf16.xpose.msra.mxu0 0
    %2522 = vmatprep.subr.bf16.mxu0 0
    %2523 = vmatpush1.bf16.xpose.msra.mxu0 0
    %2524 = vmatprep.subr.bf16.mxu0 0
    %2525 = vmatpush1.bf16.xpose.msra.mxu0 0
    %2526 = vmatprep.subr.bf16.mxu0 0
    %2527 = vmatpush1.bf16.xpose.msra.mxu0 0
    %2528 = vmatprep.subr.bf16.mxu0 0
    %2529 = vmatpush1.bf16.xpose.msra.mxu0 0
    %2530 = vmatprep.subr.bf16.mxu0 0
    %2531 = vmatpush1.bf16.xpose.msra.mxu0 0
    %2532 = vmatprep.subr.bf16.mxu0 0
    %2533 = vmatpush1.bf16.xpose.msra.mxu0 0
    %2534 = vmatprep.subr.bf16.mxu0 0
    %2535 = vmatpush1.bf16.xpose.msra.mxu0 0
    %2536 = vmatprep.subr.bf16.mxu0 0
    %2537 = vmatpush1.bf16.xpose.msra.mxu0 0
    %2538 = vmatprep.subr.bf16.mxu0 0
    %2539 = vmatpush1.bf16.xpose.msra.mxu0 0
    %2540 = vmatprep.mubr.bf16.mxu0 0
    %2541 = vmatmul.mubr.bf16.gmra.mrb[0].mxu0 %v2503
    %v2542 = vpop.f32.mrb[0].mxu0
    %v2543 = vadd.f32 0.0, %v2542
    %v2544 = vpop.f32.mrb[0].mxu0
    %v2545 = vpop.f32.mrb[0].mxu0
    %v2546 = vpop.f32.mrb[0].mxu0
    %2547 = vdwg.mxu0
    %v2549 = vsel %vm565, %v2191, 0
    %v2552 = vsel %vm565, %v2208, 0
    %2554 = vmatprep.subr.bf16.mxu0 0
    %2555 = vmatpush1.bf16.xpose.msra.mxu0 %v2552
    %2556 = vmatprep.subr.bf16.mxu0 0
    %2557 = vmatpush1.bf16.xpose.msra.mxu0 0
    %2558 = vmatprep.subr.bf16.mxu0 0
    %2559 = vmatpush1.bf16.xpose.msra.mxu0 0
    %2560 = vmatprep.subr.bf16.mxu0 0
    %2561 = vmatpush1.bf16.xpose.msra.mxu0 0
    %2562 = vmatprep.subr.bf16.mxu0 0
    %2563 = vmatpush1.bf16.xpose.msra.mxu0 0
    %2564 = vmatprep.subr.bf16.mxu0 0
    %2565 = vmatpush1.bf16.xpose.msra.mxu0 0
    %2566 = vmatprep.subr.bf16.mxu0 0
    %2567 = vmatpush1.bf16.xpose.msra.mxu0 0
    %2568 = vmatprep.subr.bf16.mxu0 0
    %2569 = vmatpush1.bf16.xpose.msra.mxu0 0
    %2570 = vmatprep.subr.bf16.mxu0 0
    %2571 = vmatpush1.bf16.xpose.msra.mxu0 0
    %2572 = vmatprep.subr.bf16.mxu0 0
    %2573 = vmatpush1.bf16.xpose.msra.mxu0 0
    %2574 = vmatprep.subr.bf16.mxu0 0
    %2575 = vmatpush1.bf16.xpose.msra.mxu0 0
    %2576 = vmatprep.subr.bf16.mxu0 0
    %2577 = vmatpush1.bf16.xpose.msra.mxu0 0
    %2578 = vmatprep.subr.bf16.mxu0 0
    %2579 = vmatpush1.bf16.xpose.msra.mxu0 0
    %2580 = vmatprep.subr.bf16.mxu0 0
    %2581 = vmatpush1.bf16.xpose.msra.mxu0 0
    %2582 = vmatprep.subr.bf16.mxu0 0
    %2583 = vmatpush1.bf16.xpose.msra.mxu0 0
    %2584 = vmatprep.subr.bf16.mxu0 0
    %2585 = vmatpush1.bf16.xpose.msra.mxu0 0
    %2586 = vmatprep.mubr.bf16.mxu0 0
    %2587 = vmatmul.mubr.bf16.gmra.mrb[0].mxu0 %v2549
    %v2588 = vpop.f32.mrb[0].mxu0
    %v2589 = vadd.f32 0.0, %v2588
    %v2590 = vpop.f32.mrb[0].mxu0
    %v2591 = vpop.f32.mrb[0].mxu0
    %v2592 = vpop.f32.mrb[0].mxu0
    %2593 = vdwg.mxu0
    %v2594 = vsel %vm565, %v2267, -inf
    %2595 = vmax.xlane.f32.xlu0 %v2594
    %v2596 = vpop.xlane.xlu0 %2595
    %v2597 = vsel %vm565, %v2313, -inf
    %2598 = vmax.xlane.f32.xlu0 %v2597
    %v2599 = vpop.xlane.xlu0 %2598
    %v2600 = vsel %vm565, %v2359, -inf
    %2601 = vmax.xlane.f32.xlu0 %v2600
    %v2602 = vpop.xlane.xlu0 %2601
    %v2603 = vsel %vm565, %v2405, -inf
    %2604 = vmax.xlane.f32.xlu0 %v2603
    %v2605 = vpop.xlane.xlu0 %2604
    %v2606 = vsel %vm565, %v2451, -inf
    %2607 = vmax.xlane.f32.xlu0 %v2606
    %v2608 = vpop.xlane.xlu0 %2607
    %v2609 = vsel %vm565, %v2497, -inf
    %2610 = vmax.xlane.f32.xlu0 %v2609
    %v2611 = vpop.xlane.xlu0 %2610
    %v2612 = vsel %vm565, %v2543, -inf
    %2613 = vmax.xlane.f32.xlu0 %v2612
    %v2614 = vpop.xlane.xlu0 %2613
    %v2615 = vsel %vm565, %v2589, -inf
    %2616 = vmax.xlane.f32.xlu0 %v2615
    %v2617 = vpop.xlane.xlu0 %2616
    %v2618 = vsub.f32 %v2267, %v2596
    %v2619 = vsub.f32 %v2313, %v2599
    %v2620 = vsub.f32 %v2359, %v2602
    %v2621 = vsub.f32 %v2405, %v2605
    %v2622 = vsub.f32 %v2451, %v2608
    %v2623 = vsub.f32 %v2497, %v2611
    %v2624 = vsub.f32 %v2543, %v2614
    %v2625 = vsub.f32 %v2589, %v2617
    %v2626 = vmul.f32 %v2618, 1.442695
    %v2627 = vpow.pop %v2626
    %v2628 = vmul.f32 %v2619, 1.442695
    %v2629 = vpow.pop %v2628
    %v2630 = vmul.f32 %v2620, 1.442695
    %v2631 = vpow.pop %v2630
    %v2632 = vmul.f32 %v2621, 1.442695
    %v2633 = vpow.pop %v2632
    %v2634 = vmul.f32 %v2622, 1.442695
    %v2635 = vpow.pop %v2634
    %v2636 = vmul.f32 %v2623, 1.442695
    %v2637 = vpow.pop %v2636
    %v2638 = vmul.f32 %v2624, 1.442695
    %v2639 = vpow.pop %v2638
    %v2640 = vmul.f32 %v2625, 1.442695
    %v2641 = vpow.pop %v2640
    %v2642 = vsel %vm565, %v2627, 0.0
    %2643 = vadd.xlane.f32.xlu0 %v2642
    %v2644 = vpop.xlane.xlu0 %2643
    %v2645 = vsel %vm565, %v2629, 0.0
    %2646 = vadd.xlane.f32.xlu0 %v2645
    %v2647 = vpop.xlane.xlu0 %2646
    %v2648 = vsel %vm565, %v2631, 0.0
    %2649 = vadd.xlane.f32.xlu0 %v2648
    %v2650 = vpop.xlane.xlu0 %2649
    %v2651 = vsel %vm565, %v2633, 0.0
    %2652 = vadd.xlane.f32.xlu0 %v2651
    %v2653 = vpop.xlane.xlu0 %2652
    %v2654 = vsel %vm565, %v2635, 0.0
    %2655 = vadd.xlane.f32.xlu0 %v2654
    %v2656 = vpop.xlane.xlu0 %2655
    %v2657 = vsel %vm565, %v2637, 0.0
    %2658 = vadd.xlane.f32.xlu0 %v2657
    %v2659 = vpop.xlane.xlu0 %2658
    %v2660 = vsel %vm565, %v2639, 0.0
    %2661 = vadd.xlane.f32.xlu0 %v2660
    %v2662 = vpop.xlane.xlu0 %2661
    %v2663 = vsel %vm565, %v2641, 0.0
    %2664 = vadd.xlane.f32.xlu0 %v2663
    %v2665 = vpop.xlane.xlu0 %2664
    %v2666 = vrcp.pop %v2644
    %v2667 = vrcp.pop %v2647
    %v2668 = vrcp.pop %v2650
    %v2669 = vrcp.pop %v2653
    %v2670 = vrcp.pop %v2656
    %v2671 = vrcp.pop %v2659
    %v2672 = vrcp.pop %v2662
    %v2673 = vrcp.pop %v2665
    %v2674 = vmul.f32 %v2627, %v2666
    %v2675 = vmul.f32 %v2629, %v2667
    %v2676 = vmul.f32 %v2631, %v2668
    %v2677 = vmul.f32 %v2633, %v2669
    %v2678 = vmul.f32 %v2635, %v2670
    %v2679 = vmul.f32 %v2637, %v2671
    %v2680 = vmul.f32 %v2639, %v2672
    %v2681 = vmul.f32 %v2641, %v2673
    %v2682 = vpack.c.bf16 %v2674, %v2674
    %v2683 = vpack.c.bf16 %v2675, %v2675
    %v2684 = vpack.c.bf16 %v2676, %v2676
    %v2685 = vpack.c.bf16 %v2677, %v2677
    %v2686 = vpack.c.bf16 %v2678, %v2678
    %v2687 = vpack.c.bf16 %v2679, %v2679
    %v2688 = vpack.c.bf16 %v2680, %v2680
    %v2689 = vpack.c.bf16 %v2681, %v2681
    %v2691 = vsel %vm565, %v2682, 0
    %v2694 = vsel %vm1033, %v2212, 0
    %2696 = vmatprep.subr.bf16.mxu0 0
    %2697 = vmatpush1.bf16.msra.mxu0 %v2694
    %2698 = vmatprep.subr.bf16.mxu0 0
    %2699 = vmatpush1.bf16.msra.mxu0 0
    %2700 = vmatprep.subr.bf16.mxu0 0
    %2701 = vmatpush1.bf16.msra.mxu0 0
    %2702 = vmatprep.subr.bf16.mxu0 0
    %2703 = vmatpush1.bf16.msra.mxu0 0
    %2704 = vmatprep.subr.bf16.mxu0 0
    %2705 = vmatpush1.bf16.msra.mxu0 0
    %2706 = vmatprep.subr.bf16.mxu0 0
    %2707 = vmatpush1.bf16.msra.mxu0 0
    %2708 = vmatprep.subr.bf16.mxu0 0
    %2709 = vmatpush1.bf16.msra.mxu0 0
    %2710 = vmatprep.subr.bf16.mxu0 0
    %2711 = vmatpush1.bf16.msra.mxu0 0
    %2712 = vmatprep.subr.bf16.mxu0 0
    %2713 = vmatpush1.bf16.msra.mxu0 0
    %2714 = vmatprep.subr.bf16.mxu0 0
    %2715 = vmatpush1.bf16.msra.mxu0 0
    %2716 = vmatprep.subr.bf16.mxu0 0
    %2717 = vmatpush1.bf16.msra.mxu0 0
    %2718 = vmatprep.subr.bf16.mxu0 0
    %2719 = vmatpush1.bf16.msra.mxu0 0
    %2720 = vmatprep.subr.bf16.mxu0 0
    %2721 = vmatpush1.bf16.msra.mxu0 0
    %2722 = vmatprep.subr.bf16.mxu0 0
    %2723 = vmatpush1.bf16.msra.mxu0 0
    %2724 = vmatprep.subr.bf16.mxu0 0
    %2725 = vmatpush1.bf16.msra.mxu0 0
    %2726 = vmatprep.subr.bf16.mxu0 0
    %2727 = vmatpush1.bf16.msra.mxu0 0
    %2728 = vmatprep.mubr.bf16.mxu0 0
    %2729 = vmatmul.mubr.bf16.gmra.mrb[0].mxu0 %v2691
    %v2730 = vpop.f32.mrb[0].mxu0
    %v2731 = vadd.f32 0.0, %v2730
    %v2732 = vpop.f32.mrb[0].mxu0
    %v2733 = vpop.f32.mrb[0].mxu0
    %v2734 = vpop.f32.mrb[0].mxu0
    %2735 = vdwg.mxu0
    %v2737 = vsel %vm565, %v2683, 0
    %v2740 = vsel %vm1033, %v2213, 0
    %2742 = vmatprep.subr.bf16.mxu0 0
    %2743 = vmatpush1.bf16.msra.mxu0 %v2740
    %2744 = vmatprep.subr.bf16.mxu0 0
    %2745 = vmatpush1.bf16.msra.mxu0 0
    %2746 = vmatprep.subr.bf16.mxu0 0
    %2747 = vmatpush1.bf16.msra.mxu0 0
    %2748 = vmatprep.subr.bf16.mxu0 0
    %2749 = vmatpush1.bf16.msra.mxu0 0
    %2750 = vmatprep.subr.bf16.mxu0 0
    %2751 = vmatpush1.bf16.msra.mxu0 0
    %2752 = vmatprep.subr.bf16.mxu0 0
    %2753 = vmatpush1.bf16.msra.mxu0 0
    %2754 = vmatprep.subr.bf16.mxu0 0
    %2755 = vmatpush1.bf16.msra.mxu0 0
    %2756 = vmatprep.subr.bf16.mxu0 0
    %2757 = vmatpush1.bf16.msra.mxu0 0
    %2758 = vmatprep.subr.bf16.mxu0 0
    %2759 = vmatpush1.bf16.msra.mxu0 0
    %2760 = vmatprep.subr.bf16.mxu0 0
    %2761 = vmatpush1.bf16.msra.mxu0 0
    %2762 = vmatprep.subr.bf16.mxu0 0
    %2763 = vmatpush1.bf16.msra.mxu0 0
    %2764 = vmatprep.subr.bf16.mxu0 0
    %2765 = vmatpush1.bf16.msra.mxu0 0
    %2766 = vmatprep.subr.bf16.mxu0 0
    %2767 = vmatpush1.bf16.msra.mxu0 0
    %2768 = vmatprep.subr.bf16.mxu0 0
    %2769 = vmatpush1.bf16.msra.mxu0 0
    %2770 = vmatprep.subr.bf16.mxu0 0
    %2771 = vmatpush1.bf16.msra.mxu0 0
    %2772 = vmatprep.subr.bf16.mxu0 0
    %2773 = vmatpush1.bf16.msra.mxu0 0
    %2774 = vmatprep.mubr.bf16.mxu0 0
    %2775 = vmatmul.mubr.bf16.gmra.mrb[0].mxu0 %v2737
    %v2776 = vpop.f32.mrb[0].mxu0
    %v2777 = vadd.f32 0.0, %v2776
    %v2778 = vpop.f32.mrb[0].mxu0
    %v2779 = vpop.f32.mrb[0].mxu0
    %v2780 = vpop.f32.mrb[0].mxu0
    %2781 = vdwg.mxu0
    %v2783 = vsel %vm565, %v2684, 0
    %v2786 = vsel %vm1033, %v2215, 0
    %2788 = vmatprep.subr.bf16.mxu0 0
    %2789 = vmatpush1.bf16.msra.mxu0 %v2786
    %2790 = vmatprep.subr.bf16.mxu0 0
    %2791 = vmatpush1.bf16.msra.mxu0 0
    %2792 = vmatprep.subr.bf16.mxu0 0
    %2793 = vmatpush1.bf16.msra.mxu0 0
    %2794 = vmatprep.subr.bf16.mxu0 0
    %2795 = vmatpush1.bf16.msra.mxu0 0
    %2796 = vmatprep.subr.bf16.mxu0 0
    %2797 = vmatpush1.bf16.msra.mxu0 0
    %2798 = vmatprep.subr.bf16.mxu0 0
    %2799 = vmatpush1.bf16.msra.mxu0 0
    %2800 = vmatprep.subr.bf16.mxu0 0
    %2801 = vmatpush1.bf16.msra.mxu0 0
    %2802 = vmatprep.subr.bf16.mxu0 0
    %2803 = vmatpush1.bf16.msra.mxu0 0
    %2804 = vmatprep.subr.bf16.mxu0 0
    %2805 = vmatpush1.bf16.msra.mxu0 0
    %2806 = vmatprep.subr.bf16.mxu0 0
    %2807 = vmatpush1.bf16.msra.mxu0 0
    %2808 = vmatprep.subr.bf16.mxu0 0
    %2809 = vmatpush1.bf16.msra.mxu0 0
    %2810 = vmatprep.subr.bf16.mxu0 0
    %2811 = vmatpush1.bf16.msra.mxu0 0
    %2812 = vmatprep.subr.bf16.mxu0 0
    %2813 = vmatpush1.bf16.msra.mxu0 0
    %2814 = vmatprep.subr.bf16.mxu0 0
    %2815 = vmatpush1.bf16.msra.mxu0 0
    %2816 = vmatprep.subr.bf16.mxu0 0
    %2817 = vmatpush1.bf16.msra.mxu0 0
    %2818 = vmatprep.subr.bf16.mxu0 0
    %2819 = vmatpush1.bf16.msra.mxu0 0
    %2820 = vmatprep.mubr.bf16.mxu0 0
    %2821 = vmatmul.mubr.bf16.gmra.mrb[0].mxu0 %v2783
    %v2822 = vpop.f32.mrb[0].mxu0
    %v2823 = vadd.f32 0.0, %v2822
    %v2824 = vpop.f32.mrb[0].mxu0
    %v2825 = vpop.f32.mrb[0].mxu0
    %v2826 = vpop.f32.mrb[0].mxu0
    %2827 = vdwg.mxu0
    %v2829 = vsel %vm565, %v2685, 0
    %v2832 = vsel %vm1033, %v2217, 0
    %2834 = vmatprep.subr.bf16.mxu0 0
    %2835 = vmatpush1.bf16.msra.mxu0 %v2832
    %2836 = vmatprep.subr.bf16.mxu0 0
    %2837 = vmatpush1.bf16.msra.mxu0 0
    %2838 = vmatprep.subr.bf16.mxu0 0
    %2839 = vmatpush1.bf16.msra.mxu0 0
    %2840 = vmatprep.subr.bf16.mxu0 0
    %2841 = vmatpush1.bf16.msra.mxu0 0
    %2842 = vmatprep.subr.bf16.mxu0 0
    %2843 = vmatpush1.bf16.msra.mxu0 0
    %2844 = vmatprep.subr.bf16.mxu0 0
    %2845 = vmatpush1.bf16.msra.mxu0 0
    %2846 = vmatprep.subr.bf16.mxu0 0
    %2847 = vmatpush1.bf16.msra.mxu0 0
    %2848 = vmatprep.subr.bf16.mxu0 0
    %2849 = vmatpush1.bf16.msra.mxu0 0
    %2850 = vmatprep.subr.bf16.mxu0 0
    %2851 = vmatpush1.bf16.msra.mxu0 0
    %2852 = vmatprep.subr.bf16.mxu0 0
    %2853 = vmatpush1.bf16.msra.mxu0 0
    %2854 = vmatprep.subr.bf16.mxu0 0
    %2855 = vmatpush1.bf16.msra.mxu0 0
    %2856 = vmatprep.subr.bf16.mxu0 0
    %2857 = vmatpush1.bf16.msra.mxu0 0
    %2858 = vmatprep.subr.bf16.mxu0 0
    %2859 = vmatpush1.bf16.msra.mxu0 0
    %2860 = vmatprep.subr.bf16.mxu0 0
    %2861 = vmatpush1.bf16.msra.mxu0 0
    %2862 = vmatprep.subr.bf16.mxu0 0
    %2863 = vmatpush1.bf16.msra.mxu0 0
    %2864 = vmatprep.subr.bf16.mxu0 0
    %2865 = vmatpush1.bf16.msra.mxu0 0
    %2866 = vmatprep.mubr.bf16.mxu0 0
    %2867 = vmatmul.mubr.bf16.gmra.mrb[0].mxu0 %v2829
    %v2868 = vpop.f32.mrb[0].mxu0
    %v2869 = vadd.f32 0.0, %v2868
    %v2870 = vpop.f32.mrb[0].mxu0
    %v2871 = vpop.f32.mrb[0].mxu0
    %v2872 = vpop.f32.mrb[0].mxu0
    %2873 = vdwg.mxu0
    %v2875 = vsel %vm565, %v2686, 0
    %v2878 = vsel %vm1033, %v2219, 0
    %2880 = vmatprep.subr.bf16.mxu0 0
    %2881 = vmatpush1.bf16.msra.mxu0 %v2878
    %2882 = vmatprep.subr.bf16.mxu0 0
    %2883 = vmatpush1.bf16.msra.mxu0 0
    %2884 = vmatprep.subr.bf16.mxu0 0
    %2885 = vmatpush1.bf16.msra.mxu0 0
    %2886 = vmatprep.subr.bf16.mxu0 0
    %2887 = vmatpush1.bf16.msra.mxu0 0
    %2888 = vmatprep.subr.bf16.mxu0 0
    %2889 = vmatpush1.bf16.msra.mxu0 0
    %2890 = vmatprep.subr.bf16.mxu0 0
    %2891 = vmatpush1.bf16.msra.mxu0 0
    %2892 = vmatprep.subr.bf16.mxu0 0
    %2893 = vmatpush1.bf16.msra.mxu0 0
    %2894 = vmatprep.subr.bf16.mxu0 0
    %2895 = vmatpush1.bf16.msra.mxu0 0
    %2896 = vmatprep.subr.bf16.mxu0 0
    %2897 = vmatpush1.bf16.msra.mxu0 0
    %2898 = vmatprep.subr.bf16.mxu0 0
    %2899 = vmatpush1.bf16.msra.mxu0 0
    %2900 = vmatprep.subr.bf16.mxu0 0
    %2901 = vmatpush1.bf16.msra.mxu0 0
    %2902 = vmatprep.subr.bf16.mxu0 0
    %2903 = vmatpush1.bf16.msra.mxu0 0
    %2904 = vmatprep.subr.bf16.mxu0 0
    %2905 = vmatpush1.bf16.msra.mxu0 0
    %2906 = vmatprep.subr.bf16.mxu0 0
    %2907 = vmatpush1.bf16.msra.mxu0 0
    %2908 = vmatprep.subr.bf16.mxu0 0
    %2909 = vmatpush1.bf16.msra.mxu0 0
    %2910 = vmatprep.subr.bf16.mxu0 0
    %2911 = vmatpush1.bf16.msra.mxu0 0
    %2912 = vmatprep.mubr.bf16.mxu0 0
    %2913 = vmatmul.mubr.bf16.gmra.mrb[0].mxu0 %v2875
    %v2914 = vpop.f32.mrb[0].mxu0
    %v2915 = vadd.f32 0.0, %v2914
    %v2916 = vpop.f32.mrb[0].mxu0
    %v2917 = vpop.f32.mrb[0].mxu0
    %v2918 = vpop.f32.mrb[0].mxu0
    %2919 = vdwg.mxu0
    %v2921 = vsel %vm565, %v2687, 0
    %v2924 = vsel %vm1033, %v2221, 0
    %2926 = vmatprep.subr.bf16.mxu0 0
    %2927 = vmatpush1.bf16.msra.mxu0 %v2924
    %2928 = vmatprep.subr.bf16.mxu0 0
    %2929 = vmatpush1.bf16.msra.mxu0 0
    %2930 = vmatprep.subr.bf16.mxu0 0
    %2931 = vmatpush1.bf16.msra.mxu0 0
    %2932 = vmatprep.subr.bf16.mxu0 0
    %2933 = vmatpush1.bf16.msra.mxu0 0
    %2934 = vmatprep.subr.bf16.mxu0 0
    %2935 = vmatpush1.bf16.msra.mxu0 0
    %2936 = vmatprep.subr.bf16.mxu0 0
    %2937 = vmatpush1.bf16.msra.mxu0 0
    %2938 = vmatprep.subr.bf16.mxu0 0
    %2939 = vmatpush1.bf16.msra.mxu0 0
    %2940 = vmatprep.subr.bf16.mxu0 0
    %2941 = vmatpush1.bf16.msra.mxu0 0
    %2942 = vmatprep.subr.bf16.mxu0 0
    %2943 = vmatpush1.bf16.msra.mxu0 0
    %2944 = vmatprep.subr.bf16.mxu0 0
    %2945 = vmatpush1.bf16.msra.mxu0 0
    %2946 = vmatprep.subr.bf16.mxu0 0
    %2947 = vmatpush1.bf16.msra.mxu0 0
    %2948 = vmatprep.subr.bf16.mxu0 0
    %2949 = vmatpush1.bf16.msra.mxu0 0
    %2950 = vmatprep.subr.bf16.mxu0 0
    %2951 = vmatpush1.bf16.msra.mxu0 0
    %2952 = vmatprep.subr.bf16.mxu0 0
    %2953 = vmatpush1.bf16.msra.mxu0 0
    %2954 = vmatprep.subr.bf16.mxu0 0
    %2955 = vmatpush1.bf16.msra.mxu0 0
    %2956 = vmatprep.subr.bf16.mxu0 0
    %2957 = vmatpush1.bf16.msra.mxu0 0
    %2958 = vmatprep.mubr.bf16.mxu0 0
    %2959 = vmatmul.mubr.bf16.gmra.mrb[0].mxu0 %v2921
    %v2960 = vpop.f32.mrb[0].mxu0
    %v2961 = vadd.f32 0.0, %v2960
    %v2962 = vpop.f32.mrb[0].mxu0
    %v2963 = vpop.f32.mrb[0].mxu0
    %v2964 = vpop.f32.mrb[0].mxu0
    %2965 = vdwg.mxu0
    %v2967 = vsel %vm565, %v2688, 0
    %v2970 = vsel %vm1033, %v2223, 0
    %2972 = vmatprep.subr.bf16.mxu0 0
    %2973 = vmatpush1.bf16.msra.mxu0 %v2970
    %2974 = vmatprep.subr.bf16.mxu0 0
    %2975 = vmatpush1.bf16.msra.mxu0 0
    %2976 = vmatprep.subr.bf16.mxu0 0
    %2977 = vmatpush1.bf16.msra.mxu0 0
    %2978 = vmatprep.subr.bf16.mxu0 0
    %2979 = vmatpush1.bf16.msra.mxu0 0
    %2980 = vmatprep.subr.bf16.mxu0 0
    %2981 = vmatpush1.bf16.msra.mxu0 0
    %2982 = vmatprep.subr.bf16.mxu0 0
    %2983 = vmatpush1.bf16.msra.mxu0 0
    %2984 = vmatprep.subr.bf16.mxu0 0
    %2985 = vmatpush1.bf16.msra.mxu0 0
    %2986 = vmatprep.subr.bf16.mxu0 0
    %2987 = vmatpush1.bf16.msra.mxu0 0
    %2988 = vmatprep.subr.bf16.mxu0 0
    %2989 = vmatpush1.bf16.msra.mxu0 0
    %2990 = vmatprep.subr.bf16.mxu0 0
    %2991 = vmatpush1.bf16.msra.mxu0 0
    %2992 = vmatprep.subr.bf16.mxu0 0
    %2993 = vmatpush1.bf16.msra.mxu0 0
    %2994 = vmatprep.subr.bf16.mxu0 0
    %2995 = vmatpush1.bf16.msra.mxu0 0
    %2996 = vmatprep.subr.bf16.mxu0 0
    %2997 = vmatpush1.bf16.msra.mxu0 0
    %2998 = vmatprep.subr.bf16.mxu0 0
    %2999 = vmatpush1.bf16.msra.mxu0 0
    %3000 = vmatprep.subr.bf16.mxu0 0
    %3001 = vmatpush1.bf16.msra.mxu0 0
    %3002 = vmatprep.subr.bf16.mxu0 0
    %3003 = vmatpush1.bf16.msra.mxu0 0
    %3004 = vmatprep.mubr.bf16.mxu0 0
    %3005 = vmatmul.mubr.bf16.gmra.mrb[0].mxu0 %v2967
    %v3006 = vpop.f32.mrb[0].mxu0
    %v3007 = vadd.f32 0.0, %v3006
    %v3008 = vpop.f32.mrb[0].mxu0
    %v3009 = vpop.f32.mrb[0].mxu0
    %v3010 = vpop.f32.mrb[0].mxu0
    %3011 = vdwg.mxu0
    %v3013 = vsel %vm565, %v2689, 0
    %v3016 = vsel %vm1033, %v2225, 0
    %3018 = vmatprep.subr.bf16.mxu0 0
    %3019 = vmatpush1.bf16.msra.mxu0 %v3016
    %3020 = vmatprep.subr.bf16.mxu0 0
    %3021 = vmatpush1.bf16.msra.mxu0 0
    %3022 = vmatprep.subr.bf16.mxu0 0
    %3023 = vmatpush1.bf16.msra.mxu0 0
    %3024 = vmatprep.subr.bf16.mxu0 0
    %3025 = vmatpush1.bf16.msra.mxu0 0
    %3026 = vmatprep.subr.bf16.mxu0 0
    %3027 = vmatpush1.bf16.msra.mxu0 0
    %3028 = vmatprep.subr.bf16.mxu0 0
    %3029 = vmatpush1.bf16.msra.mxu0 0
    %3030 = vmatprep.subr.bf16.mxu0 0
    %3031 = vmatpush1.bf16.msra.mxu0 0
    %3032 = vmatprep.subr.bf16.mxu0 0
    %3033 = vmatpush1.bf16.msra.mxu0 0
    %3034 = vmatprep.subr.bf16.mxu0 0
    %3035 = vmatpush1.bf16.msra.mxu0 0
    %3036 = vmatprep.subr.bf16.mxu0 0
    %3037 = vmatpush1.bf16.msra.mxu0 0
    %3038 = vmatprep.subr.bf16.mxu0 0
    %3039 = vmatpush1.bf16.msra.mxu0 0
    %3040 = vmatprep.subr.bf16.mxu0 0
    %3041 = vmatpush1.bf16.msra.mxu0 0
    %3042 = vmatprep.subr.bf16.mxu0 0
    %3043 = vmatpush1.bf16.msra.mxu0 0
    %3044 = vmatprep.subr.bf16.mxu0 0
    %3045 = vmatpush1.bf16.msra.mxu0 0
    %3046 = vmatprep.subr.bf16.mxu0 0
    %3047 = vmatpush1.bf16.msra.mxu0 0
    %3048 = vmatprep.subr.bf16.mxu0 0
    %3049 = vmatpush1.bf16.msra.mxu0 0
    %3050 = vmatprep.mubr.bf16.mxu0 0
    %3051 = vmatmul.mubr.bf16.gmra.mrb[0].mxu0 %v3013
    %v3052 = vpop.f32.mrb[0].mxu0
    %v3053 = vadd.f32 0.0, %v3052
    %v3054 = vpop.f32.mrb[0].mxu0
    %v3055 = vpop.f32.mrb[0].mxu0
    %v3056 = vpop.f32.mrb[0].mxu0
    %3057 = vdwg.mxu0
    %v3058 = vpack.c.bf16 %v2731, %v2731
    %v3059 = vpack.c.bf16 %v2777, %v2777
    %v3060 = vpack.c.bf16 %v2823, %v2823
    %v3061 = vpack.c.bf16 %v2869, %v2869
    %v3062 = vpack.c.bf16 %v2915, %v2915
    %v3063 = vpack.c.bf16 %v2961, %v2961
    %v3064 = vpack.c.bf16 %v3007, %v3007
    %v3065 = vpack.c.bf16 %v3053, %v3053
    %v3068 = vunpack.c.l.b16 %v3058
    %v3069 = vunpack.c.l.b16 %v3059
    %v3070 = vpack.c.b16 %v3069, %v3068
    %v3073 = vunpack.c.l.b16 %v3060
    %v3074 = vunpack.c.l.b16 %v3061
    %v3075 = vpack.c.b16 %v3074, %v3073
    %3076 = vrot.lane.b32.xlu0 %v3075, 8
    %v3077 = vpop.permute.xlu0 %3076
    %v3080 = vunpack.c.l.b16 %v3062
    %v3081 = vunpack.c.l.b16 %v3063
    %v3082 = vpack.c.b16 %v3081, %v3080
    %3083 = vrot.lane.b32.xlu0 %v3082, 16
    %v3084 = vpop.permute.xlu0 %3083
    %v3087 = vunpack.c.l.b16 %v3064
    %v3088 = vunpack.c.l.b16 %v3065
    %v3089 = vpack.c.b16 %v3088, %v3087
    %3090 = vrot.lane.b32.xlu0 %v3089, 24
    %v3091 = vpop.permute.xlu0 %3090
    %v3094 = vsel %vm565, %v3070, %v3077
    %v3096 = vsel %vm145, %v3094, %v3084
    %v3098 = vsel %vm1438, %v3096, %v3091
    %s3099 = scalar_lea.vmem [#allocation8], 16
    %v3100 = vld [vmem:[%s3099] sm:$0xf]
    %v3101 = vld [vmem:[%s3099 + $0x4] sm:$0xf]
    %v3102 = vld [vmem:[%s3099 + $0x8] sm:$0xf]
    %v3103 = vld [vmem:[%s3099 + $0xc] sm:$0xf]
    %s3104 = scalar_lea.vmem %s11, 1
    %v3105 = vld [vmem:[%s3104] sm:$0x1]
    %v3107 = vlaneseq
    %v3108 = vshrl.u32 %v3107, 7
    %v3109 = vsub.s32 0, %v3108
    %v3110 = vrot.slane %v3105, %v3109
    %v3116 = vunpack.c.l.b16 %v3100
    %v3117 = vunpack.c.l.b16 %v3101
    %v3118 = vunpack.c.l.b16 %v3102
    %v3119 = vunpack.c.l.b16 %v3103
    %v3120 = vpack.c.b16 %v3117, %v3116
    %v3121 = vpack.c.b16 %v3119, %v3118
    %v3124 = vsel %vm224, %v3098, 0
    %3126 = vmatprep.subr.bf16.mxu0 0
    %3127 = vmatpush1.bf16.msra.mxu0 %v3120
    %3128 = vmatprep.subr.bf16.mxu0 0
    %3129 = vmatpush1.bf16.msra.mxu0 %v3121
    %3130 = vmatprep.subr.bf16.mxu0 0
    %3131 = vmatpush1.bf16.msra.mxu0 0
    %3132 = vmatprep.subr.bf16.mxu0 0
    %3133 = vmatpush1.bf16.msra.mxu0 0
    %3134 = vmatprep.subr.bf16.mxu0 0
    %3135 = vmatpush1.bf16.msra.mxu0 0
    %3136 = vmatprep.subr.bf16.mxu0 0
    %3137 = vmatpush1.bf16.msra.mxu0 0
    %3138 = vmatprep.subr.bf16.mxu0 0
    %3139 = vmatpush1.bf16.msra.mxu0 0
    %3140 = vmatprep.subr.bf16.mxu0 0
    %3141 = vmatpush1.bf16.msra.mxu0 0
    %3142 = vmatprep.subr.bf16.mxu0 0
    %3143 = vmatpush1.bf16.msra.mxu0 0
    %3144 = vmatprep.subr.bf16.mxu0 0
    %3145 = vmatpush1.bf16.msra.mxu0 0
    %3146 = vmatprep.subr.bf16.mxu0 0
    %3147 = vmatpush1.bf16.msra.mxu0 0
    %3148 = vmatprep.subr.bf16.mxu0 0
    %3149 = vmatpush1.bf16.msra.mxu0 0
    %3150 = vmatprep.subr.bf16.mxu0 0
    %3151 = vmatpush1.bf16.msra.mxu0 0
    %3152 = vmatprep.subr.bf16.mxu0 0
    %3153 = vmatpush1.bf16.msra.mxu0 0
    %3154 = vmatprep.subr.bf16.mxu0 0
    %3155 = vmatpush1.bf16.msra.mxu0 0
    %3156 = vmatprep.subr.bf16.mxu0 0
    %3157 = vmatpush1.bf16.msra.mxu0 0
    %3158 = vmatprep.mubr.bf16.mxu0 0
    %3159 = vmatmul.mubr.bf16.gmra.mrb[0].mxu0 %v3124
    %v3160 = vpop.f32.mrb[0].mxu0
    %v3161 = vadd.f32 %v3110, %v3160
    %v3162 = vpop.f32.mrb[0].mxu0
    %v3163 = vpop.f32.mrb[0].mxu0
    %v3164 = vadd.f32 %v3110, %v3163
    %v3165 = vpop.f32.mrb[0].mxu0
    %3166 = vdwg.mxu0
    %v3169 = vunpack.c.l.s4 1966171168
    %v3170 = vunpack.c.0.s8 %v3169
    %v3171 = vlaneseq
    %v3172 = vshrl.u32 %v3171, 7
    %v3173 = vsub.s32 %v3170, %v3172
    %v3174 = vrot.slane %v1851, %v3173
    %v3175 = vcombine.high %v3174, %v3174
    %v3177 = vunpack.c.l.s4 1966171168
    %v3178 = vunpack.c.0.s8 %v3177
    %v3179 = vlaneseq
    %v3180 = vshrl.u32 %v3179, 7
    %v3181 = vsub.s32 %v3178, %v3180
    %v3182 = vrot.slane %v3174, %v3181
    %v3184 = vunpack.c.l.s4 1966171168
    %v3185 = vunpack.c.0.s8 %v3184
    %v3186 = vlaneseq
    %v3187 = vshrl.u32 %v3186, 7
    %v3188 = vsub.s32 %v3185, %v3187
    %v3189 = vrot.slane %v3175, %v3188
    %v3190 = vlaneseq
    %v3191 = vshrl.u32 %v3190, 7
    %v3192 = vsub.s32 0, %v3191
    %v3193 = vrot.slane %v3182, %v3192
    %v3194 = vlaneseq
    %v3195 = vshrl.u32 %v3194, 7
    %v3196 = vsub.s32 0, %v3195
    %v3197 = vrot.slane %v3189, %v3196
    %v3200 = vmul.f32 %v3161, %v3193
    %v3201 = vmul.f32 %v3164, %v3197
    %v3202 = vadd.f32 %v1966, %v3200
    %v3203 = vadd.f32 %v1967, %v3201
    %v3206 = vunpack.c.l.s4 1966171168
    %v3207 = vunpack.c.0.s8 %v3206
    %v3208 = vlaneseq
    %v3209 = vshrl.u32 %v3208, 7
    %v3210 = vsub.s32 %v3207, %v3209
    %v3211 = vrot.slane %v1853, %v3210
    %v3212 = vcombine.high %v3211, %v3211
    %v3214 = vunpack.c.l.s4 1966171168
    %v3215 = vunpack.c.0.s8 %v3214
    %v3216 = vlaneseq
    %v3217 = vshrl.u32 %v3216, 7
    %v3218 = vsub.s32 %v3215, %v3217
    %v3219 = vrot.slane %v3211, %v3218
    %v3221 = vunpack.c.l.s4 1966171168
    %v3222 = vunpack.c.0.s8 %v3221
    %v3223 = vlaneseq
    %v3224 = vshrl.u32 %v3223, 7
    %v3225 = vsub.s32 %v3222, %v3224
    %v3226 = vrot.slane %v3212, %v3225
    %v3227 = vsel %vm224, %v3202, 0.0
    %3228 = vadd.xlane.f32.xlu0 %v3227
    %v3229 = vpop.xlane.xlu0 %3228
    %v3230 = vsel %vm224, %v3203, 0.0
    %3231 = vadd.xlane.f32.xlu0 %v3230
    %v3232 = vpop.xlane.xlu0 %3231
    %v3233 = vmul.f32 %v3229, %v231
    %v3234 = vmul.f32 %v3232, %v231
    %v3235 = vsub.f32 %v3202, %v3233
    %v3236 = vsub.f32 %v3203, %v3234
    %v3237 = vmul.f32 %v3235, %v3235
    %v3238 = vmul.f32 %v3236, %v3236
    %v3239 = vsel %vm224, %v3237, 0.0
    %3240 = vadd.xlane.f32.xlu0 %v3239
    %v3241 = vpop.xlane.xlu0 %3240
    %v3242 = vsel %vm224, %v3238, 0.0
    %3243 = vadd.xlane.f32.xlu0 %v3242
    %v3244 = vpop.xlane.xlu0 %3243
    %v3245 = vmul.f32 %v3241, %v231
    %v3246 = vmul.f32 %v3244, %v231
    %v3247 = vadd.f32 %v3245, 1e-05
    %v3248 = vadd.f32 %v3246, 1e-05
    %v3249 = vrsqrt.pop %v3247
    %v3250 = vmul.f32 %v3247, %v3249
    %vm3251 = vcmp.eq.f32.partialorder %v3247, inf
    %v3252 = vsel %vm3251, %v3247, %v3250
    %vm3253 = vcmp.eq.f32.partialorder %v3247, 0.0
    %v3254 = vand.u32 %v3247, 2147483648
    %v3255 = vsel %vm3253, %v3254, %v3252
    %v3256 = vrsqrt.pop %v3248
    %v3257 = vmul.f32 %v3248, %v3256
    %vm3258 = vcmp.eq.f32.partialorder %v3248, inf
    %v3259 = vsel %vm3258, %v3248, %v3257
    %vm3260 = vcmp.eq.f32.partialorder %v3248, 0.0
    %v3261 = vand.u32 %v3248, 2147483648
    %v3262 = vsel %vm3260, %v3261, %v3259
    %v3263 = vrcp.pop %v3255
    %v3264 = vmul.f32 %v3235, %v3263
    %v3265 = vrcp.pop %v3262
    %v3266 = vmul.f32 %v3236, %v3265
    %v3267 = vlaneseq
    %v3268 = vshrl.u32 %v3267, 7
    %v3269 = vsub.s32 0, %v3268
    %v3270 = vrot.slane %v3219, %v3269
    %v3271 = vlaneseq
    %v3272 = vshrl.u32 %v3271, 7
    %v3273 = vsub.s32 0, %v3272
    %v3274 = vrot.slane %v3226, %v3273
    %v3277 = vmul.f32 %v3270, %v3264
    %v3278 = vmul.f32 %v3274, %v3266
    %v3281 = vunpack.c.l.s4 1966171168
    %v3282 = vunpack.c.0.s8 %v3281
    %v3283 = vlaneseq
    %v3284 = vshrl.u32 %v3283, 7
    %v3285 = vsub.s32 %v3282, %v3284
    %v3286 = vrot.slane %v1855, %v3285
    %v3287 = vcombine.high %v3286, %v3286
    %v3289 = vunpack.c.l.s4 1966171168
    %v3290 = vunpack.c.0.s8 %v3289
    %v3291 = vlaneseq
    %v3292 = vshrl.u32 %v3291, 7
    %v3293 = vsub.s32 %v3290, %v3292
    %v3294 = vrot.slane %v3286, %v3293
    %v3296 = vunpack.c.l.s4 1966171168
    %v3297 = vunpack.c.0.s8 %v3296
    %v3298 = vlaneseq
    %v3299 = vshrl.u32 %v3298, 7
    %v3300 = vsub.s32 %v3297, %v3299
    %v3301 = vrot.slane %v3287, %v3300
    %v3302 = vlaneseq
    %v3303 = vshrl.u32 %v3302, 7
    %v3304 = vsub.s32 0, %v3303
    %v3305 = vrot.slane %v3294, %v3304
    %v3306 = vlaneseq
    %v3307 = vshrl.u32 %v3306, 7
    %v3308 = vsub.s32 0, %v3307
    %v3309 = vrot.slane %v3301, %v3308
    %v3312 = vadd.f32 %v3277, %v3305
    %v3313 = vadd.f32 %v3278, %v3309
    %v3314 = vpack.c.bf16 %v3313, %v3312
    %s3315 = scalar_lea.vmem [#allocation10], 16
    %v3316 = vld [vmem:[%s3315] sm:$0xf]
    %v3317 = vld [vmem:[%s3315 + $0x4] sm:$0xf]
    %v3318 = vld [vmem:[%s3315 + $0x8] sm:$0xf]
    %v3319 = vld [vmem:[%s3315 + $0xc] sm:$0xf]
    %s3320 = scalar_lea.vmem %s13, 1
    %v3321 = vld [vmem:[%s3320] sm:$0x1]
    %v3323 = vlaneseq
    %v3324 = vshrl.u32 %v3323, 7
    %v3325 = vsub.s32 0, %v3324
    %v3326 = vrot.slane %v3321, %v3325
    %v3332 = vunpack.c.l.b16 %v3316
    %v3333 = vunpack.c.l.b16 %v3317
    %v3334 = vunpack.c.l.b16 %v3318
    %v3335 = vunpack.c.l.b16 %v3319
    %v3336 = vpack.c.b16 %v3333, %v3332
    %v3337 = vpack.c.b16 %v3335, %v3334
    %v3341 = vsel %vm224, %v3314, 0
    %3343 = vmatprep.subr.bf16.mxu0 0
    %3344 = vmatpush1.bf16.msra.mxu0 %v3336
    %3345 = vmatprep.subr.bf16.mxu0 0
    %3346 = vmatpush1.bf16.msra.mxu0 %v3337
    %3347 = vmatprep.subr.bf16.mxu0 0
    %3348 = vmatpush1.bf16.msra.mxu0 0
    %3349 = vmatprep.subr.bf16.mxu0 0
    %3350 = vmatpush1.bf16.msra.mxu0 0
    %3351 = vmatprep.subr.bf16.mxu0 0
    %3352 = vmatpush1.bf16.msra.mxu0 0
    %3353 = vmatprep.subr.bf16.mxu0 0
    %3354 = vmatpush1.bf16.msra.mxu0 0
    %3355 = vmatprep.subr.bf16.mxu0 0
    %3356 = vmatpush1.bf16.msra.mxu0 0
    %3357 = vmatprep.subr.bf16.mxu0 0
    %3358 = vmatpush1.bf16.msra.mxu0 0
    %3359 = vmatprep.subr.bf16.mxu0 0
    %3360 = vmatpush1.bf16.msra.mxu0 0
    %3361 = vmatprep.subr.bf16.mxu0 0
    %3362 = vmatpush1.bf16.msra.mxu0 0
    %3363 = vmatprep.subr.bf16.mxu0 0
    %3364 = vmatpush1.bf16.msra.mxu0 0
    %3365 = vmatprep.subr.bf16.mxu0 0
    %3366 = vmatpush1.bf16.msra.mxu0 0
    %3367 = vmatprep.subr.bf16.mxu0 0
    %3368 = vmatpush1.bf16.msra.mxu0 0
    %3369 = vmatprep.subr.bf16.mxu0 0
    %3370 = vmatpush1.bf16.msra.mxu0 0
    %3371 = vmatprep.subr.bf16.mxu0 0
    %3372 = vmatpush1.bf16.msra.mxu0 0
    %3373 = vmatprep.subr.bf16.mxu0 0
    %3374 = vmatpush1.bf16.msra.mxu0 0
    %3375 = vmatprep.mubr.bf16.mxu0 0
    %3376 = vmatmul.mubr.bf16.gmra.mrb[0].mxu0 %v3341
    %v3377 = vpop.f32.mrb[0].mxu0
    %v3378 = vadd.f32 %v3326, %v3377
    %v3379 = vpop.f32.mrb[0].mxu0
    %v3380 = vpop.f32.mrb[0].mxu0
    %v3381 = vadd.f32 %v3326, %v3380
    %v3382 = vpop.f32.mrb[0].mxu0
    %3383 = vdwg.mxu0
    %v3384 = vmax.f32 %v3378, 0.0
    %v3385 = vmax.f32 %v3381, 0.0
    %v3386 = vpack.c.bf16 %v3385, %v3384
    %s3387 = scalar_lea.vmem %s14, 32
    %v3388 = vld [vmem:[%s3387] sm:$0xf]
    %v3389 = vld [vmem:[%s3387 + $0x4] sm:$0xf]
    %v3390 = vld [vmem:[%s3387 + $0x8] sm:$0xf]
    %v3391 = vld [vmem:[%s3387 + $0xc] sm:$0xf]
    %v3392 = vld [vmem:[%s3387 + $0x10] sm:$0xf]
    %v3393 = vld [vmem:[%s3387 + $0x14] sm:$0xf]
    %v3394 = vld [vmem:[%s3387 + $0x18] sm:$0xf]
    %v3395 = vld [vmem:[%s3387 + $0x1c] sm:$0xf]
    %s3396 = scalar_lea.vmem %s15, 1
    %v3397 = vld [vmem:[%s3396] sm:$0x1]
    %v3399 = vlaneseq
    %v3400 = vshrl.u32 %v3399, 7
    %v3401 = vsub.s32 0, %v3400
    %v3402 = vrot.slane %v3397, %v3401
    %v3412 = vunpack.c.l.b16 %v3388
    %v3413 = vunpack.c.l.b16 %v3389
    %v3414 = vunpack.c.l.b16 %v3390
    %v3415 = vunpack.c.l.b16 %v3391
    %v3416 = vunpack.c.l.b16 %v3392
    %v3417 = vunpack.c.l.b16 %v3393
    %v3418 = vunpack.c.l.b16 %v3394
    %v3419 = vunpack.c.l.b16 %v3395
    %v3420 = vpack.c.b16 %v3413, %v3412
    %v3421 = vpack.c.b16 %v3415, %v3414
    %v3422 = vpack.c.b16 %v3417, %v3416
    %v3423 = vpack.c.b16 %v3419, %v3418
    %v3429 = vsel %vm1764, %v3386, 0
    %3431 = vmatprep.subr.bf16.mxu0 0
    %3432 = vmatpush1.bf16.msra.mxu0 %v3420
    %3433 = vmatprep.subr.bf16.mxu0 0
    %3434 = vmatpush1.bf16.msra.mxu0 %v3421
    %3435 = vmatprep.subr.bf16.mxu0 0
    %3436 = vmatpush1.bf16.msra.mxu0 %v3422
    %3437 = vmatprep.subr.bf16.mxu0 0
    %3438 = vmatpush1.bf16.msra.mxu0 %v3423
    %3439 = vmatprep.subr.bf16.mxu0 0
    %3440 = vmatpush1.bf16.msra.mxu0 0
    %3441 = vmatprep.subr.bf16.mxu0 0
    %3442 = vmatpush1.bf16.msra.mxu0 0
    %3443 = vmatprep.subr.bf16.mxu0 0
    %3444 = vmatpush1.bf16.msra.mxu0 0
    %3445 = vmatprep.subr.bf16.mxu0 0
    %3446 = vmatpush1.bf16.msra.mxu0 0
    %3447 = vmatprep.subr.bf16.mxu0 0
    %3448 = vmatpush1.bf16.msra.mxu0 0
    %3449 = vmatprep.subr.bf16.mxu0 0
    %3450 = vmatpush1.bf16.msra.mxu0 0
    %3451 = vmatprep.subr.bf16.mxu0 0
    %3452 = vmatpush1.bf16.msra.mxu0 0
    %3453 = vmatprep.subr.bf16.mxu0 0
    %3454 = vmatpush1.bf16.msra.mxu0 0
    %3455 = vmatprep.subr.bf16.mxu0 0
    %3456 = vmatpush1.bf16.msra.mxu0 0
    %3457 = vmatprep.subr.bf16.mxu0 0
    %3458 = vmatpush1.bf16.msra.mxu0 0
    %3459 = vmatprep.subr.bf16.mxu0 0
    %3460 = vmatpush1.bf16.msra.mxu0 0
    %3461 = vmatprep.subr.bf16.mxu0 0
    %3462 = vmatpush1.bf16.msra.mxu0 0
    %3463 = vmatprep.mubr.bf16.mxu0 0
    %3464 = vmatmul.mubr.bf16.gmra.mrb[0].mxu0 %v3429
    %v3465 = vpop.f32.mrb[0].mxu0
    %v3466 = vadd.f32 %v3402, %v3465
    %v3467 = vpop.f32.mrb[0].mxu0
    %v3468 = vpop.f32.mrb[0].mxu0
    %v3469 = vadd.f32 %v3402, %v3468
    %v3470 = vpop.f32.mrb[0].mxu0
    %3471 = vdwg.mxu0
    %v3474 = vunpack.c.l.s4 1966171168
    %v3475 = vunpack.c.0.s8 %v3474
    %v3476 = vlaneseq
    %v3477 = vshrl.u32 %v3476, 7
    %v3478 = vsub.s32 %v3475, %v3477
    %v3479 = vrot.slane %v1857, %v3478
    %v3480 = vcombine.high %v3479, %v3479
    %v3482 = vunpack.c.l.s4 1966171168
    %v3483 = vunpack.c.0.s8 %v3482
    %v3484 = vlaneseq
    %v3485 = vshrl.u32 %v3484, 7
    %v3486 = vsub.s32 %v3483, %v3485
    %v3487 = vrot.slane %v3479, %v3486
    %v3489 = vunpack.c.l.s4 1966171168
    %v3490 = vunpack.c.0.s8 %v3489
    %v3491 = vlaneseq
    %v3492 = vshrl.u32 %v3491, 7
    %v3493 = vsub.s32 %v3490, %v3492
    %v3494 = vrot.slane %v3480, %v3493
    %v3495 = vlaneseq
    %v3496 = vshrl.u32 %v3495, 7
    %v3497 = vsub.s32 0, %v3496
    %v3498 = vrot.slane %v3487, %v3497
    %v3499 = vlaneseq
    %v3500 = vshrl.u32 %v3499, 7
    %v3501 = vsub.s32 0, %v3500
    %v3502 = vrot.slane %v3494, %v3501
    %v3505 = vmul.f32 %v3466, %v3498
    %v3506 = vmul.f32 %v3469, %v3502
    %v3507 = vadd.f32 %v3312, %v3505
    %v3508 = vadd.f32 %v3313, %v3506
    %v3509 = vcombine.high %v3507, 0.0
    %v3511 = vunpack.c.l.s4 1983009808
    %v3512 = vunpack.c.0.s8 %v3511
    %v3513 = vlaneseq
    %v3514 = vshrl.u32 %v3513, 7
    %v3515 = vsub.s32 %v3512, %v3514
    %v3516 = vrot.slane %v3507, %v3515
    %v3518 = vunpack.c.l.s4 1983009808
    %v3519 = vunpack.c.0.s8 %v3518
    %v3520 = vlaneseq
    %v3521 = vshrl.u32 %v3520, 7
    %v3522 = vsub.s32 %v3519, %v3521
    %v3523 = vrot.slane %v3509, %v3522
    %v3524 = vcombine.high %v3508, 0.0
    %v3526 = vunpack.c.l.s4 1983009808
    %v3527 = vunpack.c.0.s8 %v3526
    %v3528 = vlaneseq
    %v3529 = vshrl.u32 %v3528, 7
    %v3530 = vsub.s32 %v3527, %v3529
    %v3531 = vrot.slane %v3508, %v3530
    %v3533 = vunpack.c.l.s4 1983009808
    %v3534 = vunpack.c.0.s8 %v3533
    %v3535 = vlaneseq
    %v3536 = vshrl.u32 %v3535, 7
    %v3537 = vsub.s32 %v3534, %v3536
    %v3538 = vrot.slane %v3524, %v3537
    %v3539 = vcombine.low %v3516, %v3531
    %v3540 = vcombine.high %v3516, %v3531
    %v3542 = vunpack.c.l.s4 1934713408
    %v3543 = vunpack.c.0.s8 %v3542
    %v3544 = vlaneseq
    %v3545 = vshrl.u32 %v3544, 7
    %v3546 = vsub.s32 %v3543, %v3545
    %v3547 = vrot.slane %v3539, %v3546
    %v3549 = vunpack.c.l.s4 1934713408
    %v3550 = vunpack.c.0.s8 %v3549
    %v3551 = vlaneseq
    %v3552 = vshrl.u32 %v3551, 7
    %v3553 = vsub.s32 %v3550, %v3552
    %v3554 = vrot.slane %v3540, %v3553
    %v3555 = vcombine.low %v3523, %v3538
    %v3556 = vcombine.high %v3523, %v3538
    %v3558 = vunpack.c.l.s4 1934713408
    %v3559 = vunpack.c.0.s8 %v3558
    %v3560 = vlaneseq
    %v3561 = vshrl.u32 %v3560, 7
    %v3562 = vsub.s32 %v3559, %v3561
    %v3563 = vrot.slane %v3555, %v3562
    %v3565 = vunpack.c.l.s4 1934713408
    %v3566 = vunpack.c.0.s8 %v3565
    %v3567 = vlaneseq
    %v3568 = vshrl.u32 %v3567, 7
    %v3569 = vsub.s32 %v3566, %v3568
    %v3570 = vrot.slane %v3556, %v3569
    %v3571 = vcombine.high %v3547, 0.0
    %v3572 = vcombine.high %v3554, 0.0
    %v3573 = vcombine.high %v3563, 0.0
    %v3574 = vcombine.high %v3570, 0.0
    %3576 = vrot.lane.b32.xlu0 %v3571, 32
    %v3577 = vpop.permute.xlu0 %3576
    %3580 = vrot.lane.b32.xlu0 %v3554, 64
    %v3581 = vpop.permute.xlu0 %3580
    %3584 = vrot.lane.b32.xlu0 %v3572, 96
    %v3585 = vpop.permute.xlu0 %3584
    %3588 = vrot.lane.b32.xlu0 %v3573, 32
    %v3589 = vpop.permute.xlu0 %3588
    %3592 = vrot.lane.b32.xlu0 %v3570, 64
    %v3593 = vpop.permute.xlu0 %3592
    %3596 = vrot.lane.b32.xlu0 %v3574, 96
    %v3597 = vpop.permute.xlu0 %3596
    %v3599 = vsel %vm224, %v3547, %v3577
    %v3600 = vsel %vm1764, %v3599, %v3581
    %vm3601 = vcmask 785408
    %v3602 = vsel %vm3601, %v3600, %v3585
    %v3603 = vsel %vm224, %v3563, %v3589
    %v3604 = vsel %vm1764, %v3603, %v3593
    %v3605 = vsel %vm3601, %v3604, %v3597
    %v3608 = vcombine.low %v3602, %v3605
    %v3610 = vunpack.c.l.s4 1983009808
    %v3611 = vunpack.c.0.s8 %v3610
    %v3612 = vlaneseq
    %v3613 = vshrl.u32 %v3612, 7
    %v3614 = vsub.s32 %v3611, %v3613
    %v3615 = vrot.slane %v3608, %v3614
    %3617 = vst [vmem:[#allocation11] sm:$0xf] %v3615
    // Predicated region
    $region86: #{tpu_custom_call.1} parent=1 // pred_check
      _
    $region87: #{tpu_custom_call.1} parent=1 // pred_check_branch
      %3619 = sbr.rel (0) target = $region89
    $region88: #{tpu_custom_call.1} parent=1 // pred_region
      %s3621 = ssub.s32 64, 64
      %3622 = vsyncadd [#allocation4], %s3621
      %s3624 = sshll.u32 [#allocation11], 4
      %s3625 = int_to_ptr.vmem [resolvable:$true] %s3624
      %3627 = dma.vmem_to_hbm [thread:$0]  %s3625, 64, %s16, [#allocation4]
    $region89: #{tpu_custom_call.1} parent=1 // pred_fallthru
      _
    // Predicated region
    $region90: #{tpu_custom_call.1} parent=1 // pred_check
      _
    $region91: #{tpu_custom_call.1} parent=1 // pred_check_branch
      %3629 = sbr.rel (0) target = $region93
    $region92: #{tpu_custom_call.1} parent=1 // pred_region
      %3630 = dma.done [#allocation4], 64
    $region93: #{tpu_custom_call.1} parent=1 // pred_fallthru
      _
    %3631 = vsyncpa [#allocation3], 1
    %3632 = vsyncpa [#allocation6], 1
    %3633 = vsyncpa [#allocation9], 1
    %3634 = vsyncpa [#allocation4], 1

</llo_original>
